<compile_context>
chip_gen: v7x
topology: tpu7x:2x2x1
jax: 0.10.0
libtpu: 0.0.40
codegen_flags: <defaults>
</compile_context>

<pallas_src>
import jax
import jax.numpy as jnp
from jax import lax
from jax.experimental import pallas as pl
from jax.experimental.pallas import tpu as pltpu


_NEG_LARGE = float(jnp.finfo(jnp.float32).min)


def _make_kernel(hw, hw_t, b_t, grid_k):
    n_sub = hw_t // 128
    ragged = (hw % hw_t) != 0
    valid_last = hw - (grid_k - 1) * hw_t      # valid elements in the last HW tile
    inv_hw = 1.0 / float(hw)

    def kernel(x_ref, w1t_ref, b1_ref, w2t_ref, b2_ref, out_ref,
               sum_acc, max_acc):
        k = pl.program_id(1)

        @pl.when(k == 0)
        def _init():
            sum_acc[...] = jnp.zeros_like(sum_acc)
            max_acc[...] = jnp.full(max_acc.shape, _NEG_LARGE, max_acc.dtype)

        # --- streaming accumulate: element-wise only (VPU), no XLU reduce ----
        def accumulate_full():
            for j in range(n_sub):
                chunk = x_ref[:, :, j * 128:(j + 1) * 128].astype(jnp.float32)
                sum_acc[...] += chunk
                max_acc[...] = jnp.maximum(max_acc[...], chunk)

        def accumulate_tail():
            # Only reached on the last HW tile; per-sub-chunk validity is static.
            for j in range(n_sub):
                lo = j * 128
                if lo >= valid_last:
                    break                                   # fully OOB: skip
                chunk = x_ref[:, :, lo:lo + 128].astype(jnp.float32)
                if lo + 128 <= valid_last:                  # fully valid
                    sum_acc[...] += chunk
                    max_acc[...] = jnp.maximum(max_acc[...], chunk)
                else:                                       # partially valid
                    lane = lax.broadcasted_iota(jnp.int32, chunk.shape, 2)
                    valid = lane < (valid_last - lo)
                    sum_acc[...] += jnp.where(valid, chunk, 0.0)
                    max_acc[...] = jnp.maximum(
                        max_acc[...], jnp.where(valid, chunk, _NEG_LARGE))

        if not ragged:
            accumulate_full()
        elif grid_k == 1:
            accumulate_tail()
        else:
            @pl.when(k < grid_k - 1)
            def _():
                accumulate_full()

            @pl.when(k == grid_k - 1)
            def _():
                accumulate_tail()

        # --- finalize: one XLU lane-reduce + tiny MLP epilogue ---------------
        @pl.when(k == grid_k - 1)
        def _finalize():
            avg = jnp.sum(sum_acc[...], axis=-1) * inv_hw     # (b_t, C) f32
            mx = jnp.max(max_acc[...], axis=-1)               # (b_t, C) f32

            w1t = w1t_ref[...].astype(jnp.float32)
            b1v = b1_ref[...].astype(jnp.float32)
            w2t = w2t_ref[...].astype(jnp.float32)
            b2v = b2_ref[...].astype(jnp.float32)

            def mlp(v):
                h = jnp.dot(v, w1t, preferred_element_type=jnp.float32) + b1v
                return jnp.dot(h, w2t, preferred_element_type=jnp.float32) + b2v

            y_avg = jnp.maximum(mlp(avg), 0.0)   # ReLU on avg branch only (matches spec)
            y_max = mlp(mx)
            out_ref[...] = jax.nn.sigmoid(y_avg + y_max).astype(out_ref.dtype)

    return kernel


def channel_attention(x, w1, b1, w2, b2):
    """x: (B, C, H, W) NCHW. w1: (hidden, C, 1, 1), b1: (hidden,),
    w2: (C, hidden, 1, 1), b2: (C,). Returns (B, C, 1, 1), like PyTorch."""
    B, C, H, W = x.shape
    hidden = w1.shape[0]
    hw = H * W
    itemsize = jnp.dtype(x.dtype).itemsize

    # ---- tiling --------------------------------------------------------------
    # Batch tile: full B for small B, else 8; ragged last B block is handled by
    # Pallas' masked partial-block writes (OOB input rows compute garbage that
    # is never written back).
    b_t = B if B <= 8 else 8
    grid_b = pl.cdiv(B, b_t)

    # HW tile: lane-dense (multiple of 128), up to 2048 lanes, bounded by a
    # per-block VMEM budget.  No host-side padding: ragged tail masked in-kernel.
    hw_round = ((hw + 127) // 128) * 128
    budget = 8 * 1024 * 1024
    hw_t_cap = max(128, (budget // (b_t * C * itemsize)) // 128 * 128)
    hw_t = int(min(2048, hw_round, hw_t_cap))
    grid_k = pl.cdiv(hw, hw_t)

    x_flat = x.reshape(B, C, hw)         # free reshape, no materialized pad

    # 1x1 convs on (B, C, 1, 1) tensors are dense layers on (B, C).
    w1t = w1.reshape(hidden, C).T        # (C, hidden)
    w2t = w2.reshape(C, hidden).T        # (hidden, C)
    b1_2d = b1.reshape(1, hidden)
    b2_2d = b2.reshape(1, C)

    x_block_bytes = b_t * C * hw_t * itemsize
    acc_bytes = 2 * b_t * C * 128 * 4
    vmem_limit = int(min(32 * 1024 * 1024,
                         max(16 * 1024 * 1024,
                             2 * x_block_bytes + acc_bytes + 4 * 1024 * 1024)))

    kernel = _make_kernel(hw=hw, hw_t=hw_t, b_t=b_t, grid_k=grid_k)

    out = pl.pallas_call(
        kernel,
        out_shape=jax.ShapeDtypeStruct((B, C), x.dtype),
        grid_spec=pltpu.PrefetchScalarGridSpec(
            num_scalar_prefetch=0,
            grid=(grid_b, grid_k),
            in_specs=[
                # streamed input: double-buffered by the Pallas pipeline
                pl.BlockSpec((b_t, C, hw_t), lambda b, k: (b, 0, k)),
                # weights/biases: constant index_map -> stay VMEM-resident
                pl.BlockSpec((C, hidden), lambda b, k: (0, 0)),
                pl.BlockSpec((1, hidden), lambda b, k: (0, 0)),
                pl.BlockSpec((hidden, C), lambda b, k: (0, 0)),
                pl.BlockSpec((1, C), lambda b, k: (0, 0)),
            ],
            out_specs=pl.BlockSpec((b_t, C), lambda b, k: (b, 0)),
            scratch_shapes=[
                pltpu.VMEM((b_t, C, 128), jnp.float32),   # per-lane partial sum
                pltpu.VMEM((b_t, C, 128), jnp.float32),   # per-lane partial max
            ],
        ),
        compiler_params=pltpu.CompilerParams(
            dimension_semantics=("parallel", "arbitrary"),
            vmem_limit_bytes=vmem_limit,
        ),
    )(x_flat, w1t, b1_2d, w2t, b2_2d)

    return out.reshape(B, C, 1, 1)


def reference(x, w1, b1, w2, b2):
    """Pure-JAX reference mirroring the PyTorch forward exactly."""
    B, C, H, W = x.shape
    hidden = w1.shape[0]
    avg = jnp.mean(x, axis=(2, 3))       # adaptive_avg_pool2d -> (B, C)
    mx = jnp.max(x, axis=(2, 3))         # adaptive_max_pool2d -> (B, C)
    w1m = w1.reshape(hidden, C)
    w2m = w2.reshape(C, hidden)
    y_avg = (avg @ w1m.T + b1) @ w2m.T + b2
    y_avg = jnp.maximum(y_avg, 0.0)
    y_max = (mx @ w1m.T + b1) @ w2m.T + b2
    out = jax.nn.sigmoid(y_avg + y_max)
    return out.reshape(B, C, 1, 1)


if __name__ == "__main__":
    def _run_case(key, B, C, H, W, ratio):
        hidden = max(1, C // ratio)
        kx, kw1, kb1, kw2, kb2 = jax.random.split(key, 5)
        x = jax.random.normal(kx, (B, C, H, W), dtype=jnp.float32)
        w1 = jax.random.normal(kw1, (hidden, C, 1, 1), dtype=jnp.float32) * 0.1
        b1 = jax.random.normal(kb1, (hidden,), dtype=jnp.float32) * 0.1
        w2 = jax.random.normal(kw2, (C, hidden, 1, 1), dtype=jnp.float32) * 0.1
        b2 = jax.random.normal(kb2, (C,), dtype=jnp.float32) * 0.1

        out = jax.block_until_ready(channel_attention(x, w1, b1, w2, b2))
        ref = reference(x, w1, b1, w2, b2)
        assert out.shape == (B, C, 1, 1)
        assert jnp.allclose(out, ref, atol=1e-5, rtol=1e-5), \
            f"mismatch vs reference for shape {(B, C, H, W)}"

    key = jax.random.PRNGKey(0)
    k1, k2, k3, k4 = jax.random.split(key, 4)
    # in_planes=64, ratio=16 -> hidden=4 (matches the PyTorch module defaults)
    _run_case(k1, B=4, C=64, H=32, W=32, ratio=16)   # exact single-tile HW
    _run_case(k2, B=2, C=64, H=7, W=7, ratio=16)     # ragged single HW tile (masked)
    _run_case(k3, B=2, C=64, H=56, W=56, ratio=16)   # multi-step HW pipeline + ragged tail
    _run_case(k4, B=10, C=64, H=14, W=14, ratio=16)  # ragged batch axis (partial out block)

    print("KERNEL_OK")
</pallas_src>

<mosaic_0001>
module attributes {stable_mosaic.version = 11 : i64} {
  func.func @kernel(%arg0: i32, %arg1: i32, %arg2: memref<4x64x1024xf32, #tpu.memory_space<vmem>>, %arg3: memref<64x4xf32, #tpu.memory_space<vmem>>, %arg4: memref<1x4xf32, #tpu.memory_space<vmem>>, %arg5: memref<4x64xf32, #tpu.memory_space<vmem>>, %arg6: memref<1x64xf32, #tpu.memory_space<vmem>>, %arg7: memref<4x64xf32, #tpu.memory_space<vmem>>, %arg8: memref<4x64x128xf32, #tpu.memory_space<vmem>>, %arg9: memref<4x64x128xf32, #tpu.memory_space<vmem>>) attributes {dimension_semantics = [#tpu.dimension_semantics<parallel>, #tpu.dimension_semantics<arbitrary>], iteration_bounds = array<i64: 1, 1>, scalar_prefetch = 0 : i64, scratch_operands = 2 : i64, tpu.core_type = #tpu.core_type<tc>, window_params = [{transform_indices = @transform_0, window_bounds = array<i64: 4, 64, 1024>}, {pipeline_mode = #tpu.pipeline_mode<synchronous>, transform_indices = @transform_1, window_bounds = array<i64: 64, 4>}, {pipeline_mode = #tpu.pipeline_mode<synchronous>, transform_indices = @transform_2, window_bounds = array<i64: 1, 4>}, {pipeline_mode = #tpu.pipeline_mode<synchronous>, transform_indices = @transform_3, window_bounds = array<i64: 4, 64>}, {pipeline_mode = #tpu.pipeline_mode<synchronous>, transform_indices = @transform_4, window_bounds = array<i64: 1, 64>}, {transform_indices = @transform_5, window_bounds = array<i64: 4, 64>}]} {
    %c0_i32 = arith.constant 0 : i32
    %0 = arith.cmpi eq, %arg1, %c0_i32 : i32
    %1 = arith.extui %0 : i1 to i32
    %c0_i32_0 = arith.constant 0 : i32
    %2 = arith.cmpi ne, %1, %c0_i32_0 : i32
    scf.if %2 {
      %cst = arith.constant 0.000000e+00 : f32
      %62 = vector.broadcast %cst : f32 to vector<4x64x128xf32>
      %c0_115 = arith.constant 0 : index
      %c0_116 = arith.constant 0 : index
      %c0_117 = arith.constant 0 : index
      %63 = vector.load %arg8[%c0_115, %c0_116, %c0_117] : memref<4x64x128xf32, #tpu.memory_space<vmem>>, vector<4x64x128xf32>
      tpu.vector_store %arg8[%c0_115, %c0_116, %c0_117], %62 {strides = array<i32>} : memref<4x64x128xf32, #tpu.memory_space<vmem>>, vector<4x64x128xf32>,
      %cst_118 = arith.constant -3.40282347E+38 : f32
      %64 = vector.broadcast %cst_118 : f32 to vector<4x64x128xf32>
      %c0_119 = arith.constant 0 : index
      %c0_120 = arith.constant 0 : index
      %c0_121 = arith.constant 0 : index
      %65 = vector.load %arg9[%c0_119, %c0_120, %c0_121] : memref<4x64x128xf32, #tpu.memory_space<vmem>>, vector<4x64x128xf32>
      tpu.vector_store %arg9[%c0_119, %c0_120, %c0_121], %64 {strides = array<i32>} : memref<4x64x128xf32, #tpu.memory_space<vmem>>, vector<4x64x128xf32>,
    } else {
    }
    %c0 = arith.constant 0 : index
    %c0_1 = arith.constant 0 : index
    %c0_2 = arith.constant 0 : index
    %3 = vector.load %arg2[%c0, %c0_1, %c0_2] : memref<4x64x1024xf32, #tpu.memory_space<vmem>>, vector<4x64x128xf32>
    %c0_3 = arith.constant 0 : index
    %c0_4 = arith.constant 0 : index
    %c0_5 = arith.constant 0 : index
    %4 = vector.load %arg8[%c0_3, %c0_4, %c0_5] : memref<4x64x128xf32, #tpu.memory_space<vmem>>, vector<4x64x128xf32>
    %5 = arith.addf %4, %3 : vector<4x64x128xf32>
    %c0_6 = arith.constant 0 : index
    %c0_7 = arith.constant 0 : index
    %c0_8 = arith.constant 0 : index
    %6 = vector.load %arg8[%c0_6, %c0_7, %c0_8] : memref<4x64x128xf32, #tpu.memory_space<vmem>>, vector<4x64x128xf32>
    tpu.vector_store %arg8[%c0_6, %c0_7, %c0_8], %5 {strides = array<i32>} : memref<4x64x128xf32, #tpu.memory_space<vmem>>, vector<4x64x128xf32>,
    %c0_9 = arith.constant 0 : index
    %c0_10 = arith.constant 0 : index
    %c0_11 = arith.constant 0 : index
    %7 = vector.load %arg9[%c0_9, %c0_10, %c0_11] : memref<4x64x128xf32, #tpu.memory_space<vmem>>, vector<4x64x128xf32>
    %8 = arith.maximumf %7, %3 : vector<4x64x128xf32>
    %c0_12 = arith.constant 0 : index
    %c0_13 = arith.constant 0 : index
    %c0_14 = arith.constant 0 : index
    %9 = vector.load %arg9[%c0_12, %c0_13, %c0_14] : memref<4x64x128xf32, #tpu.memory_space<vmem>>, vector<4x64x128xf32>
    tpu.vector_store %arg9[%c0_12, %c0_13, %c0_14], %8 {strides = array<i32>} : memref<4x64x128xf32, #tpu.memory_space<vmem>>, vector<4x64x128xf32>,
    %c0_15 = arith.constant 0 : index
    %c0_16 = arith.constant 0 : index
    %c128 = arith.constant 128 : index
    %10 = vector.load %arg2[%c0_15, %c0_16, %c128] : memref<4x64x1024xf32, #tpu.memory_space<vmem>>, vector<4x64x128xf32>
    %c0_17 = arith.constant 0 : index
    %c0_18 = arith.constant 0 : index
    %c0_19 = arith.constant 0 : index
    %11 = vector.load %arg8[%c0_17, %c0_18, %c0_19] : memref<4x64x128xf32, #tpu.memory_space<vmem>>, vector<4x64x128xf32>
    %12 = arith.addf %11, %10 : vector<4x64x128xf32>
    %c0_20 = arith.constant 0 : index
    %c0_21 = arith.constant 0 : index
    %c0_22 = arith.constant 0 : index
    %13 = vector.load %arg8[%c0_20, %c0_21, %c0_22] : memref<4x64x128xf32, #tpu.memory_space<vmem>>, vector<4x64x128xf32>
    tpu.vector_store %arg8[%c0_20, %c0_21, %c0_22], %12 {strides = array<i32>} : memref<4x64x128xf32, #tpu.memory_space<vmem>>, vector<4x64x128xf32>,
    %c0_23 = arith.constant 0 : index
    %c0_24 = arith.constant 0 : index
    %c0_25 = arith.constant 0 : index
    %14 = vector.load %arg9[%c0_23, %c0_24, %c0_25] : memref<4x64x128xf32, #tpu.memory_space<vmem>>, vector<4x64x128xf32>
    %15 = arith.maximumf %14, %10 : vector<4x64x128xf32>
    %c0_26 = arith.constant 0 : index
    %c0_27 = arith.constant 0 : index
    %c0_28 = arith.constant 0 : index
    %16 = vector.load %arg9[%c0_26, %c0_27, %c0_28] : memref<4x64x128xf32, #tpu.memory_space<vmem>>, vector<4x64x128xf32>
    tpu.vector_store %arg9[%c0_26, %c0_27, %c0_28], %15 {strides = array<i32>} : memref<4x64x128xf32, #tpu.memory_space<vmem>>, vector<4x64x128xf32>,
    %c0_29 = arith.constant 0 : index
    %c0_30 = arith.constant 0 : index
    %c256 = arith.constant 256 : index
    %17 = vector.load %arg2[%c0_29, %c0_30, %c256] : memref<4x64x1024xf32, #tpu.memory_space<vmem>>, vector<4x64x128xf32>
    %c0_31 = arith.constant 0 : index
    %c0_32 = arith.constant 0 : index
    %c0_33 = arith.constant 0 : index
    %18 = vector.load %arg8[%c0_31, %c0_32, %c0_33] : memref<4x64x128xf32, #tpu.memory_space<vmem>>, vector<4x64x128xf32>
    %19 = arith.addf %18, %17 : vector<4x64x128xf32>
    %c0_34 = arith.constant 0 : index
    %c0_35 = arith.constant 0 : index
    %c0_36 = arith.constant 0 : index
    %20 = vector.load %arg8[%c0_34, %c0_35, %c0_36] : memref<4x64x128xf32, #tpu.memory_space<vmem>>, vector<4x64x128xf32>
    tpu.vector_store %arg8[%c0_34, %c0_35, %c0_36], %19 {strides = array<i32>} : memref<4x64x128xf32, #tpu.memory_space<vmem>>, vector<4x64x128xf32>,
    %c0_37 = arith.constant 0 : index
    %c0_38 = arith.constant 0 : index
    %c0_39 = arith.constant 0 : index
    %21 = vector.load %arg9[%c0_37, %c0_38, %c0_39] : memref<4x64x128xf32, #tpu.memory_space<vmem>>, vector<4x64x128xf32>
    %22 = arith.maximumf %21, %17 : vector<4x64x128xf32>
    %c0_40 = arith.constant 0 : index
    %c0_41 = arith.constant 0 : index
    %c0_42 = arith.constant 0 : index
    %23 = vector.load %arg9[%c0_40, %c0_41, %c0_42] : memref<4x64x128xf32, #tpu.memory_space<vmem>>, vector<4x64x128xf32>
    tpu.vector_store %arg9[%c0_40, %c0_41, %c0_42], %22 {strides = array<i32>} : memref<4x64x128xf32, #tpu.memory_space<vmem>>, vector<4x64x128xf32>,
    %c0_43 = arith.constant 0 : index
    %c0_44 = arith.constant 0 : index
    %c384 = arith.constant 384 : index
    %24 = vector.load %arg2[%c0_43, %c0_44, %c384] : memref<4x64x1024xf32, #tpu.memory_space<vmem>>, vector<4x64x128xf32>
    %c0_45 = arith.constant 0 : index
    %c0_46 = arith.constant 0 : index
    %c0_47 = arith.constant 0 : index
    %25 = vector.load %arg8[%c0_45, %c0_46, %c0_47] : memref<4x64x128xf32, #tpu.memory_space<vmem>>, vector<4x64x128xf32>
    %26 = arith.addf %25, %24 : vector<4x64x128xf32>
    %c0_48 = arith.constant 0 : index
    %c0_49 = arith.constant 0 : index
    %c0_50 = arith.constant 0 : index
    %27 = vector.load %arg8[%c0_48, %c0_49, %c0_50] : memref<4x64x128xf32, #tpu.memory_space<vmem>>, vector<4x64x128xf32>
    tpu.vector_store %arg8[%c0_48, %c0_49, %c0_50], %26 {strides = array<i32>} : memref<4x64x128xf32, #tpu.memory_space<vmem>>, vector<4x64x128xf32>,
    %c0_51 = arith.constant 0 : index
    %c0_52 = arith.constant 0 : index
    %c0_53 = arith.constant 0 : index
    %28 = vector.load %arg9[%c0_51, %c0_52, %c0_53] : memref<4x64x128xf32, #tpu.memory_space<vmem>>, vector<4x64x128xf32>
    %29 = arith.maximumf %28, %24 : vector<4x64x128xf32>
    %c0_54 = arith.constant 0 : index
    %c0_55 = arith.constant 0 : index
    %c0_56 = arith.constant 0 : index
    %30 = vector.load %arg9[%c0_54, %c0_55, %c0_56] : memref<4x64x128xf32, #tpu.memory_space<vmem>>, vector<4x64x128xf32>
    tpu.vector_store %arg9[%c0_54, %c0_55, %c0_56], %29 {strides = array<i32>} : memref<4x64x128xf32, #tpu.memory_space<vmem>>, vector<4x64x128xf32>,
    %c0_57 = arith.constant 0 : index
    %c0_58 = arith.constant 0 : index
    %c512 = arith.constant 512 : index
    %31 = vector.load %arg2[%c0_57, %c0_58, %c512] : memref<4x64x1024xf32, #tpu.memory_space<vmem>>, vector<4x64x128xf32>
    %c0_59 = arith.constant 0 : index
    %c0_60 = arith.constant 0 : index
    %c0_61 = arith.constant 0 : index
    %32 = vector.load %arg8[%c0_59, %c0_60, %c0_61] : memref<4x64x128xf32, #tpu.memory_space<vmem>>, vector<4x64x128xf32>
    %33 = arith.addf %32, %31 : vector<4x64x128xf32>
    %c0_62 = arith.constant 0 : index
    %c0_63 = arith.constant 0 : index
    %c0_64 = arith.constant 0 : index
    %34 = vector.load %arg8[%c0_62, %c0_63, %c0_64] : memref<4x64x128xf32, #tpu.memory_space<vmem>>, vector<4x64x128xf32>
    tpu.vector_store %arg8[%c0_62, %c0_63, %c0_64], %33 {strides = array<i32>} : memref<4x64x128xf32, #tpu.memory_space<vmem>>, vector<4x64x128xf32>,
    %c0_65 = arith.constant 0 : index
    %c0_66 = arith.constant 0 : index
    %c0_67 = arith.constant 0 : index
    %35 = vector.load %arg9[%c0_65, %c0_66, %c0_67] : memref<4x64x128xf32, #tpu.memory_space<vmem>>, vector<4x64x128xf32>
    %36 = arith.maximumf %35, %31 : vector<4x64x128xf32>
    %c0_68 = arith.constant 0 : index
    %c0_69 = arith.constant 0 : index
    %c0_70 = arith.constant 0 : index
    %37 = vector.load %arg9[%c0_68, %c0_69, %c0_70] : memref<4x64x128xf32, #tpu.memory_space<vmem>>, vector<4x64x128xf32>
    tpu.vector_store %arg9[%c0_68, %c0_69, %c0_70], %36 {strides = array<i32>} : memref<4x64x128xf32, #tpu.memory_space<vmem>>, vector<4x64x128xf32>,
    %c0_71 = arith.constant 0 : index
    %c0_72 = arith.constant 0 : index
    %c640 = arith.constant 640 : index
    %38 = vector.load %arg2[%c0_71, %c0_72, %c640] : memref<4x64x1024xf32, #tpu.memory_space<vmem>>, vector<4x64x128xf32>
    %c0_73 = arith.constant 0 : index
    %c0_74 = arith.constant 0 : index
    %c0_75 = arith.constant 0 : index
    %39 = vector.load %arg8[%c0_73, %c0_74, %c0_75] : memref<4x64x128xf32, #tpu.memory_space<vmem>>, vector<4x64x128xf32>
    %40 = arith.addf %39, %38 : vector<4x64x128xf32>
    %c0_76 = arith.constant 0 : index
    %c0_77 = arith.constant 0 : index
    %c0_78 = arith.constant 0 : index
    %41 = vector.load %arg8[%c0_76, %c0_77, %c0_78] : memref<4x64x128xf32, #tpu.memory_space<vmem>>, vector<4x64x128xf32>
    tpu.vector_store %arg8[%c0_76, %c0_77, %c0_78], %40 {strides = array<i32>} : memref<4x64x128xf32, #tpu.memory_space<vmem>>, vector<4x64x128xf32>,
    %c0_79 = arith.constant 0 : index
    %c0_80 = arith.constant 0 : index
    %c0_81 = arith.constant 0 : index
    %42 = vector.load %arg9[%c0_79, %c0_80, %c0_81] : memref<4x64x128xf32, #tpu.memory_space<vmem>>, vector<4x64x128xf32>
    %43 = arith.maximumf %42, %38 : vector<4x64x128xf32>
    %c0_82 = arith.constant 0 : index
    %c0_83 = arith.constant 0 : index
    %c0_84 = arith.constant 0 : index
    %44 = vector.load %arg9[%c0_82, %c0_83, %c0_84] : memref<4x64x128xf32, #tpu.memory_space<vmem>>, vector<4x64x128xf32>
    tpu.vector_store %arg9[%c0_82, %c0_83, %c0_84], %43 {strides = array<i32>} : memref<4x64x128xf32, #tpu.memory_space<vmem>>, vector<4x64x128xf32>,
    %c0_85 = arith.constant 0 : index
    %c0_86 = arith.constant 0 : index
    %c768 = arith.constant 768 : index
    %45 = vector.load %arg2[%c0_85, %c0_86, %c768] : memref<4x64x1024xf32, #tpu.memory_space<vmem>>, vector<4x64x128xf32>
    %c0_87 = arith.constant 0 : index
    %c0_88 = arith.constant 0 : index
    %c0_89 = arith.constant 0 : index
    %46 = vector.load %arg8[%c0_87, %c0_88, %c0_89] : memref<4x64x128xf32, #tpu.memory_space<vmem>>, vector<4x64x128xf32>
    %47 = arith.addf %46, %45 : vector<4x64x128xf32>
    %c0_90 = arith.constant 0 : index
    %c0_91 = arith.constant 0 : index
    %c0_92 = arith.constant 0 : index
    %48 = vector.load %arg8[%c0_90, %c0_91, %c0_92] : memref<4x64x128xf32, #tpu.memory_space<vmem>>, vector<4x64x128xf32>
    tpu.vector_store %arg8[%c0_90, %c0_91, %c0_92], %47 {strides = array<i32>} : memref<4x64x128xf32, #tpu.memory_space<vmem>>, vector<4x64x128xf32>,
    %c0_93 = arith.constant 0 : index
    %c0_94 = arith.constant 0 : index
    %c0_95 = arith.constant 0 : index
    %49 = vector.load %arg9[%c0_93, %c0_94, %c0_95] : memref<4x64x128xf32, #tpu.memory_space<vmem>>, vector<4x64x128xf32>
    %50 = arith.maximumf %49, %45 : vector<4x64x128xf32>
    %c0_96 = arith.constant 0 : index
    %c0_97 = arith.constant 0 : index
    %c0_98 = arith.constant 0 : index
    %51 = vector.load %arg9[%c0_96, %c0_97, %c0_98] : memref<4x64x128xf32, #tpu.memory_space<vmem>>, vector<4x64x128xf32>
    tpu.vector_store %arg9[%c0_96, %c0_97, %c0_98], %50 {strides = array<i32>} : memref<4x64x128xf32, #tpu.memory_space<vmem>>, vector<4x64x128xf32>,
    %c0_99 = arith.constant 0 : index
    %c0_100 = arith.constant 0 : index
    %c896 = arith.constant 896 : index
    %52 = vector.load %arg2[%c0_99, %c0_100, %c896] : memref<4x64x1024xf32, #tpu.memory_space<vmem>>, vector<4x64x128xf32>
    %c0_101 = arith.constant 0 : index
    %c0_102 = arith.constant 0 : index
    %c0_103 = arith.constant 0 : index
    %53 = vector.load %arg8[%c0_101, %c0_102, %c0_103] : memref<4x64x128xf32, #tpu.memory_space<vmem>>, vector<4x64x128xf32>
    %54 = arith.addf %53, %52 : vector<4x64x128xf32>
    %c0_104 = arith.constant 0 : index
    %c0_105 = arith.constant 0 : index
    %c0_106 = arith.constant 0 : index
    %55 = vector.load %arg8[%c0_104, %c0_105, %c0_106] : memref<4x64x128xf32, #tpu.memory_space<vmem>>, vector<4x64x128xf32>
    tpu.vector_store %arg8[%c0_104, %c0_105, %c0_106], %54 {strides = array<i32>} : memref<4x64x128xf32, #tpu.memory_space<vmem>>, vector<4x64x128xf32>,
    %c0_107 = arith.constant 0 : index
    %c0_108 = arith.constant 0 : index
    %c0_109 = arith.constant 0 : index
    %56 = vector.load %arg9[%c0_107, %c0_108, %c0_109] : memref<4x64x128xf32, #tpu.memory_space<vmem>>, vector<4x64x128xf32>
    %57 = arith.maximumf %56, %52 : vector<4x64x128xf32>
    %c0_110 = arith.constant 0 : index
    %c0_111 = arith.constant 0 : index
    %c0_112 = arith.constant 0 : index
    %58 = vector.load %arg9[%c0_110, %c0_111, %c0_112] : memref<4x64x128xf32, #tpu.memory_space<vmem>>, vector<4x64x128xf32>
    tpu.vector_store %arg9[%c0_110, %c0_111, %c0_112], %57 {strides = array<i32>} : memref<4x64x128xf32, #tpu.memory_space<vmem>>, vector<4x64x128xf32>,
    %c0_i32_113 = arith.constant 0 : i32
    %59 = arith.cmpi eq, %arg1, %c0_i32_113 : i32
    %60 = arith.extui %59 : i1 to i32
    %c0_i32_114 = arith.constant 0 : i32
    %61 = arith.cmpi ne, %60, %c0_i32_114 : i32
    scf.if %61 {
      %c0_115 = arith.constant 0 : index
      %c0_116 = arith.constant 0 : index
      %c0_117 = arith.constant 0 : index
      %62 = vector.load %arg8[%c0_115, %c0_116, %c0_117] : memref<4x64x128xf32, #tpu.memory_space<vmem>>, vector<4x64x128xf32>
      %cst = arith.constant dense<0.000000e+00> : vector<4x64xf32>
      %63 = vector.multi_reduction <add>, %62, %cst [2] : vector<4x64x128xf32> to vector<4x64xf32>
      %cst_118 = arith.constant 9.765625E-4 : f32
      %64 = vector.broadcast %cst_118 : f32 to vector<4x64xf32>
      %65 = arith.mulf %63, %64 : vector<4x64xf32>
      %c0_119 = arith.constant 0 : index
      %c0_120 = arith.constant 0 : index
      %c0_121 = arith.constant 0 : index
      %66 = vector.load %arg9[%c0_119, %c0_120, %c0_121] : memref<4x64x128xf32, #tpu.memory_space<vmem>>, vector<4x64x128xf32>
      %cst_122 = arith.constant dense<0xFF800000> : vector<4x64xf32>
      %67 = vector.multi_reduction <maximumf>, %66, %cst_122 [2] : vector<4x64x128xf32> to vector<4x64xf32>
      %c0_123 = arith.constant 0 : index
      %c0_124 = arith.constant 0 : index
      %68 = vector.load %arg3[%c0_123, %c0_124] : memref<64x4xf32, #tpu.memory_space<vmem>>, vector<64x4xf32>
      %c0_125 = arith.constant 0 : index
      %c0_126 = arith.constant 0 : index
      %69 = vector.load %arg4[%c0_125, %c0_126] : memref<1x4xf32, #tpu.memory_space<vmem>>, vector<1x4xf32>
      %c0_127 = arith.constant 0 : index
      %c0_128 = arith.constant 0 : index
      %70 = vector.load %arg5[%c0_127, %c0_128] : memref<4x64xf32, #tpu.memory_space<vmem>>, vector<4x64xf32>
      %c0_129 = arith.constant 0 : index
      %c0_130 = arith.constant 0 : index
      %71 = vector.load %arg6[%c0_129, %c0_130] : memref<1x64xf32, #tpu.memory_space<vmem>>, vector<1x64xf32>
      %cst_131 = arith.constant dense<0.000000e+00> : vector<4x4xf32>
      %72 = tpu.matmul %65, %68, %cst_131 {dimension_numbers = #tpu.dot_dimension_numbers<[1], [0], [0], [1], [0, 0, 1, 1], [], []>} : vector<4x64xf32>, vector<64x4xf32>, vector<4x4xf32> -> vector<4x4xf32>
      %73 = vector.broadcast %69 : vector<1x4xf32> to vector<4x4xf32>
      %74 = arith.addf %72, %73 : vector<4x4xf32>
      %cst_132 = arith.constant dense<0.000000e+00> : vector<4x64xf32>
      %75 = tpu.matmul %74, %70, %cst_132 {dimension_numbers = #tpu.dot_dimension_numbers<[1], [0], [0], [1], [0, 0, 1, 1], [], []>} : vector<4x4xf32>, vector<4x64xf32>, vector<4x64xf32> -> vector<4x64xf32>
      %76 = vector.broadcast %71 : vector<1x64xf32> to vector<4x64xf32>
      %77 = arith.addf %75, %76 : vector<4x64xf32>
      %cst_133 = arith.constant 0.000000e+00 : f32
      %78 = vector.broadcast %cst_133 : f32 to vector<4x64xf32>
      %79 = arith.maximumf %77, %78 : vector<4x64xf32>
      %cst_134 = arith.constant dense<0.000000e+00> : vector<4x4xf32>
      %80 = tpu.matmul %67, %68, %cst_134 {dimension_numbers = #tpu.dot_dimension_numbers<[1], [0], [0], [1], [0, 0, 1, 1], [], []>} : vector<4x64xf32>, vector<64x4xf32>, vector<4x4xf32> -> vector<4x4xf32>
      %81 = vector.broadcast %69 : vector<1x4xf32> to vector<4x4xf32>
      %82 = arith.addf %80, %81 : vector<4x4xf32>
      %cst_135 = arith.constant dense<0.000000e+00> : vector<4x64xf32>
      %83 = tpu.matmul %82, %70, %cst_135 {dimension_numbers = #tpu.dot_dimension_numbers<[1], [0], [0], [1], [0, 0, 1, 1], [], []>} : vector<4x4xf32>, vector<4x64xf32>, vector<4x64xf32> -> vector<4x64xf32>
      %84 = vector.broadcast %71 : vector<1x64xf32> to vector<4x64xf32>
      %85 = arith.addf %83, %84 : vector<4x64xf32>
      %86 = arith.addf %79, %85 : vector<4x64xf32>
      %87 = arith.negf %86 : vector<4x64xf32>
      %88 = math.exp %87 : vector<4x64xf32>
      %cst_136 = arith.constant 1.000000e+00 : f32
      %89 = vector.broadcast %cst_136 : f32 to vector<4x64xf32>
      %90 = arith.addf %89, %88 : vector<4x64xf32>
      %91 = arith.divf %89, %90 : vector<4x64xf32>
      %c0_137 = arith.constant 0 : index
      %c0_138 = arith.constant 0 : index
      %92 = vector.load %arg7[%c0_137, %c0_138] : memref<4x64xf32, #tpu.memory_space<vmem>>, vector<4x64xf32>
      tpu.vector_store %arg7[%c0_137, %c0_138], %91 {strides = array<i32>} : memref<4x64xf32, #tpu.memory_space<vmem>>, vector<4x64xf32>,
    } else {
    }
    return
  }
  func.func @transform_0(%arg0: i32, %arg1: i32) -> (i32, i32, i32) {
    %c0_i32 = arith.constant 0 : i32
    %c0_i32_0 = arith.constant 0 : i32
    return %arg0, %c0_i32, %arg1 : i32, i32, i32
  }
  func.func @transform_1(%arg0: i32, %arg1: i32) -> (i32, i32) {
    %c0_i32 = arith.constant 0 : i32
    %c0_i32_0 = arith.constant 0 : i32
    %c0_i32_1 = arith.constant 0 : i32
    return %c0_i32, %c0_i32_0 : i32, i32
  }
  func.func @transform_2(%arg0: i32, %arg1: i32) -> (i32, i32) {
    %c0_i32 = arith.constant 0 : i32
    %c0_i32_0 = arith.constant 0 : i32
    %c0_i32_1 = arith.constant 0 : i32
    return %c0_i32, %c0_i32_0 : i32, i32
  }
  func.func @transform_3(%arg0: i32, %arg1: i32) -> (i32, i32) {
    %c0_i32 = arith.constant 0 : i32
    %c0_i32_0 = arith.constant 0 : i32
    %c0_i32_1 = arith.constant 0 : i32
    return %c0_i32, %c0_i32_0 : i32, i32
  }
  func.func @transform_4(%arg0: i32, %arg1: i32) -> (i32, i32) {
    %c0_i32 = arith.constant 0 : i32
    %c0_i32_0 = arith.constant 0 : i32
    %c0_i32_1 = arith.constant 0 : i32
    return %c0_i32, %c0_i32_0 : i32, i32
  }
  func.func @transform_5(%arg0: i32, %arg1: i32) -> (i32, i32) {
    %c0_i32 = arith.constant 0 : i32
    %c0_i32_0 = arith.constant 0 : i32
    return %arg0, %c0_i32 : i32, i32
  }
}

</mosaic_0001>

<llo_original>
// kernel: tpu_custom_call.1
$region0: #{tpu_custom_call.1}
  #allocation0 [shape = 'u32[]', space=smem, size = 0x4, offset = 0x4, fixed_abs, tag = 'smem constant byte address 0x4 - core index']
  #allocation1 [shape = 'u32[144,128]{1,0:T(1,128)}', space=vmem, size = 0x12000, scoped, tag = 'internal scratch']
  #allocation2 [shape = 'f32[4,64,128]{2,1,0:T(8,128)}', space=vmem, size = 0x20000, scoped, tag = 'scratch operand']
  #allocation3 [shape = 'f32[4,64,128]{2,1,0:T(8,128)}', space=vmem, size = 0x20000, scoped, tag = 'scratch operand']
  %s0 = inlined_call_operand.hbm [shape: f32[4,64,1024], index: 0, kind: input, shape index: {}]
  %s1 = inlined_call_operand.vmem [shape: f32[64,4], index: 1, kind: input, shape index: {}]
  %s2 = inlined_call_operand.vmem [shape: f32[1,4], index: 2, kind: input, shape index: {}]
  %s3 = inlined_call_operand.vmem [shape: f32[4,64], index: 3, kind: input, shape index: {}]
  %s4 = inlined_call_operand.vmem [shape: f32[1,64], index: 4, kind: input, shape index: {}]
  %s5 = inlined_call_operand.hbm [shape: f32[4,64], index: 5, kind: output, shape index: {}]
  %s6 = sld [smem:[#allocation0]]
  $region42: #{tpu_custom_call.1} parent=0
    _
  %s8 = ssub.s32 1, %s6
  %s9 = scalar_select 0, %s8, %s6
  $region1: #{tpu_custom_call.1} parent=0
    #allocation4 [shape = 'u8[1048576]{0}', space=vmem, size = 0x100000, scoped, tag = 'input window, operand 0, single buffered']
    #allocation5 [shape = 's32[1]{0}', space=sflag, size = 0x4, scoped, tag = 'scoped memory for tpu_custom_call.1']
    #allocation6 [shape = 's32[1]{0}', space=sflag, size = 0x4, scoped, tag = 'scoped memory for tpu_custom_call.1']
    #allocation7 [shape = 'u8[2048]{0}', space=vmem, size = 0x800, scoped, tag = 'output window, operand 0, single buffered']
    %10 = vsyncpa [#allocation5], 0
    %11 = vsyncpa [#allocation6], 0
    // Predicated region
    $region2: #{tpu_custom_call.1} parent=1 // pred_check
      _
    $region3: #{tpu_custom_call.1} parent=1 // pred_check_branch
      %13 = sbr.rel (0) target = $region5
    $region4: #{tpu_custom_call.1} parent=1 // pred_region
      %s15 = ssub.s32 32768, 32768
      %16 = vsyncadd [#allocation5], %s15
      %s17 = sshll.u32 [#allocation4], 4
      %s18 = int_to_ptr.vmem [resolvable:$true] %s17
      %23 = dma.hbm_to_vmem [thread:$0]  %s0, 32768, %s18, [#allocation5], 1024, 1024, 64
    $region5: #{tpu_custom_call.1} parent=1 // pred_fallthru
      _
    // Predicated region
    $region6: #{tpu_custom_call.1} parent=1 // pred_check
      _
    $region7: #{tpu_custom_call.1} parent=1 // pred_check_branch
      %25 = sbr.rel (0) target = $region9
    $region8: #{tpu_custom_call.1} parent=1 // pred_region
      _
    $region9: #{tpu_custom_call.1} parent=1 // pred_fallthru
      _
    // Predicated region
    $region10: #{tpu_custom_call.1} parent=1 // pred_check
      _
    $region11: #{tpu_custom_call.1} parent=1 // pred_check_branch
      %27 = sbr.rel (0) target = $region13
    $region12: #{tpu_custom_call.1} parent=1 // pred_region
      _
    $region13: #{tpu_custom_call.1} parent=1 // pred_fallthru
      _
    // Predicated region
    $region14: #{tpu_custom_call.1} parent=1 // pred_check
      _
    $region15: #{tpu_custom_call.1} parent=1 // pred_check_branch
      %29 = sbr.rel (0) target = $region17
    $region16: #{tpu_custom_call.1} parent=1 // pred_region
      _
    $region17: #{tpu_custom_call.1} parent=1 // pred_fallthru
      _
    // Predicated region
    $region18: #{tpu_custom_call.1} parent=1 // pred_check
      _
    $region19: #{tpu_custom_call.1} parent=1 // pred_check_branch
      %31 = sbr.rel (0) target = $region21
    $region20: #{tpu_custom_call.1} parent=1 // pred_region
      _
    $region21: #{tpu_custom_call.1} parent=1 // pred_fallthru
      _
    // Predicated region
    $region22: #{tpu_custom_call.1} parent=1 // pred_check
      _
    $region23: #{tpu_custom_call.1} parent=1 // pred_check_branch
      %33 = sbr.rel (0) target = $region25
    $region24: #{tpu_custom_call.1} parent=1 // pred_region
      %34 = dma.done [#allocation5], 32768
    $region25: #{tpu_custom_call.1} parent=1 // pred_fallthru
      _
    %p35 = scmp.eq.s32.totalorder 0, 0
    // Predicated region
    $region26: #{tpu_custom_call.1} parent=1 // pred_check
      %p36 = pneg %p35
    $region27: #{tpu_custom_call.1} parent=1 // pred_check_branch
      %38 = sbr.rel (%p36) target = $region29
    $region28: #{tpu_custom_call.1} parent=1 // pred_region
      %39 = vst [vmem:[#allocation2] sm:$0xff] 0.0
      %40 = vst [vmem:[#allocation2 + $0x8] sm:$0xff] 0.0
      %41 = vst [vmem:[#allocation2 + $0x10] sm:$0xff] 0.0
      %42 = vst [vmem:[#allocation2 + $0x18] sm:$0xff] 0.0
      %43 = vst [vmem:[#allocation2 + $0x20] sm:$0xff] 0.0
      %44 = vst [vmem:[#allocation2 + $0x28] sm:$0xff] 0.0
      %45 = vst [vmem:[#allocation2 + $0x30] sm:$0xff] 0.0
      %46 = vst [vmem:[#allocation2 + $0x38] sm:$0xff] 0.0
      %47 = vst [vmem:[#allocation2 + $0x40] sm:$0xff] 0.0
      %48 = vst [vmem:[#allocation2 + $0x48] sm:$0xff] 0.0
      %49 = vst [vmem:[#allocation2 + $0x50] sm:$0xff] 0.0
      %50 = vst [vmem:[#allocation2 + $0x58] sm:$0xff] 0.0
      %51 = vst [vmem:[#allocation2 + $0x60] sm:$0xff] 0.0
      %52 = vst [vmem:[#allocation2 + $0x68] sm:$0xff] 0.0
      %53 = vst [vmem:[#allocation2 + $0x70] sm:$0xff] 0.0
      %54 = vst [vmem:[#allocation2 + $0x78] sm:$0xff] 0.0
      %55 = vst [vmem:[#allocation2 + $0x80] sm:$0xff] 0.0
      %56 = vst [vmem:[#allocation2 + $0x88] sm:$0xff] 0.0
      %57 = vst [vmem:[#allocation2 + $0x90] sm:$0xff] 0.0
      %58 = vst [vmem:[#allocation2 + $0x98] sm:$0xff] 0.0
      %59 = vst [vmem:[#allocation2 + $0xa0] sm:$0xff] 0.0
      %60 = vst [vmem:[#allocation2 + $0xa8] sm:$0xff] 0.0
      %61 = vst [vmem:[#allocation2 + $0xb0] sm:$0xff] 0.0
      %62 = vst [vmem:[#allocation2 + $0xb8] sm:$0xff] 0.0
      %63 = vst [vmem:[#allocation2 + $0xc0] sm:$0xff] 0.0
      %64 = vst [vmem:[#allocation2 + $0xc8] sm:$0xff] 0.0
      %65 = vst [vmem:[#allocation2 + $0xd0] sm:$0xff] 0.0
      %66 = vst [vmem:[#allocation2 + $0xd8] sm:$0xff] 0.0
      %67 = vst [vmem:[#allocation2 + $0xe0] sm:$0xff] 0.0
      %68 = vst [vmem:[#allocation2 + $0xe8] sm:$0xff] 0.0
      %69 = vst [vmem:[#allocation2 + $0xf0] sm:$0xff] 0.0
      %70 = vst [vmem:[#allocation2 + $0xf8] sm:$0xff] 0.0
      %71 = vst [vmem:[#allocation3] sm:$0xff] -3.4028235e+38
      %72 = vst [vmem:[#allocation3 + $0x8] sm:$0xff] -3.4028235e+38
      %73 = vst [vmem:[#allocation3 + $0x10] sm:$0xff] -3.4028235e+38
      %74 = vst [vmem:[#allocation3 + $0x18] sm:$0xff] -3.4028235e+38
      %75 = vst [vmem:[#allocation3 + $0x20] sm:$0xff] -3.4028235e+38
      %76 = vst [vmem:[#allocation3 + $0x28] sm:$0xff] -3.4028235e+38
      %77 = vst [vmem:[#allocation3 + $0x30] sm:$0xff] -3.4028235e+38
      %78 = vst [vmem:[#allocation3 + $0x38] sm:$0xff] -3.4028235e+38
      %79 = vst [vmem:[#allocation3 + $0x40] sm:$0xff] -3.4028235e+38
      %80 = vst [vmem:[#allocation3 + $0x48] sm:$0xff] -3.4028235e+38
      %81 = vst [vmem:[#allocation3 + $0x50] sm:$0xff] -3.4028235e+38
      %82 = vst [vmem:[#allocation3 + $0x58] sm:$0xff] -3.4028235e+38
      %83 = vst [vmem:[#allocation3 + $0x60] sm:$0xff] -3.4028235e+38
      %84 = vst [vmem:[#allocation3 + $0x68] sm:$0xff] -3.4028235e+38
      %85 = vst [vmem:[#allocation3 + $0x70] sm:$0xff] -3.4028235e+38
      %86 = vst [vmem:[#allocation3 + $0x78] sm:$0xff] -3.4028235e+38
      %87 = vst [vmem:[#allocation3 + $0x80] sm:$0xff] -3.4028235e+38
      %88 = vst [vmem:[#allocation3 + $0x88] sm:$0xff] -3.4028235e+38
      %89 = vst [vmem:[#allocation3 + $0x90] sm:$0xff] -3.4028235e+38
      %90 = vst [vmem:[#allocation3 + $0x98] sm:$0xff] -3.4028235e+38
      %91 = vst [vmem:[#allocation3 + $0xa0] sm:$0xff] -3.4028235e+38
      %92 = vst [vmem:[#allocation3 + $0xa8] sm:$0xff] -3.4028235e+38
      %93 = vst [vmem:[#allocation3 + $0xb0] sm:$0xff] -3.4028235e+38
      %94 = vst [vmem:[#allocation3 + $0xb8] sm:$0xff] -3.4028235e+38
      %95 = vst [vmem:[#allocation3 + $0xc0] sm:$0xff] -3.4028235e+38
      %96 = vst [vmem:[#allocation3 + $0xc8] sm:$0xff] -3.4028235e+38
      %97 = vst [vmem:[#allocation3 + $0xd0] sm:$0xff] -3.4028235e+38
      %98 = vst [vmem:[#allocation3 + $0xd8] sm:$0xff] -3.4028235e+38
      %99 = vst [vmem:[#allocation3 + $0xe0] sm:$0xff] -3.4028235e+38
      %100 = vst [vmem:[#allocation3 + $0xe8] sm:$0xff] -3.4028235e+38
      %101 = vst [vmem:[#allocation3 + $0xf0] sm:$0xff] -3.4028235e+38
      %102 = vst [vmem:[#allocation3 + $0xf8] sm:$0xff] -3.4028235e+38
    $region29: #{tpu_custom_call.1} parent=1 // pred_fallthru
      _
    %v103 = vld [vmem:[#allocation4] sm:$0xff]
    %v104 = vld [vmem:[#allocation4 + $0x40] sm:$0xff]
    %v105 = vld [vmem:[#allocation4 + $0x80] sm:$0xff]
    %v106 = vld [vmem:[#allocation4 + $0xc0] sm:$0xff]
    %v107 = vld [vmem:[#allocation4 + $0x100] sm:$0xff]
    %v108 = vld [vmem:[#allocation4 + $0x140] sm:$0xff]
    %v109 = vld [vmem:[#allocation4 + $0x180] sm:$0xff]
    %v110 = vld [vmem:[#allocation4 + $0x1c0] sm:$0xff]
    %v111 = vld [vmem:[#allocation4 + $0x200] sm:$0xff]
    %v112 = vld [vmem:[#allocation4 + $0x240] sm:$0xff]
    %v113 = vld [vmem:[#allocation4 + $0x280] sm:$0xff]
    %v114 = vld [vmem:[#allocation4 + $0x2c0] sm:$0xff]
    %v115 = vld [vmem:[#allocation4 + $0x300] sm:$0xff]
    %v116 = vld [vmem:[#allocation4 + $0x340] sm:$0xff]
    %v117 = vld [vmem:[#allocation4 + $0x380] sm:$0xff]
    %v118 = vld [vmem:[#allocation4 + $0x3c0] sm:$0xff]
    %v119 = vld [vmem:[#allocation4 + $0x400] sm:$0xff]
    %v120 = vld [vmem:[#allocation4 + $0x440] sm:$0xff]
    %v121 = vld [vmem:[#allocation4 + $0x480] sm:$0xff]
    %v122 = vld [vmem:[#allocation4 + $0x4c0] sm:$0xff]
    %v123 = vld [vmem:[#allocation4 + $0x500] sm:$0xff]
    %v124 = vld [vmem:[#allocation4 + $0x540] sm:$0xff]
    %v125 = vld [vmem:[#allocation4 + $0x580] sm:$0xff]
    %v126 = vld [vmem:[#allocation4 + $0x5c0] sm:$0xff]
    %v127 = vld [vmem:[#allocation4 + $0x600] sm:$0xff]
    %v128 = vld [vmem:[#allocation4 + $0x640] sm:$0xff]
    %v129 = vld [vmem:[#allocation4 + $0x680] sm:$0xff]
    %v130 = vld [vmem:[#allocation4 + $0x6c0] sm:$0xff]
    %v131 = vld [vmem:[#allocation4 + $0x700] sm:$0xff]
    %v132 = vld [vmem:[#allocation4 + $0x740] sm:$0xff]
    %v133 = vld [vmem:[#allocation4 + $0x780] sm:$0xff]
    %v134 = vld [vmem:[#allocation4 + $0x7c0] sm:$0xff]
    %v135 = vld [vmem:[#allocation2] sm:$0xff]
    %v136 = vld [vmem:[#allocation2 + $0x8] sm:$0xff]
    %v137 = vld [vmem:[#allocation2 + $0x10] sm:$0xff]
    %v138 = vld [vmem:[#allocation2 + $0x18] sm:$0xff]
    %v139 = vld [vmem:[#allocation2 + $0x20] sm:$0xff]
    %v140 = vld [vmem:[#allocation2 + $0x28] sm:$0xff]
    %v141 = vld [vmem:[#allocation2 + $0x30] sm:$0xff]
    %v142 = vld [vmem:[#allocation2 + $0x38] sm:$0xff]
    %v143 = vld [vmem:[#allocation2 + $0x40] sm:$0xff]
    %v144 = vld [vmem:[#allocation2 + $0x48] sm:$0xff]
    %v145 = vld [vmem:[#allocation2 + $0x50] sm:$0xff]
    %v146 = vld [vmem:[#allocation2 + $0x58] sm:$0xff]
    %v147 = vld [vmem:[#allocation2 + $0x60] sm:$0xff]
    %v148 = vld [vmem:[#allocation2 + $0x68] sm:$0xff]
    %v149 = vld [vmem:[#allocation2 + $0x70] sm:$0xff]
    %v150 = vld [vmem:[#allocation2 + $0x78] sm:$0xff]
    %v151 = vld [vmem:[#allocation2 + $0x80] sm:$0xff]
    %v152 = vld [vmem:[#allocation2 + $0x88] sm:$0xff]
    %v153 = vld [vmem:[#allocation2 + $0x90] sm:$0xff]
    %v154 = vld [vmem:[#allocation2 + $0x98] sm:$0xff]
    %v155 = vld [vmem:[#allocation2 + $0xa0] sm:$0xff]
    %v156 = vld [vmem:[#allocation2 + $0xa8] sm:$0xff]
    %v157 = vld [vmem:[#allocation2 + $0xb0] sm:$0xff]
    %v158 = vld [vmem:[#allocation2 + $0xb8] sm:$0xff]
    %v159 = vld [vmem:[#allocation2 + $0xc0] sm:$0xff]
    %v160 = vld [vmem:[#allocation2 + $0xc8] sm:$0xff]
    %v161 = vld [vmem:[#allocation2 + $0xd0] sm:$0xff]
    %v162 = vld [vmem:[#allocation2 + $0xd8] sm:$0xff]
    %v163 = vld [vmem:[#allocation2 + $0xe0] sm:$0xff]
    %v164 = vld [vmem:[#allocation2 + $0xe8] sm:$0xff]
    %v165 = vld [vmem:[#allocation2 + $0xf0] sm:$0xff]
    %v166 = vld [vmem:[#allocation2 + $0xf8] sm:$0xff]
    %v167 = vadd.f32 %v135, %v103
    %v168 = vadd.f32 %v136, %v104
    %v169 = vadd.f32 %v137, %v105
    %v170 = vadd.f32 %v138, %v106
    %v171 = vadd.f32 %v139, %v107
    %v172 = vadd.f32 %v140, %v108
    %v173 = vadd.f32 %v141, %v109
    %v174 = vadd.f32 %v142, %v110
    %v175 = vadd.f32 %v143, %v111
    %v176 = vadd.f32 %v144, %v112
    %v177 = vadd.f32 %v145, %v113
    %v178 = vadd.f32 %v146, %v114
    %v179 = vadd.f32 %v147, %v115
    %v180 = vadd.f32 %v148, %v116
    %v181 = vadd.f32 %v149, %v117
    %v182 = vadd.f32 %v150, %v118
    %v183 = vadd.f32 %v151, %v119
    %v184 = vadd.f32 %v152, %v120
    %v185 = vadd.f32 %v153, %v121
    %v186 = vadd.f32 %v154, %v122
    %v187 = vadd.f32 %v155, %v123
    %v188 = vadd.f32 %v156, %v124
    %v189 = vadd.f32 %v157, %v125
    %v190 = vadd.f32 %v158, %v126
    %v191 = vadd.f32 %v159, %v127
    %v192 = vadd.f32 %v160, %v128
    %v193 = vadd.f32 %v161, %v129
    %v194 = vadd.f32 %v162, %v130
    %v195 = vadd.f32 %v163, %v131
    %v196 = vadd.f32 %v164, %v132
    %v197 = vadd.f32 %v165, %v133
    %v198 = vadd.f32 %v166, %v134
    %199 = vst [vmem:[#allocation2] sm:$0xff] %v167
    %200 = vst [vmem:[#allocation2 + $0x8] sm:$0xff] %v168
    %201 = vst [vmem:[#allocation2 + $0x10] sm:$0xff] %v169
    %202 = vst [vmem:[#allocation2 + $0x18] sm:$0xff] %v170
    %203 = vst [vmem:[#allocation2 + $0x20] sm:$0xff] %v171
    %204 = vst [vmem:[#allocation2 + $0x28] sm:$0xff] %v172
    %205 = vst [vmem:[#allocation2 + $0x30] sm:$0xff] %v173
    %206 = vst [vmem:[#allocation2 + $0x38] sm:$0xff] %v174
    %207 = vst [vmem:[#allocation2 + $0x40] sm:$0xff] %v175
    %208 = vst [vmem:[#allocation2 + $0x48] sm:$0xff] %v176
    %209 = vst [vmem:[#allocation2 + $0x50] sm:$0xff] %v177
    %210 = vst [vmem:[#allocation2 + $0x58] sm:$0xff] %v178
    %211 = vst [vmem:[#allocation2 + $0x60] sm:$0xff] %v179
    %212 = vst [vmem:[#allocation2 + $0x68] sm:$0xff] %v180
    %213 = vst [vmem:[#allocation2 + $0x70] sm:$0xff] %v181
    %214 = vst [vmem:[#allocation2 + $0x78] sm:$0xff] %v182
    %215 = vst [vmem:[#allocation2 + $0x80] sm:$0xff] %v183
    %216 = vst [vmem:[#allocation2 + $0x88] sm:$0xff] %v184
    %217 = vst [vmem:[#allocation2 + $0x90] sm:$0xff] %v185
    %218 = vst [vmem:[#allocation2 + $0x98] sm:$0xff] %v186
    %219 = vst [vmem:[#allocation2 + $0xa0] sm:$0xff] %v187
    %220 = vst [vmem:[#allocation2 + $0xa8] sm:$0xff] %v188
    %221 = vst [vmem:[#allocation2 + $0xb0] sm:$0xff] %v189
    %222 = vst [vmem:[#allocation2 + $0xb8] sm:$0xff] %v190
    %223 = vst [vmem:[#allocation2 + $0xc0] sm:$0xff] %v191
    %224 = vst [vmem:[#allocation2 + $0xc8] sm:$0xff] %v192
    %225 = vst [vmem:[#allocation2 + $0xd0] sm:$0xff] %v193
    %226 = vst [vmem:[#allocation2 + $0xd8] sm:$0xff] %v194
    %227 = vst [vmem:[#allocation2 + $0xe0] sm:$0xff] %v195
    %228 = vst [vmem:[#allocation2 + $0xe8] sm:$0xff] %v196
    %229 = vst [vmem:[#allocation2 + $0xf0] sm:$0xff] %v197
    %230 = vst [vmem:[#allocation2 + $0xf8] sm:$0xff] %v198
    %v231 = vld [vmem:[#allocation3] sm:$0xff]
    %v232 = vld [vmem:[#allocation3 + $0x8] sm:$0xff]
    %v233 = vld [vmem:[#allocation3 + $0x10] sm:$0xff]
    %v234 = vld [vmem:[#allocation3 + $0x18] sm:$0xff]
    %v235 = vld [vmem:[#allocation3 + $0x20] sm:$0xff]
    %v236 = vld [vmem:[#allocation3 + $0x28] sm:$0xff]
    %v237 = vld [vmem:[#allocation3 + $0x30] sm:$0xff]
    %v238 = vld [vmem:[#allocation3 + $0x38] sm:$0xff]
    %v239 = vld [vmem:[#allocation3 + $0x40] sm:$0xff]
    %v240 = vld [vmem:[#allocation3 + $0x48] sm:$0xff]
    %v241 = vld [vmem:[#allocation3 + $0x50] sm:$0xff]
    %v242 = vld [vmem:[#allocation3 + $0x58] sm:$0xff]
    %v243 = vld [vmem:[#allocation3 + $0x60] sm:$0xff]
    %v244 = vld [vmem:[#allocation3 + $0x68] sm:$0xff]
    %v245 = vld [vmem:[#allocation3 + $0x70] sm:$0xff]
    %v246 = vld [vmem:[#allocation3 + $0x78] sm:$0xff]
    %v247 = vld [vmem:[#allocation3 + $0x80] sm:$0xff]
    %v248 = vld [vmem:[#allocation3 + $0x88] sm:$0xff]
    %v249 = vld [vmem:[#allocation3 + $0x90] sm:$0xff]
    %v250 = vld [vmem:[#allocation3 + $0x98] sm:$0xff]
    %v251 = vld [vmem:[#allocation3 + $0xa0] sm:$0xff]
    %v252 = vld [vmem:[#allocation3 + $0xa8] sm:$0xff]
    %v253 = vld [vmem:[#allocation3 + $0xb0] sm:$0xff]
    %v254 = vld [vmem:[#allocation3 + $0xb8] sm:$0xff]
    %v255 = vld [vmem:[#allocation3 + $0xc0] sm:$0xff]
    %v256 = vld [vmem:[#allocation3 + $0xc8] sm:$0xff]
    %v257 = vld [vmem:[#allocation3 + $0xd0] sm:$0xff]
    %v258 = vld [vmem:[#allocation3 + $0xd8] sm:$0xff]
    %v259 = vld [vmem:[#allocation3 + $0xe0] sm:$0xff]
    %v260 = vld [vmem:[#allocation3 + $0xe8] sm:$0xff]
    %v261 = vld [vmem:[#allocation3 + $0xf0] sm:$0xff]
    %v262 = vld [vmem:[#allocation3 + $0xf8] sm:$0xff]
    %v263 = vmax.f32 %v231, %v103
    %v264 = vmax.f32 %v232, %v104
    %v265 = vmax.f32 %v233, %v105
    %v266 = vmax.f32 %v234, %v106
    %v267 = vmax.f32 %v235, %v107
    %v268 = vmax.f32 %v236, %v108
    %v269 = vmax.f32 %v237, %v109
    %v270 = vmax.f32 %v238, %v110
    %v271 = vmax.f32 %v239, %v111
    %v272 = vmax.f32 %v240, %v112
    %v273 = vmax.f32 %v241, %v113
    %v274 = vmax.f32 %v242, %v114
    %v275 = vmax.f32 %v243, %v115
    %v276 = vmax.f32 %v244, %v116
    %v277 = vmax.f32 %v245, %v117
    %v278 = vmax.f32 %v246, %v118
    %v279 = vmax.f32 %v247, %v119
    %v280 = vmax.f32 %v248, %v120
    %v281 = vmax.f32 %v249, %v121
    %v282 = vmax.f32 %v250, %v122
    %v283 = vmax.f32 %v251, %v123
    %v284 = vmax.f32 %v252, %v124
    %v285 = vmax.f32 %v253, %v125
    %v286 = vmax.f32 %v254, %v126
    %v287 = vmax.f32 %v255, %v127
    %v288 = vmax.f32 %v256, %v128
    %v289 = vmax.f32 %v257, %v129
    %v290 = vmax.f32 %v258, %v130
    %v291 = vmax.f32 %v259, %v131
    %v292 = vmax.f32 %v260, %v132
    %v293 = vmax.f32 %v261, %v133
    %v294 = vmax.f32 %v262, %v134
    %295 = vst [vmem:[#allocation3] sm:$0xff] %v263
    %296 = vst [vmem:[#allocation3 + $0x8] sm:$0xff] %v264
    %297 = vst [vmem:[#allocation3 + $0x10] sm:$0xff] %v265
    %298 = vst [vmem:[#allocation3 + $0x18] sm:$0xff] %v266
    %299 = vst [vmem:[#allocation3 + $0x20] sm:$0xff] %v267
    %300 = vst [vmem:[#allocation3 + $0x28] sm:$0xff] %v268
    %301 = vst [vmem:[#allocation3 + $0x30] sm:$0xff] %v269
    %302 = vst [vmem:[#allocation3 + $0x38] sm:$0xff] %v270
    %303 = vst [vmem:[#allocation3 + $0x40] sm:$0xff] %v271
    %304 = vst [vmem:[#allocation3 + $0x48] sm:$0xff] %v272
    %305 = vst [vmem:[#allocation3 + $0x50] sm:$0xff] %v273
    %306 = vst [vmem:[#allocation3 + $0x58] sm:$0xff] %v274
    %307 = vst [vmem:[#allocation3 + $0x60] sm:$0xff] %v275
    %308 = vst [vmem:[#allocation3 + $0x68] sm:$0xff] %v276
    %309 = vst [vmem:[#allocation3 + $0x70] sm:$0xff] %v277
    %310 = vst [vmem:[#allocation3 + $0x78] sm:$0xff] %v278
    %311 = vst [vmem:[#allocation3 + $0x80] sm:$0xff] %v279
    %312 = vst [vmem:[#allocation3 + $0x88] sm:$0xff] %v280
    %313 = vst [vmem:[#allocation3 + $0x90] sm:$0xff] %v281
    %314 = vst [vmem:[#allocation3 + $0x98] sm:$0xff] %v282
    %315 = vst [vmem:[#allocation3 + $0xa0] sm:$0xff] %v283
    %316 = vst [vmem:[#allocation3 + $0xa8] sm:$0xff] %v284
    %317 = vst [vmem:[#allocation3 + $0xb0] sm:$0xff] %v285
    %318 = vst [vmem:[#allocation3 + $0xb8] sm:$0xff] %v286
    %319 = vst [vmem:[#allocation3 + $0xc0] sm:$0xff] %v287
    %320 = vst [vmem:[#allocation3 + $0xc8] sm:$0xff] %v288
    %321 = vst [vmem:[#allocation3 + $0xd0] sm:$0xff] %v289
    %322 = vst [vmem:[#allocation3 + $0xd8] sm:$0xff] %v290
    %323 = vst [vmem:[#allocation3 + $0xe0] sm:$0xff] %v291
    %324 = vst [vmem:[#allocation3 + $0xe8] sm:$0xff] %v292
    %325 = vst [vmem:[#allocation3 + $0xf0] sm:$0xff] %v293
    %326 = vst [vmem:[#allocation3 + $0xf8] sm:$0xff] %v294
    %v327 = vld [vmem:[#allocation4 + $0x8] sm:$0xff]
    %v328 = vld [vmem:[#allocation4 + $0x48] sm:$0xff]
    %v329 = vld [vmem:[#allocation4 + $0x88] sm:$0xff]
    %v330 = vld [vmem:[#allocation4 + $0xc8] sm:$0xff]
    %v331 = vld [vmem:[#allocation4 + $0x108] sm:$0xff]
    %v332 = vld [vmem:[#allocation4 + $0x148] sm:$0xff]
    %v333 = vld [vmem:[#allocation4 + $0x188] sm:$0xff]
    %v334 = vld [vmem:[#allocation4 + $0x1c8] sm:$0xff]
    %v335 = vld [vmem:[#allocation4 + $0x208] sm:$0xff]
    %v336 = vld [vmem:[#allocation4 + $0x248] sm:$0xff]
    %v337 = vld [vmem:[#allocation4 + $0x288] sm:$0xff]
    %v338 = vld [vmem:[#allocation4 + $0x2c8] sm:$0xff]
    %v339 = vld [vmem:[#allocation4 + $0x308] sm:$0xff]
    %v340 = vld [vmem:[#allocation4 + $0x348] sm:$0xff]
    %v341 = vld [vmem:[#allocation4 + $0x388] sm:$0xff]
    %v342 = vld [vmem:[#allocation4 + $0x3c8] sm:$0xff]
    %v343 = vld [vmem:[#allocation4 + $0x408] sm:$0xff]
    %v344 = vld [vmem:[#allocation4 + $0x448] sm:$0xff]
    %v345 = vld [vmem:[#allocation4 + $0x488] sm:$0xff]
    %v346 = vld [vmem:[#allocation4 + $0x4c8] sm:$0xff]
    %v347 = vld [vmem:[#allocation4 + $0x508] sm:$0xff]
    %v348 = vld [vmem:[#allocation4 + $0x548] sm:$0xff]
    %v349 = vld [vmem:[#allocation4 + $0x588] sm:$0xff]
    %v350 = vld [vmem:[#allocation4 + $0x5c8] sm:$0xff]
    %v351 = vld [vmem:[#allocation4 + $0x608] sm:$0xff]
    %v352 = vld [vmem:[#allocation4 + $0x648] sm:$0xff]
    %v353 = vld [vmem:[#allocation4 + $0x688] sm:$0xff]
    %v354 = vld [vmem:[#allocation4 + $0x6c8] sm:$0xff]
    %v355 = vld [vmem:[#allocation4 + $0x708] sm:$0xff]
    %v356 = vld [vmem:[#allocation4 + $0x748] sm:$0xff]
    %v357 = vld [vmem:[#allocation4 + $0x788] sm:$0xff]
    %v358 = vld [vmem:[#allocation4 + $0x7c8] sm:$0xff]
    %v359 = vld [vmem:[#allocation2] sm:$0xff]
    %v360 = vld [vmem:[#allocation2 + $0x8] sm:$0xff]
    %v361 = vld [vmem:[#allocation2 + $0x10] sm:$0xff]
    %v362 = vld [vmem:[#allocation2 + $0x18] sm:$0xff]
    %v363 = vld [vmem:[#allocation2 + $0x20] sm:$0xff]
    %v364 = vld [vmem:[#allocation2 + $0x28] sm:$0xff]
    %v365 = vld [vmem:[#allocation2 + $0x30] sm:$0xff]
    %v366 = vld [vmem:[#allocation2 + $0x38] sm:$0xff]
    %v367 = vld [vmem:[#allocation2 + $0x40] sm:$0xff]
    %v368 = vld [vmem:[#allocation2 + $0x48] sm:$0xff]
    %v369 = vld [vmem:[#allocation2 + $0x50] sm:$0xff]
    %v370 = vld [vmem:[#allocation2 + $0x58] sm:$0xff]
    %v371 = vld [vmem:[#allocation2 + $0x60] sm:$0xff]
    %v372 = vld [vmem:[#allocation2 + $0x68] sm:$0xff]
    %v373 = vld [vmem:[#allocation2 + $0x70] sm:$0xff]
    %v374 = vld [vmem:[#allocation2 + $0x78] sm:$0xff]
    %v375 = vld [vmem:[#allocation2 + $0x80] sm:$0xff]
    %v376 = vld [vmem:[#allocation2 + $0x88] sm:$0xff]
    %v377 = vld [vmem:[#allocation2 + $0x90] sm:$0xff]
    %v378 = vld [vmem:[#allocation2 + $0x98] sm:$0xff]
    %v379 = vld [vmem:[#allocation2 + $0xa0] sm:$0xff]
    %v380 = vld [vmem:[#allocation2 + $0xa8] sm:$0xff]
    %v381 = vld [vmem:[#allocation2 + $0xb0] sm:$0xff]
    %v382 = vld [vmem:[#allocation2 + $0xb8] sm:$0xff]
    %v383 = vld [vmem:[#allocation2 + $0xc0] sm:$0xff]
    %v384 = vld [vmem:[#allocation2 + $0xc8] sm:$0xff]
    %v385 = vld [vmem:[#allocation2 + $0xd0] sm:$0xff]
    %v386 = vld [vmem:[#allocation2 + $0xd8] sm:$0xff]
    %v387 = vld [vmem:[#allocation2 + $0xe0] sm:$0xff]
    %v388 = vld [vmem:[#allocation2 + $0xe8] sm:$0xff]
    %v389 = vld [vmem:[#allocation2 + $0xf0] sm:$0xff]
    %v390 = vld [vmem:[#allocation2 + $0xf8] sm:$0xff]
    %v391 = vadd.f32 %v359, %v327
    %v392 = vadd.f32 %v360, %v328
    %v393 = vadd.f32 %v361, %v329
    %v394 = vadd.f32 %v362, %v330
    %v395 = vadd.f32 %v363, %v331
    %v396 = vadd.f32 %v364, %v332
    %v397 = vadd.f32 %v365, %v333
    %v398 = vadd.f32 %v366, %v334
    %v399 = vadd.f32 %v367, %v335
    %v400 = vadd.f32 %v368, %v336
    %v401 = vadd.f32 %v369, %v337
    %v402 = vadd.f32 %v370, %v338
    %v403 = vadd.f32 %v371, %v339
    %v404 = vadd.f32 %v372, %v340
    %v405 = vadd.f32 %v373, %v341
    %v406 = vadd.f32 %v374, %v342
    %v407 = vadd.f32 %v375, %v343
    %v408 = vadd.f32 %v376, %v344
    %v409 = vadd.f32 %v377, %v345
    %v410 = vadd.f32 %v378, %v346
    %v411 = vadd.f32 %v379, %v347
    %v412 = vadd.f32 %v380, %v348
    %v413 = vadd.f32 %v381, %v349
    %v414 = vadd.f32 %v382, %v350
    %v415 = vadd.f32 %v383, %v351
    %v416 = vadd.f32 %v384, %v352
    %v417 = vadd.f32 %v385, %v353
    %v418 = vadd.f32 %v386, %v354
    %v419 = vadd.f32 %v387, %v355
    %v420 = vadd.f32 %v388, %v356
    %v421 = vadd.f32 %v389, %v357
    %v422 = vadd.f32 %v390, %v358
    %423 = vst [vmem:[#allocation2] sm:$0xff] %v391
    %424 = vst [vmem:[#allocation2 + $0x8] sm:$0xff] %v392
    %425 = vst [vmem:[#allocation2 + $0x10] sm:$0xff] %v393
    %426 = vst [vmem:[#allocation2 + $0x18] sm:$0xff] %v394
    %427 = vst [vmem:[#allocation2 + $0x20] sm:$0xff] %v395
    %428 = vst [vmem:[#allocation2 + $0x28] sm:$0xff] %v396
    %429 = vst [vmem:[#allocation2 + $0x30] sm:$0xff] %v397
    %430 = vst [vmem:[#allocation2 + $0x38] sm:$0xff] %v398
    %431 = vst [vmem:[#allocation2 + $0x40] sm:$0xff] %v399
    %432 = vst [vmem:[#allocation2 + $0x48] sm:$0xff] %v400
    %433 = vst [vmem:[#allocation2 + $0x50] sm:$0xff] %v401
    %434 = vst [vmem:[#allocation2 + $0x58] sm:$0xff] %v402
    %435 = vst [vmem:[#allocation2 + $0x60] sm:$0xff] %v403
    %436 = vst [vmem:[#allocation2 + $0x68] sm:$0xff] %v404
    %437 = vst [vmem:[#allocation2 + $0x70] sm:$0xff] %v405
    %438 = vst [vmem:[#allocation2 + $0x78] sm:$0xff] %v406
    %439 = vst [vmem:[#allocation2 + $0x80] sm:$0xff] %v407
    %440 = vst [vmem:[#allocation2 + $0x88] sm:$0xff] %v408
    %441 = vst [vmem:[#allocation2 + $0x90] sm:$0xff] %v409
    %442 = vst [vmem:[#allocation2 + $0x98] sm:$0xff] %v410
    %443 = vst [vmem:[#allocation2 + $0xa0] sm:$0xff] %v411
    %444 = vst [vmem:[#allocation2 + $0xa8] sm:$0xff] %v412
    %445 = vst [vmem:[#allocation2 + $0xb0] sm:$0xff] %v413
    %446 = vst [vmem:[#allocation2 + $0xb8] sm:$0xff] %v414
    %447 = vst [vmem:[#allocation2 + $0xc0] sm:$0xff] %v415
    %448 = vst [vmem:[#allocation2 + $0xc8] sm:$0xff] %v416
    %449 = vst [vmem:[#allocation2 + $0xd0] sm:$0xff] %v417
    %450 = vst [vmem:[#allocation2 + $0xd8] sm:$0xff] %v418
    %451 = vst [vmem:[#allocation2 + $0xe0] sm:$0xff] %v419
    %452 = vst [vmem:[#allocation2 + $0xe8] sm:$0xff] %v420
    %453 = vst [vmem:[#allocation2 + $0xf0] sm:$0xff] %v421
    %454 = vst [vmem:[#allocation2 + $0xf8] sm:$0xff] %v422
    %v455 = vld [vmem:[#allocation3] sm:$0xff]
    %v456 = vld [vmem:[#allocation3 + $0x8] sm:$0xff]
    %v457 = vld [vmem:[#allocation3 + $0x10] sm:$0xff]
    %v458 = vld [vmem:[#allocation3 + $0x18] sm:$0xff]
    %v459 = vld [vmem:[#allocation3 + $0x20] sm:$0xff]
    %v460 = vld [vmem:[#allocation3 + $0x28] sm:$0xff]
    %v461 = vld [vmem:[#allocation3 + $0x30] sm:$0xff]
    %v462 = vld [vmem:[#allocation3 + $0x38] sm:$0xff]
    %v463 = vld [vmem:[#allocation3 + $0x40] sm:$0xff]
    %v464 = vld [vmem:[#allocation3 + $0x48] sm:$0xff]
    %v465 = vld [vmem:[#allocation3 + $0x50] sm:$0xff]
    %v466 = vld [vmem:[#allocation3 + $0x58] sm:$0xff]
    %v467 = vld [vmem:[#allocation3 + $0x60] sm:$0xff]
    %v468 = vld [vmem:[#allocation3 + $0x68] sm:$0xff]
    %v469 = vld [vmem:[#allocation3 + $0x70] sm:$0xff]
    %v470 = vld [vmem:[#allocation3 + $0x78] sm:$0xff]
    %v471 = vld [vmem:[#allocation3 + $0x80] sm:$0xff]
    %v472 = vld [vmem:[#allocation3 + $0x88] sm:$0xff]
    %v473 = vld [vmem:[#allocation3 + $0x90] sm:$0xff]
    %v474 = vld [vmem:[#allocation3 + $0x98] sm:$0xff]
    %v475 = vld [vmem:[#allocation3 + $0xa0] sm:$0xff]
    %v476 = vld [vmem:[#allocation3 + $0xa8] sm:$0xff]
    %v477 = vld [vmem:[#allocation3 + $0xb0] sm:$0xff]
    %v478 = vld [vmem:[#allocation3 + $0xb8] sm:$0xff]
    %v479 = vld [vmem:[#allocation3 + $0xc0] sm:$0xff]
    %v480 = vld [vmem:[#allocation3 + $0xc8] sm:$0xff]
    %v481 = vld [vmem:[#allocation3 + $0xd0] sm:$0xff]
    %v482 = vld [vmem:[#allocation3 + $0xd8] sm:$0xff]
    %v483 = vld [vmem:[#allocation3 + $0xe0] sm:$0xff]
    %v484 = vld [vmem:[#allocation3 + $0xe8] sm:$0xff]
    %v485 = vld [vmem:[#allocation3 + $0xf0] sm:$0xff]
    %v486 = vld [vmem:[#allocation3 + $0xf8] sm:$0xff]
    %v487 = vmax.f32 %v455, %v327
    %v488 = vmax.f32 %v456, %v328
    %v489 = vmax.f32 %v457, %v329
    %v490 = vmax.f32 %v458, %v330
    %v491 = vmax.f32 %v459, %v331
    %v492 = vmax.f32 %v460, %v332
    %v493 = vmax.f32 %v461, %v333
    %v494 = vmax.f32 %v462, %v334
    %v495 = vmax.f32 %v463, %v335
    %v496 = vmax.f32 %v464, %v336
    %v497 = vmax.f32 %v465, %v337
    %v498 = vmax.f32 %v466, %v338
    %v499 = vmax.f32 %v467, %v339
    %v500 = vmax.f32 %v468, %v340
    %v501 = vmax.f32 %v469, %v341
    %v502 = vmax.f32 %v470, %v342
    %v503 = vmax.f32 %v471, %v343
    %v504 = vmax.f32 %v472, %v344
    %v505 = vmax.f32 %v473, %v345
    %v506 = vmax.f32 %v474, %v346
    %v507 = vmax.f32 %v475, %v347
    %v508 = vmax.f32 %v476, %v348
    %v509 = vmax.f32 %v477, %v349
    %v510 = vmax.f32 %v478, %v350
    %v511 = vmax.f32 %v479, %v351
    %v512 = vmax.f32 %v480, %v352
    %v513 = vmax.f32 %v481, %v353
    %v514 = vmax.f32 %v482, %v354
    %v515 = vmax.f32 %v483, %v355
    %v516 = vmax.f32 %v484, %v356
    %v517 = vmax.f32 %v485, %v357
    %v518 = vmax.f32 %v486, %v358
    %519 = vst [vmem:[#allocation3] sm:$0xff] %v487
    %520 = vst [vmem:[#allocation3 + $0x8] sm:$0xff] %v488
    %521 = vst [vmem:[#allocation3 + $0x10] sm:$0xff] %v489
    %522 = vst [vmem:[#allocation3 + $0x18] sm:$0xff] %v490
    %523 = vst [vmem:[#allocation3 + $0x20] sm:$0xff] %v491
    %524 = vst [vmem:[#allocation3 + $0x28] sm:$0xff] %v492
    %525 = vst [vmem:[#allocation3 + $0x30] sm:$0xff] %v493
    %526 = vst [vmem:[#allocation3 + $0x38] sm:$0xff] %v494
    %527 = vst [vmem:[#allocation3 + $0x40] sm:$0xff] %v495
    %528 = vst [vmem:[#allocation3 + $0x48] sm:$0xff] %v496
    %529 = vst [vmem:[#allocation3 + $0x50] sm:$0xff] %v497
    %530 = vst [vmem:[#allocation3 + $0x58] sm:$0xff] %v498
    %531 = vst [vmem:[#allocation3 + $0x60] sm:$0xff] %v499
    %532 = vst [vmem:[#allocation3 + $0x68] sm:$0xff] %v500
    %533 = vst [vmem:[#allocation3 + $0x70] sm:$0xff] %v501
    %534 = vst [vmem:[#allocation3 + $0x78] sm:$0xff] %v502
    %535 = vst [vmem:[#allocation3 + $0x80] sm:$0xff] %v503
    %536 = vst [vmem:[#allocation3 + $0x88] sm:$0xff] %v504
    %537 = vst [vmem:[#allocation3 + $0x90] sm:$0xff] %v505
    %538 = vst [vmem:[#allocation3 + $0x98] sm:$0xff] %v506
    %539 = vst [vmem:[#allocation3 + $0xa0] sm:$0xff] %v507
    %540 = vst [vmem:[#allocation3 + $0xa8] sm:$0xff] %v508
    %541 = vst [vmem:[#allocation3 + $0xb0] sm:$0xff] %v509
    %542 = vst [vmem:[#allocation3 + $0xb8] sm:$0xff] %v510
    %543 = vst [vmem:[#allocation3 + $0xc0] sm:$0xff] %v511
    %544 = vst [vmem:[#allocation3 + $0xc8] sm:$0xff] %v512
    %545 = vst [vmem:[#allocation3 + $0xd0] sm:$0xff] %v513
    %546 = vst [vmem:[#allocation3 + $0xd8] sm:$0xff] %v514
    %547 = vst [vmem:[#allocation3 + $0xe0] sm:$0xff] %v515
    %548 = vst [vmem:[#allocation3 + $0xe8] sm:$0xff] %v516
    %549 = vst [vmem:[#allocation3 + $0xf0] sm:$0xff] %v517
    %550 = vst [vmem:[#allocation3 + $0xf8] sm:$0xff] %v518
    %v551 = vld [vmem:[#allocation4 + $0x10] sm:$0xff]
    %v552 = vld [vmem:[#allocation4 + $0x50] sm:$0xff]
    %v553 = vld [vmem:[#allocation4 + $0x90] sm:$0xff]
    %v554 = vld [vmem:[#allocation4 + $0xd0] sm:$0xff]
    %v555 = vld [vmem:[#allocation4 + $0x110] sm:$0xff]
    %v556 = vld [vmem:[#allocation4 + $0x150] sm:$0xff]
    %v557 = vld [vmem:[#allocation4 + $0x190] sm:$0xff]
    %v558 = vld [vmem:[#allocation4 + $0x1d0] sm:$0xff]
    %v559 = vld [vmem:[#allocation4 + $0x210] sm:$0xff]
    %v560 = vld [vmem:[#allocation4 + $0x250] sm:$0xff]
    %v561 = vld [vmem:[#allocation4 + $0x290] sm:$0xff]
    %v562 = vld [vmem:[#allocation4 + $0x2d0] sm:$0xff]
    %v563 = vld [vmem:[#allocation4 + $0x310] sm:$0xff]
    %v564 = vld [vmem:[#allocation4 + $0x350] sm:$0xff]
    %v565 = vld [vmem:[#allocation4 + $0x390] sm:$0xff]
    %v566 = vld [vmem:[#allocation4 + $0x3d0] sm:$0xff]
    %v567 = vld [vmem:[#allocation4 + $0x410] sm:$0xff]
    %v568 = vld [vmem:[#allocation4 + $0x450] sm:$0xff]
    %v569 = vld [vmem:[#allocation4 + $0x490] sm:$0xff]
    %v570 = vld [vmem:[#allocation4 + $0x4d0] sm:$0xff]
    %v571 = vld [vmem:[#allocation4 + $0x510] sm:$0xff]
    %v572 = vld [vmem:[#allocation4 + $0x550] sm:$0xff]
    %v573 = vld [vmem:[#allocation4 + $0x590] sm:$0xff]
    %v574 = vld [vmem:[#allocation4 + $0x5d0] sm:$0xff]
    %v575 = vld [vmem:[#allocation4 + $0x610] sm:$0xff]
    %v576 = vld [vmem:[#allocation4 + $0x650] sm:$0xff]
    %v577 = vld [vmem:[#allocation4 + $0x690] sm:$0xff]
    %v578 = vld [vmem:[#allocation4 + $0x6d0] sm:$0xff]
    %v579 = vld [vmem:[#allocation4 + $0x710] sm:$0xff]
    %v580 = vld [vmem:[#allocation4 + $0x750] sm:$0xff]
    %v581 = vld [vmem:[#allocation4 + $0x790] sm:$0xff]
    %v582 = vld [vmem:[#allocation4 + $0x7d0] sm:$0xff]
    %v583 = vld [vmem:[#allocation2] sm:$0xff]
    %v584 = vld [vmem:[#allocation2 + $0x8] sm:$0xff]
    %v585 = vld [vmem:[#allocation2 + $0x10] sm:$0xff]
    %v586 = vld [vmem:[#allocation2 + $0x18] sm:$0xff]
    %v587 = vld [vmem:[#allocation2 + $0x20] sm:$0xff]
    %v588 = vld [vmem:[#allocation2 + $0x28] sm:$0xff]
    %v589 = vld [vmem:[#allocation2 + $0x30] sm:$0xff]
    %v590 = vld [vmem:[#allocation2 + $0x38] sm:$0xff]
    %v591 = vld [vmem:[#allocation2 + $0x40] sm:$0xff]
    %v592 = vld [vmem:[#allocation2 + $0x48] sm:$0xff]
    %v593 = vld [vmem:[#allocation2 + $0x50] sm:$0xff]
    %v594 = vld [vmem:[#allocation2 + $0x58] sm:$0xff]
    %v595 = vld [vmem:[#allocation2 + $0x60] sm:$0xff]
    %v596 = vld [vmem:[#allocation2 + $0x68] sm:$0xff]
    %v597 = vld [vmem:[#allocation2 + $0x70] sm:$0xff]
    %v598 = vld [vmem:[#allocation2 + $0x78] sm:$0xff]
    %v599 = vld [vmem:[#allocation2 + $0x80] sm:$0xff]
    %v600 = vld [vmem:[#allocation2 + $0x88] sm:$0xff]
    %v601 = vld [vmem:[#allocation2 + $0x90] sm:$0xff]
    %v602 = vld [vmem:[#allocation2 + $0x98] sm:$0xff]
    %v603 = vld [vmem:[#allocation2 + $0xa0] sm:$0xff]
    %v604 = vld [vmem:[#allocation2 + $0xa8] sm:$0xff]
    %v605 = vld [vmem:[#allocation2 + $0xb0] sm:$0xff]
    %v606 = vld [vmem:[#allocation2 + $0xb8] sm:$0xff]
    %v607 = vld [vmem:[#allocation2 + $0xc0] sm:$0xff]
    %v608 = vld [vmem:[#allocation2 + $0xc8] sm:$0xff]
    %v609 = vld [vmem:[#allocation2 + $0xd0] sm:$0xff]
    %v610 = vld [vmem:[#allocation2 + $0xd8] sm:$0xff]
    %v611 = vld [vmem:[#allocation2 + $0xe0] sm:$0xff]
    %v612 = vld [vmem:[#allocation2 + $0xe8] sm:$0xff]
    %v613 = vld [vmem:[#allocation2 + $0xf0] sm:$0xff]
    %v614 = vld [vmem:[#allocation2 + $0xf8] sm:$0xff]
    %v615 = vadd.f32 %v583, %v551
    %v616 = vadd.f32 %v584, %v552
    %v617 = vadd.f32 %v585, %v553
    %v618 = vadd.f32 %v586, %v554
    %v619 = vadd.f32 %v587, %v555
    %v620 = vadd.f32 %v588, %v556
    %v621 = vadd.f32 %v589, %v557
    %v622 = vadd.f32 %v590, %v558
    %v623 = vadd.f32 %v591, %v559
    %v624 = vadd.f32 %v592, %v560
    %v625 = vadd.f32 %v593, %v561
    %v626 = vadd.f32 %v594, %v562
    %v627 = vadd.f32 %v595, %v563
    %v628 = vadd.f32 %v596, %v564
    %v629 = vadd.f32 %v597, %v565
    %v630 = vadd.f32 %v598, %v566
    %v631 = vadd.f32 %v599, %v567
    %v632 = vadd.f32 %v600, %v568
    %v633 = vadd.f32 %v601, %v569
    %v634 = vadd.f32 %v602, %v570
    %v635 = vadd.f32 %v603, %v571
    %v636 = vadd.f32 %v604, %v572
    %v637 = vadd.f32 %v605, %v573
    %v638 = vadd.f32 %v606, %v574
    %v639 = vadd.f32 %v607, %v575
    %v640 = vadd.f32 %v608, %v576
    %v641 = vadd.f32 %v609, %v577
    %v642 = vadd.f32 %v610, %v578
    %v643 = vadd.f32 %v611, %v579
    %v644 = vadd.f32 %v612, %v580
    %v645 = vadd.f32 %v613, %v581
    %v646 = vadd.f32 %v614, %v582
    %647 = vst [vmem:[#allocation2] sm:$0xff] %v615
    %648 = vst [vmem:[#allocation2 + $0x8] sm:$0xff] %v616
    %649 = vst [vmem:[#allocation2 + $0x10] sm:$0xff] %v617
    %650 = vst [vmem:[#allocation2 + $0x18] sm:$0xff] %v618
    %651 = vst [vmem:[#allocation2 + $0x20] sm:$0xff] %v619
    %652 = vst [vmem:[#allocation2 + $0x28] sm:$0xff] %v620
    %653 = vst [vmem:[#allocation2 + $0x30] sm:$0xff] %v621
    %654 = vst [vmem:[#allocation2 + $0x38] sm:$0xff] %v622
    %655 = vst [vmem:[#allocation2 + $0x40] sm:$0xff] %v623
    %656 = vst [vmem:[#allocation2 + $0x48] sm:$0xff] %v624
    %657 = vst [vmem:[#allocation2 + $0x50] sm:$0xff] %v625
    %658 = vst [vmem:[#allocation2 + $0x58] sm:$0xff] %v626
    %659 = vst [vmem:[#allocation2 + $0x60] sm:$0xff] %v627
    %660 = vst [vmem:[#allocation2 + $0x68] sm:$0xff] %v628
    %661 = vst [vmem:[#allocation2 + $0x70] sm:$0xff] %v629
    %662 = vst [vmem:[#allocation2 + $0x78] sm:$0xff] %v630
    %663 = vst [vmem:[#allocation2 + $0x80] sm:$0xff] %v631
    %664 = vst [vmem:[#allocation2 + $0x88] sm:$0xff] %v632
    %665 = vst [vmem:[#allocation2 + $0x90] sm:$0xff] %v633
    %666 = vst [vmem:[#allocation2 + $0x98] sm:$0xff] %v634
    %667 = vst [vmem:[#allocation2 + $0xa0] sm:$0xff] %v635
    %668 = vst [vmem:[#allocation2 + $0xa8] sm:$0xff] %v636
    %669 = vst [vmem:[#allocation2 + $0xb0] sm:$0xff] %v637
    %670 = vst [vmem:[#allocation2 + $0xb8] sm:$0xff] %v638
    %671 = vst [vmem:[#allocation2 + $0xc0] sm:$0xff] %v639
    %672 = vst [vmem:[#allocation2 + $0xc8] sm:$0xff] %v640
    %673 = vst [vmem:[#allocation2 + $0xd0] sm:$0xff] %v641
    %674 = vst [vmem:[#allocation2 + $0xd8] sm:$0xff] %v642
    %675 = vst [vmem:[#allocation2 + $0xe0] sm:$0xff] %v643
    %676 = vst [vmem:[#allocation2 + $0xe8] sm:$0xff] %v644
    %677 = vst [vmem:[#allocation2 + $0xf0] sm:$0xff] %v645
    %678 = vst [vmem:[#allocation2 + $0xf8] sm:$0xff] %v646
    %v679 = vld [vmem:[#allocation3] sm:$0xff]
    %v680 = vld [vmem:[#allocation3 + $0x8] sm:$0xff]
    %v681 = vld [vmem:[#allocation3 + $0x10] sm:$0xff]
    %v682 = vld [vmem:[#allocation3 + $0x18] sm:$0xff]
    %v683 = vld [vmem:[#allocation3 + $0x20] sm:$0xff]
    %v684 = vld [vmem:[#allocation3 + $0x28] sm:$0xff]
    %v685 = vld [vmem:[#allocation3 + $0x30] sm:$0xff]
    %v686 = vld [vmem:[#allocation3 + $0x38] sm:$0xff]
    %v687 = vld [vmem:[#allocation3 + $0x40] sm:$0xff]
    %v688 = vld [vmem:[#allocation3 + $0x48] sm:$0xff]
    %v689 = vld [vmem:[#allocation3 + $0x50] sm:$0xff]
    %v690 = vld [vmem:[#allocation3 + $0x58] sm:$0xff]
    %v691 = vld [vmem:[#allocation3 + $0x60] sm:$0xff]
    %v692 = vld [vmem:[#allocation3 + $0x68] sm:$0xff]
    %v693 = vld [vmem:[#allocation3 + $0x70] sm:$0xff]
    %v694 = vld [vmem:[#allocation3 + $0x78] sm:$0xff]
    %v695 = vld [vmem:[#allocation3 + $0x80] sm:$0xff]
    %v696 = vld [vmem:[#allocation3 + $0x88] sm:$0xff]
    %v697 = vld [vmem:[#allocation3 + $0x90] sm:$0xff]
    %v698 = vld [vmem:[#allocation3 + $0x98] sm:$0xff]
    %v699 = vld [vmem:[#allocation3 + $0xa0] sm:$0xff]
    %v700 = vld [vmem:[#allocation3 + $0xa8] sm:$0xff]
    %v701 = vld [vmem:[#allocation3 + $0xb0] sm:$0xff]
    %v702 = vld [vmem:[#allocation3 + $0xb8] sm:$0xff]
    %v703 = vld [vmem:[#allocation3 + $0xc0] sm:$0xff]
    %v704 = vld [vmem:[#allocation3 + $0xc8] sm:$0xff]
    %v705 = vld [vmem:[#allocation3 + $0xd0] sm:$0xff]
    %v706 = vld [vmem:[#allocation3 + $0xd8] sm:$0xff]
    %v707 = vld [vmem:[#allocation3 + $0xe0] sm:$0xff]
    %v708 = vld [vmem:[#allocation3 + $0xe8] sm:$0xff]
    %v709 = vld [vmem:[#allocation3 + $0xf0] sm:$0xff]
    %v710 = vld [vmem:[#allocation3 + $0xf8] sm:$0xff]
    %v711 = vmax.f32 %v679, %v551
    %v712 = vmax.f32 %v680, %v552
    %v713 = vmax.f32 %v681, %v553
    %v714 = vmax.f32 %v682, %v554
    %v715 = vmax.f32 %v683, %v555
    %v716 = vmax.f32 %v684, %v556
    %v717 = vmax.f32 %v685, %v557
    %v718 = vmax.f32 %v686, %v558
    %v719 = vmax.f32 %v687, %v559
    %v720 = vmax.f32 %v688, %v560
    %v721 = vmax.f32 %v689, %v561
    %v722 = vmax.f32 %v690, %v562
    %v723 = vmax.f32 %v691, %v563
    %v724 = vmax.f32 %v692, %v564
    %v725 = vmax.f32 %v693, %v565
    %v726 = vmax.f32 %v694, %v566
    %v727 = vmax.f32 %v695, %v567
    %v728 = vmax.f32 %v696, %v568
    %v729 = vmax.f32 %v697, %v569
    %v730 = vmax.f32 %v698, %v570
    %v731 = vmax.f32 %v699, %v571
    %v732 = vmax.f32 %v700, %v572
    %v733 = vmax.f32 %v701, %v573
    %v734 = vmax.f32 %v702, %v574
    %v735 = vmax.f32 %v703, %v575
    %v736 = vmax.f32 %v704, %v576
    %v737 = vmax.f32 %v705, %v577
    %v738 = vmax.f32 %v706, %v578
    %v739 = vmax.f32 %v707, %v579
    %v740 = vmax.f32 %v708, %v580
    %v741 = vmax.f32 %v709, %v581
    %v742 = vmax.f32 %v710, %v582
    %743 = vst [vmem:[#allocation3] sm:$0xff] %v711
    %744 = vst [vmem:[#allocation3 + $0x8] sm:$0xff] %v712
    %745 = vst [vmem:[#allocation3 + $0x10] sm:$0xff] %v713
    %746 = vst [vmem:[#allocation3 + $0x18] sm:$0xff] %v714
    %747 = vst [vmem:[#allocation3 + $0x20] sm:$0xff] %v715
    %748 = vst [vmem:[#allocation3 + $0x28] sm:$0xff] %v716
    %749 = vst [vmem:[#allocation3 + $0x30] sm:$0xff] %v717
    %750 = vst [vmem:[#allocation3 + $0x38] sm:$0xff] %v718
    %751 = vst [vmem:[#allocation3 + $0x40] sm:$0xff] %v719
    %752 = vst [vmem:[#allocation3 + $0x48] sm:$0xff] %v720
    %753 = vst [vmem:[#allocation3 + $0x50] sm:$0xff] %v721
    %754 = vst [vmem:[#allocation3 + $0x58] sm:$0xff] %v722
    %755 = vst [vmem:[#allocation3 + $0x60] sm:$0xff] %v723
    %756 = vst [vmem:[#allocation3 + $0x68] sm:$0xff] %v724
    %757 = vst [vmem:[#allocation3 + $0x70] sm:$0xff] %v725
    %758 = vst [vmem:[#allocation3 + $0x78] sm:$0xff] %v726
    %759 = vst [vmem:[#allocation3 + $0x80] sm:$0xff] %v727
    %760 = vst [vmem:[#allocation3 + $0x88] sm:$0xff] %v728
    %761 = vst [vmem:[#allocation3 + $0x90] sm:$0xff] %v729
    %762 = vst [vmem:[#allocation3 + $0x98] sm:$0xff] %v730
    %763 = vst [vmem:[#allocation3 + $0xa0] sm:$0xff] %v731
    %764 = vst [vmem:[#allocation3 + $0xa8] sm:$0xff] %v732
    %765 = vst [vmem:[#allocation3 + $0xb0] sm:$0xff] %v733
    %766 = vst [vmem:[#allocation3 + $0xb8] sm:$0xff] %v734
    %767 = vst [vmem:[#allocation3 + $0xc0] sm:$0xff] %v735
    %768 = vst [vmem:[#allocation3 + $0xc8] sm:$0xff] %v736
    %769 = vst [vmem:[#allocation3 + $0xd0] sm:$0xff] %v737
    %770 = vst [vmem:[#allocation3 + $0xd8] sm:$0xff] %v738
    %771 = vst [vmem:[#allocation3 + $0xe0] sm:$0xff] %v739
    %772 = vst [vmem:[#allocation3 + $0xe8] sm:$0xff] %v740
    %773 = vst [vmem:[#allocation3 + $0xf0] sm:$0xff] %v741
    %774 = vst [vmem:[#allocation3 + $0xf8] sm:$0xff] %v742
    %v775 = vld [vmem:[#allocation4 + $0x18] sm:$0xff]
    %v776 = vld [vmem:[#allocation4 + $0x58] sm:$0xff]
    %v777 = vld [vmem:[#allocation4 + $0x98] sm:$0xff]
    %v778 = vld [vmem:[#allocation4 + $0xd8] sm:$0xff]
    %v779 = vld [vmem:[#allocation4 + $0x118] sm:$0xff]
    %v780 = vld [vmem:[#allocation4 + $0x158] sm:$0xff]
    %v781 = vld [vmem:[#allocation4 + $0x198] sm:$0xff]
    %v782 = vld [vmem:[#allocation4 + $0x1d8] sm:$0xff]
    %v783 = vld [vmem:[#allocation4 + $0x218] sm:$0xff]
    %v784 = vld [vmem:[#allocation4 + $0x258] sm:$0xff]
    %v785 = vld [vmem:[#allocation4 + $0x298] sm:$0xff]
    %v786 = vld [vmem:[#allocation4 + $0x2d8] sm:$0xff]
    %v787 = vld [vmem:[#allocation4 + $0x318] sm:$0xff]
    %v788 = vld [vmem:[#allocation4 + $0x358] sm:$0xff]
    %v789 = vld [vmem:[#allocation4 + $0x398] sm:$0xff]
    %v790 = vld [vmem:[#allocation4 + $0x3d8] sm:$0xff]
    %v791 = vld [vmem:[#allocation4 + $0x418] sm:$0xff]
    %v792 = vld [vmem:[#allocation4 + $0x458] sm:$0xff]
    %v793 = vld [vmem:[#allocation4 + $0x498] sm:$0xff]
    %v794 = vld [vmem:[#allocation4 + $0x4d8] sm:$0xff]
    %v795 = vld [vmem:[#allocation4 + $0x518] sm:$0xff]
    %v796 = vld [vmem:[#allocation4 + $0x558] sm:$0xff]
    %v797 = vld [vmem:[#allocation4 + $0x598] sm:$0xff]
    %v798 = vld [vmem:[#allocation4 + $0x5d8] sm:$0xff]
    %v799 = vld [vmem:[#allocation4 + $0x618] sm:$0xff]
    %v800 = vld [vmem:[#allocation4 + $0x658] sm:$0xff]
    %v801 = vld [vmem:[#allocation4 + $0x698] sm:$0xff]
    %v802 = vld [vmem:[#allocation4 + $0x6d8] sm:$0xff]
    %v803 = vld [vmem:[#allocation4 + $0x718] sm:$0xff]
    %v804 = vld [vmem:[#allocation4 + $0x758] sm:$0xff]
    %v805 = vld [vmem:[#allocation4 + $0x798] sm:$0xff]
    %v806 = vld [vmem:[#allocation4 + $0x7d8] sm:$0xff]
    %v807 = vld [vmem:[#allocation2] sm:$0xff]
    %v808 = vld [vmem:[#allocation2 + $0x8] sm:$0xff]
    %v809 = vld [vmem:[#allocation2 + $0x10] sm:$0xff]
    %v810 = vld [vmem:[#allocation2 + $0x18] sm:$0xff]
    %v811 = vld [vmem:[#allocation2 + $0x20] sm:$0xff]
    %v812 = vld [vmem:[#allocation2 + $0x28] sm:$0xff]
    %v813 = vld [vmem:[#allocation2 + $0x30] sm:$0xff]
    %v814 = vld [vmem:[#allocation2 + $0x38] sm:$0xff]
    %v815 = vld [vmem:[#allocation2 + $0x40] sm:$0xff]
    %v816 = vld [vmem:[#allocation2 + $0x48] sm:$0xff]
    %v817 = vld [vmem:[#allocation2 + $0x50] sm:$0xff]
    %v818 = vld [vmem:[#allocation2 + $0x58] sm:$0xff]
    %v819 = vld [vmem:[#allocation2 + $0x60] sm:$0xff]
    %v820 = vld [vmem:[#allocation2 + $0x68] sm:$0xff]
    %v821 = vld [vmem:[#allocation2 + $0x70] sm:$0xff]
    %v822 = vld [vmem:[#allocation2 + $0x78] sm:$0xff]
    %v823 = vld [vmem:[#allocation2 + $0x80] sm:$0xff]
    %v824 = vld [vmem:[#allocation2 + $0x88] sm:$0xff]
    %v825 = vld [vmem:[#allocation2 + $0x90] sm:$0xff]
    %v826 = vld [vmem:[#allocation2 + $0x98] sm:$0xff]
    %v827 = vld [vmem:[#allocation2 + $0xa0] sm:$0xff]
    %v828 = vld [vmem:[#allocation2 + $0xa8] sm:$0xff]
    %v829 = vld [vmem:[#allocation2 + $0xb0] sm:$0xff]
    %v830 = vld [vmem:[#allocation2 + $0xb8] sm:$0xff]
    %v831 = vld [vmem:[#allocation2 + $0xc0] sm:$0xff]
    %v832 = vld [vmem:[#allocation2 + $0xc8] sm:$0xff]
    %v833 = vld [vmem:[#allocation2 + $0xd0] sm:$0xff]
    %v834 = vld [vmem:[#allocation2 + $0xd8] sm:$0xff]
    %v835 = vld [vmem:[#allocation2 + $0xe0] sm:$0xff]
    %v836 = vld [vmem:[#allocation2 + $0xe8] sm:$0xff]
    %v837 = vld [vmem:[#allocation2 + $0xf0] sm:$0xff]
    %v838 = vld [vmem:[#allocation2 + $0xf8] sm:$0xff]
    %v839 = vadd.f32 %v807, %v775
    %v840 = vadd.f32 %v808, %v776
    %v841 = vadd.f32 %v809, %v777
    %v842 = vadd.f32 %v810, %v778
    %v843 = vadd.f32 %v811, %v779
    %v844 = vadd.f32 %v812, %v780
    %v845 = vadd.f32 %v813, %v781
    %v846 = vadd.f32 %v814, %v782
    %v847 = vadd.f32 %v815, %v783
    %v848 = vadd.f32 %v816, %v784
    %v849 = vadd.f32 %v817, %v785
    %v850 = vadd.f32 %v818, %v786
    %v851 = vadd.f32 %v819, %v787
    %v852 = vadd.f32 %v820, %v788
    %v853 = vadd.f32 %v821, %v789
    %v854 = vadd.f32 %v822, %v790
    %v855 = vadd.f32 %v823, %v791
    %v856 = vadd.f32 %v824, %v792
    %v857 = vadd.f32 %v825, %v793
    %v858 = vadd.f32 %v826, %v794
    %v859 = vadd.f32 %v827, %v795
    %v860 = vadd.f32 %v828, %v796
    %v861 = vadd.f32 %v829, %v797
    %v862 = vadd.f32 %v830, %v798
    %v863 = vadd.f32 %v831, %v799
    %v864 = vadd.f32 %v832, %v800
    %v865 = vadd.f32 %v833, %v801
    %v866 = vadd.f32 %v834, %v802
    %v867 = vadd.f32 %v835, %v803
    %v868 = vadd.f32 %v836, %v804
    %v869 = vadd.f32 %v837, %v805
    %v870 = vadd.f32 %v838, %v806
    %871 = vst [vmem:[#allocation2] sm:$0xff] %v839
    %872 = vst [vmem:[#allocation2 + $0x8] sm:$0xff] %v840
    %873 = vst [vmem:[#allocation2 + $0x10] sm:$0xff] %v841
    %874 = vst [vmem:[#allocation2 + $0x18] sm:$0xff] %v842
    %875 = vst [vmem:[#allocation2 + $0x20] sm:$0xff] %v843
    %876 = vst [vmem:[#allocation2 + $0x28] sm:$0xff] %v844
    %877 = vst [vmem:[#allocation2 + $0x30] sm:$0xff] %v845
    %878 = vst [vmem:[#allocation2 + $0x38] sm:$0xff] %v846
    %879 = vst [vmem:[#allocation2 + $0x40] sm:$0xff] %v847
    %880 = vst [vmem:[#allocation2 + $0x48] sm:$0xff] %v848
    %881 = vst [vmem:[#allocation2 + $0x50] sm:$0xff] %v849
    %882 = vst [vmem:[#allocation2 + $0x58] sm:$0xff] %v850
    %883 = vst [vmem:[#allocation2 + $0x60] sm:$0xff] %v851
    %884 = vst [vmem:[#allocation2 + $0x68] sm:$0xff] %v852
    %885 = vst [vmem:[#allocation2 + $0x70] sm:$0xff] %v853
    %886 = vst [vmem:[#allocation2 + $0x78] sm:$0xff] %v854
    %887 = vst [vmem:[#allocation2 + $0x80] sm:$0xff] %v855
    %888 = vst [vmem:[#allocation2 + $0x88] sm:$0xff] %v856
    %889 = vst [vmem:[#allocation2 + $0x90] sm:$0xff] %v857
    %890 = vst [vmem:[#allocation2 + $0x98] sm:$0xff] %v858
    %891 = vst [vmem:[#allocation2 + $0xa0] sm:$0xff] %v859
    %892 = vst [vmem:[#allocation2 + $0xa8] sm:$0xff] %v860
    %893 = vst [vmem:[#allocation2 + $0xb0] sm:$0xff] %v861
    %894 = vst [vmem:[#allocation2 + $0xb8] sm:$0xff] %v862
    %895 = vst [vmem:[#allocation2 + $0xc0] sm:$0xff] %v863
    %896 = vst [vmem:[#allocation2 + $0xc8] sm:$0xff] %v864
    %897 = vst [vmem:[#allocation2 + $0xd0] sm:$0xff] %v865
    %898 = vst [vmem:[#allocation2 + $0xd8] sm:$0xff] %v866
    %899 = vst [vmem:[#allocation2 + $0xe0] sm:$0xff] %v867
    %900 = vst [vmem:[#allocation2 + $0xe8] sm:$0xff] %v868
    %901 = vst [vmem:[#allocation2 + $0xf0] sm:$0xff] %v869
    %902 = vst [vmem:[#allocation2 + $0xf8] sm:$0xff] %v870
    %v903 = vld [vmem:[#allocation3] sm:$0xff]
    %v904 = vld [vmem:[#allocation3 + $0x8] sm:$0xff]
    %v905 = vld [vmem:[#allocation3 + $0x10] sm:$0xff]
    %v906 = vld [vmem:[#allocation3 + $0x18] sm:$0xff]
    %v907 = vld [vmem:[#allocation3 + $0x20] sm:$0xff]
    %v908 = vld [vmem:[#allocation3 + $0x28] sm:$0xff]
    %v909 = vld [vmem:[#allocation3 + $0x30] sm:$0xff]
    %v910 = vld [vmem:[#allocation3 + $0x38] sm:$0xff]
    %v911 = vld [vmem:[#allocation3 + $0x40] sm:$0xff]
    %v912 = vld [vmem:[#allocation3 + $0x48] sm:$0xff]
    %v913 = vld [vmem:[#allocation3 + $0x50] sm:$0xff]
    %v914 = vld [vmem:[#allocation3 + $0x58] sm:$0xff]
    %v915 = vld [vmem:[#allocation3 + $0x60] sm:$0xff]
    %v916 = vld [vmem:[#allocation3 + $0x68] sm:$0xff]
    %v917 = vld [vmem:[#allocation3 + $0x70] sm:$0xff]
    %v918 = vld [vmem:[#allocation3 + $0x78] sm:$0xff]
    %v919 = vld [vmem:[#allocation3 + $0x80] sm:$0xff]
    %v920 = vld [vmem:[#allocation3 + $0x88] sm:$0xff]
    %v921 = vld [vmem:[#allocation3 + $0x90] sm:$0xff]
    %v922 = vld [vmem:[#allocation3 + $0x98] sm:$0xff]
    %v923 = vld [vmem:[#allocation3 + $0xa0] sm:$0xff]
    %v924 = vld [vmem:[#allocation3 + $0xa8] sm:$0xff]
    %v925 = vld [vmem:[#allocation3 + $0xb0] sm:$0xff]
    %v926 = vld [vmem:[#allocation3 + $0xb8] sm:$0xff]
    %v927 = vld [vmem:[#allocation3 + $0xc0] sm:$0xff]
    %v928 = vld [vmem:[#allocation3 + $0xc8] sm:$0xff]
    %v929 = vld [vmem:[#allocation3 + $0xd0] sm:$0xff]
    %v930 = vld [vmem:[#allocation3 + $0xd8] sm:$0xff]
    %v931 = vld [vmem:[#allocation3 + $0xe0] sm:$0xff]
    %v932 = vld [vmem:[#allocation3 + $0xe8] sm:$0xff]
    %v933 = vld [vmem:[#allocation3 + $0xf0] sm:$0xff]
    %v934 = vld [vmem:[#allocation3 + $0xf8] sm:$0xff]
    %v935 = vmax.f32 %v903, %v775
    %v936 = vmax.f32 %v904, %v776
    %v937 = vmax.f32 %v905, %v777
    %v938 = vmax.f32 %v906, %v778
    %v939 = vmax.f32 %v907, %v779
    %v940 = vmax.f32 %v908, %v780
    %v941 = vmax.f32 %v909, %v781
    %v942 = vmax.f32 %v910, %v782
    %v943 = vmax.f32 %v911, %v783
    %v944 = vmax.f32 %v912, %v784
    %v945 = vmax.f32 %v913, %v785
    %v946 = vmax.f32 %v914, %v786
    %v947 = vmax.f32 %v915, %v787
    %v948 = vmax.f32 %v916, %v788
    %v949 = vmax.f32 %v917, %v789
    %v950 = vmax.f32 %v918, %v790
    %v951 = vmax.f32 %v919, %v791
    %v952 = vmax.f32 %v920, %v792
    %v953 = vmax.f32 %v921, %v793
    %v954 = vmax.f32 %v922, %v794
    %v955 = vmax.f32 %v923, %v795
    %v956 = vmax.f32 %v924, %v796
    %v957 = vmax.f32 %v925, %v797
    %v958 = vmax.f32 %v926, %v798
    %v959 = vmax.f32 %v927, %v799
    %v960 = vmax.f32 %v928, %v800
    %v961 = vmax.f32 %v929, %v801
    %v962 = vmax.f32 %v930, %v802
    %v963 = vmax.f32 %v931, %v803
    %v964 = vmax.f32 %v932, %v804
    %v965 = vmax.f32 %v933, %v805
    %v966 = vmax.f32 %v934, %v806
    %967 = vst [vmem:[#allocation3] sm:$0xff] %v935
    %968 = vst [vmem:[#allocation3 + $0x8] sm:$0xff] %v936
    %969 = vst [vmem:[#allocation3 + $0x10] sm:$0xff] %v937
    %970 = vst [vmem:[#allocation3 + $0x18] sm:$0xff] %v938
    %971 = vst [vmem:[#allocation3 + $0x20] sm:$0xff] %v939
    %972 = vst [vmem:[#allocation3 + $0x28] sm:$0xff] %v940
    %973 = vst [vmem:[#allocation3 + $0x30] sm:$0xff] %v941
    %974 = vst [vmem:[#allocation3 + $0x38] sm:$0xff] %v942
    %975 = vst [vmem:[#allocation3 + $0x40] sm:$0xff] %v943
    %976 = vst [vmem:[#allocation3 + $0x48] sm:$0xff] %v944
    %977 = vst [vmem:[#allocation3 + $0x50] sm:$0xff] %v945
    %978 = vst [vmem:[#allocation3 + $0x58] sm:$0xff] %v946
    %979 = vst [vmem:[#allocation3 + $0x60] sm:$0xff] %v947
    %980 = vst [vmem:[#allocation3 + $0x68] sm:$0xff] %v948
    %981 = vst [vmem:[#allocation3 + $0x70] sm:$0xff] %v949
    %982 = vst [vmem:[#allocation3 + $0x78] sm:$0xff] %v950
    %983 = vst [vmem:[#allocation3 + $0x80] sm:$0xff] %v951
    %984 = vst [vmem:[#allocation3 + $0x88] sm:$0xff] %v952
    %985 = vst [vmem:[#allocation3 + $0x90] sm:$0xff] %v953
    %986 = vst [vmem:[#allocation3 + $0x98] sm:$0xff] %v954
    %987 = vst [vmem:[#allocation3 + $0xa0] sm:$0xff] %v955
    %988 = vst [vmem:[#allocation3 + $0xa8] sm:$0xff] %v956
    %989 = vst [vmem:[#allocation3 + $0xb0] sm:$0xff] %v957
    %990 = vst [vmem:[#allocation3 + $0xb8] sm:$0xff] %v958
    %991 = vst [vmem:[#allocation3 + $0xc0] sm:$0xff] %v959
    %992 = vst [vmem:[#allocation3 + $0xc8] sm:$0xff] %v960
    %993 = vst [vmem:[#allocation3 + $0xd0] sm:$0xff] %v961
    %994 = vst [vmem:[#allocation3 + $0xd8] sm:$0xff] %v962
    %995 = vst [vmem:[#allocation3 + $0xe0] sm:$0xff] %v963
    %996 = vst [vmem:[#allocation3 + $0xe8] sm:$0xff] %v964
    %997 = vst [vmem:[#allocation3 + $0xf0] sm:$0xff] %v965
    %998 = vst [vmem:[#allocation3 + $0xf8] sm:$0xff] %v966
    %v999 = vld [vmem:[#allocation4 + $0x20] sm:$0xff]
    %v1000 = vld [vmem:[#allocation4 + $0x60] sm:$0xff]
    %v1001 = vld [vmem:[#allocation4 + $0xa0] sm:$0xff]
    %v1002 = vld [vmem:[#allocation4 + $0xe0] sm:$0xff]
    %v1003 = vld [vmem:[#allocation4 + $0x120] sm:$0xff]
    %v1004 = vld [vmem:[#allocation4 + $0x160] sm:$0xff]
    %v1005 = vld [vmem:[#allocation4 + $0x1a0] sm:$0xff]
    %v1006 = vld [vmem:[#allocation4 + $0x1e0] sm:$0xff]
    %v1007 = vld [vmem:[#allocation4 + $0x220] sm:$0xff]
    %v1008 = vld [vmem:[#allocation4 + $0x260] sm:$0xff]
    %v1009 = vld [vmem:[#allocation4 + $0x2a0] sm:$0xff]
    %v1010 = vld [vmem:[#allocation4 + $0x2e0] sm:$0xff]
    %v1011 = vld [vmem:[#allocation4 + $0x320] sm:$0xff]
    %v1012 = vld [vmem:[#allocation4 + $0x360] sm:$0xff]
    %v1013 = vld [vmem:[#allocation4 + $0x3a0] sm:$0xff]
    %v1014 = vld [vmem:[#allocation4 + $0x3e0] sm:$0xff]
    %v1015 = vld [vmem:[#allocation4 + $0x420] sm:$0xff]
    %v1016 = vld [vmem:[#allocation4 + $0x460] sm:$0xff]
    %v1017 = vld [vmem:[#allocation4 + $0x4a0] sm:$0xff]
    %v1018 = vld [vmem:[#allocation4 + $0x4e0] sm:$0xff]
    %v1019 = vld [vmem:[#allocation4 + $0x520] sm:$0xff]
    %v1020 = vld [vmem:[#allocation4 + $0x560] sm:$0xff]
    %v1021 = vld [vmem:[#allocation4 + $0x5a0] sm:$0xff]
    %v1022 = vld [vmem:[#allocation4 + $0x5e0] sm:$0xff]
    %v1023 = vld [vmem:[#allocation4 + $0x620] sm:$0xff]
    %v1024 = vld [vmem:[#allocation4 + $0x660] sm:$0xff]
    %v1025 = vld [vmem:[#allocation4 + $0x6a0] sm:$0xff]
    %v1026 = vld [vmem:[#allocation4 + $0x6e0] sm:$0xff]
    %v1027 = vld [vmem:[#allocation4 + $0x720] sm:$0xff]
    %v1028 = vld [vmem:[#allocation4 + $0x760] sm:$0xff]
    %v1029 = vld [vmem:[#allocation4 + $0x7a0] sm:$0xff]
    %v1030 = vld [vmem:[#allocation4 + $0x7e0] sm:$0xff]
    %v1031 = vld [vmem:[#allocation2] sm:$0xff]
    %v1032 = vld [vmem:[#allocation2 + $0x8] sm:$0xff]
    %v1033 = vld [vmem:[#allocation2 + $0x10] sm:$0xff]
    %v1034 = vld [vmem:[#allocation2 + $0x18] sm:$0xff]
    %v1035 = vld [vmem:[#allocation2 + $0x20] sm:$0xff]
    %v1036 = vld [vmem:[#allocation2 + $0x28] sm:$0xff]
    %v1037 = vld [vmem:[#allocation2 + $0x30] sm:$0xff]
    %v1038 = vld [vmem:[#allocation2 + $0x38] sm:$0xff]
    %v1039 = vld [vmem:[#allocation2 + $0x40] sm:$0xff]
    %v1040 = vld [vmem:[#allocation2 + $0x48] sm:$0xff]
    %v1041 = vld [vmem:[#allocation2 + $0x50] sm:$0xff]
    %v1042 = vld [vmem:[#allocation2 + $0x58] sm:$0xff]
    %v1043 = vld [vmem:[#allocation2 + $0x60] sm:$0xff]
    %v1044 = vld [vmem:[#allocation2 + $0x68] sm:$0xff]
    %v1045 = vld [vmem:[#allocation2 + $0x70] sm:$0xff]
    %v1046 = vld [vmem:[#allocation2 + $0x78] sm:$0xff]
    %v1047 = vld [vmem:[#allocation2 + $0x80] sm:$0xff]
    %v1048 = vld [vmem:[#allocation2 + $0x88] sm:$0xff]
    %v1049 = vld [vmem:[#allocation2 + $0x90] sm:$0xff]
    %v1050 = vld [vmem:[#allocation2 + $0x98] sm:$0xff]
    %v1051 = vld [vmem:[#allocation2 + $0xa0] sm:$0xff]
    %v1052 = vld [vmem:[#allocation2 + $0xa8] sm:$0xff]
    %v1053 = vld [vmem:[#allocation2 + $0xb0] sm:$0xff]
    %v1054 = vld [vmem:[#allocation2 + $0xb8] sm:$0xff]
    %v1055 = vld [vmem:[#allocation2 + $0xc0] sm:$0xff]
    %v1056 = vld [vmem:[#allocation2 + $0xc8] sm:$0xff]
    %v1057 = vld [vmem:[#allocation2 + $0xd0] sm:$0xff]
    %v1058 = vld [vmem:[#allocation2 + $0xd8] sm:$0xff]
    %v1059 = vld [vmem:[#allocation2 + $0xe0] sm:$0xff]
    %v1060 = vld [vmem:[#allocation2 + $0xe8] sm:$0xff]
    %v1061 = vld [vmem:[#allocation2 + $0xf0] sm:$0xff]
    %v1062 = vld [vmem:[#allocation2 + $0xf8] sm:$0xff]
    %v1063 = vadd.f32 %v1031, %v999
    %v1064 = vadd.f32 %v1032, %v1000
    %v1065 = vadd.f32 %v1033, %v1001
    %v1066 = vadd.f32 %v1034, %v1002
    %v1067 = vadd.f32 %v1035, %v1003
    %v1068 = vadd.f32 %v1036, %v1004
    %v1069 = vadd.f32 %v1037, %v1005
    %v1070 = vadd.f32 %v1038, %v1006
    %v1071 = vadd.f32 %v1039, %v1007
    %v1072 = vadd.f32 %v1040, %v1008
    %v1073 = vadd.f32 %v1041, %v1009
    %v1074 = vadd.f32 %v1042, %v1010
    %v1075 = vadd.f32 %v1043, %v1011
    %v1076 = vadd.f32 %v1044, %v1012
    %v1077 = vadd.f32 %v1045, %v1013
    %v1078 = vadd.f32 %v1046, %v1014
    %v1079 = vadd.f32 %v1047, %v1015
    %v1080 = vadd.f32 %v1048, %v1016
    %v1081 = vadd.f32 %v1049, %v1017
    %v1082 = vadd.f32 %v1050, %v1018
    %v1083 = vadd.f32 %v1051, %v1019
    %v1084 = vadd.f32 %v1052, %v1020
    %v1085 = vadd.f32 %v1053, %v1021
    %v1086 = vadd.f32 %v1054, %v1022
    %v1087 = vadd.f32 %v1055, %v1023
    %v1088 = vadd.f32 %v1056, %v1024
    %v1089 = vadd.f32 %v1057, %v1025
    %v1090 = vadd.f32 %v1058, %v1026
    %v1091 = vadd.f32 %v1059, %v1027
    %v1092 = vadd.f32 %v1060, %v1028
    %v1093 = vadd.f32 %v1061, %v1029
    %v1094 = vadd.f32 %v1062, %v1030
    %1095 = vst [vmem:[#allocation2] sm:$0xff] %v1063
    %1096 = vst [vmem:[#allocation2 + $0x8] sm:$0xff] %v1064
    %1097 = vst [vmem:[#allocation2 + $0x10] sm:$0xff] %v1065
    %1098 = vst [vmem:[#allocation2 + $0x18] sm:$0xff] %v1066
    %1099 = vst [vmem:[#allocation2 + $0x20] sm:$0xff] %v1067
    %1100 = vst [vmem:[#allocation2 + $0x28] sm:$0xff] %v1068
    %1101 = vst [vmem:[#allocation2 + $0x30] sm:$0xff] %v1069
    %1102 = vst [vmem:[#allocation2 + $0x38] sm:$0xff] %v1070
    %1103 = vst [vmem:[#allocation2 + $0x40] sm:$0xff] %v1071
    %1104 = vst [vmem:[#allocation2 + $0x48] sm:$0xff] %v1072
    %1105 = vst [vmem:[#allocation2 + $0x50] sm:$0xff] %v1073
    %1106 = vst [vmem:[#allocation2 + $0x58] sm:$0xff] %v1074
    %1107 = vst [vmem:[#allocation2 + $0x60] sm:$0xff] %v1075
    %1108 = vst [vmem:[#allocation2 + $0x68] sm:$0xff] %v1076
    %1109 = vst [vmem:[#allocation2 + $0x70] sm:$0xff] %v1077
    %1110 = vst [vmem:[#allocation2 + $0x78] sm:$0xff] %v1078
    %1111 = vst [vmem:[#allocation2 + $0x80] sm:$0xff] %v1079
    %1112 = vst [vmem:[#allocation2 + $0x88] sm:$0xff] %v1080
    %1113 = vst [vmem:[#allocation2 + $0x90] sm:$0xff] %v1081
    %1114 = vst [vmem:[#allocation2 + $0x98] sm:$0xff] %v1082
    %1115 = vst [vmem:[#allocation2 + $0xa0] sm:$0xff] %v1083
    %1116 = vst [vmem:[#allocation2 + $0xa8] sm:$0xff] %v1084
    %1117 = vst [vmem:[#allocation2 + $0xb0] sm:$0xff] %v1085
    %1118 = vst [vmem:[#allocation2 + $0xb8] sm:$0xff] %v1086
    %1119 = vst [vmem:[#allocation2 + $0xc0] sm:$0xff] %v1087
    %1120 = vst [vmem:[#allocation2 + $0xc8] sm:$0xff] %v1088
    %1121 = vst [vmem:[#allocation2 + $0xd0] sm:$0xff] %v1089
    %1122 = vst [vmem:[#allocation2 + $0xd8] sm:$0xff] %v1090
    %1123 = vst [vmem:[#allocation2 + $0xe0] sm:$0xff] %v1091
    %1124 = vst [vmem:[#allocation2 + $0xe8] sm:$0xff] %v1092
    %1125 = vst [vmem:[#allocation2 + $0xf0] sm:$0xff] %v1093
    %1126 = vst [vmem:[#allocation2 + $0xf8] sm:$0xff] %v1094
    %v1127 = vld [vmem:[#allocation3] sm:$0xff]
    %v1128 = vld [vmem:[#allocation3 + $0x8] sm:$0xff]
    %v1129 = vld [vmem:[#allocation3 + $0x10] sm:$0xff]
    %v1130 = vld [vmem:[#allocation3 + $0x18] sm:$0xff]
    %v1131 = vld [vmem:[#allocation3 + $0x20] sm:$0xff]
    %v1132 = vld [vmem:[#allocation3 + $0x28] sm:$0xff]
    %v1133 = vld [vmem:[#allocation3 + $0x30] sm:$0xff]
    %v1134 = vld [vmem:[#allocation3 + $0x38] sm:$0xff]
    %v1135 = vld [vmem:[#allocation3 + $0x40] sm:$0xff]
    %v1136 = vld [vmem:[#allocation3 + $0x48] sm:$0xff]
    %v1137 = vld [vmem:[#allocation3 + $0x50] sm:$0xff]
    %v1138 = vld [vmem:[#allocation3 + $0x58] sm:$0xff]
    %v1139 = vld [vmem:[#allocation3 + $0x60] sm:$0xff]
    %v1140 = vld [vmem:[#allocation3 + $0x68] sm:$0xff]
    %v1141 = vld [vmem:[#allocation3 + $0x70] sm:$0xff]
    %v1142 = vld [vmem:[#allocation3 + $0x78] sm:$0xff]
    %v1143 = vld [vmem:[#allocation3 + $0x80] sm:$0xff]
    %v1144 = vld [vmem:[#allocation3 + $0x88] sm:$0xff]
    %v1145 = vld [vmem:[#allocation3 + $0x90] sm:$0xff]
    %v1146 = vld [vmem:[#allocation3 + $0x98] sm:$0xff]
    %v1147 = vld [vmem:[#allocation3 + $0xa0] sm:$0xff]
    %v1148 = vld [vmem:[#allocation3 + $0xa8] sm:$0xff]
    %v1149 = vld [vmem:[#allocation3 + $0xb0] sm:$0xff]
    %v1150 = vld [vmem:[#allocation3 + $0xb8] sm:$0xff]
    %v1151 = vld [vmem:[#allocation3 + $0xc0] sm:$0xff]
    %v1152 = vld [vmem:[#allocation3 + $0xc8] sm:$0xff]
    %v1153 = vld [vmem:[#allocation3 + $0xd0] sm:$0xff]
    %v1154 = vld [vmem:[#allocation3 + $0xd8] sm:$0xff]
    %v1155 = vld [vmem:[#allocation3 + $0xe0] sm:$0xff]
    %v1156 = vld [vmem:[#allocation3 + $0xe8] sm:$0xff]
    %v1157 = vld [vmem:[#allocation3 + $0xf0] sm:$0xff]
    %v1158 = vld [vmem:[#allocation3 + $0xf8] sm:$0xff]
    %v1159 = vmax.f32 %v1127, %v999
    %v1160 = vmax.f32 %v1128, %v1000
    %v1161 = vmax.f32 %v1129, %v1001
    %v1162 = vmax.f32 %v1130, %v1002
    %v1163 = vmax.f32 %v1131, %v1003
    %v1164 = vmax.f32 %v1132, %v1004
    %v1165 = vmax.f32 %v1133, %v1005
    %v1166 = vmax.f32 %v1134, %v1006
    %v1167 = vmax.f32 %v1135, %v1007
    %v1168 = vmax.f32 %v1136, %v1008
    %v1169 = vmax.f32 %v1137, %v1009
    %v1170 = vmax.f32 %v1138, %v1010
    %v1171 = vmax.f32 %v1139, %v1011
    %v1172 = vmax.f32 %v1140, %v1012
    %v1173 = vmax.f32 %v1141, %v1013
    %v1174 = vmax.f32 %v1142, %v1014
    %v1175 = vmax.f32 %v1143, %v1015
    %v1176 = vmax.f32 %v1144, %v1016
    %v1177 = vmax.f32 %v1145, %v1017
    %v1178 = vmax.f32 %v1146, %v1018
    %v1179 = vmax.f32 %v1147, %v1019
    %v1180 = vmax.f32 %v1148, %v1020
    %v1181 = vmax.f32 %v1149, %v1021
    %v1182 = vmax.f32 %v1150, %v1022
    %v1183 = vmax.f32 %v1151, %v1023
    %v1184 = vmax.f32 %v1152, %v1024
    %v1185 = vmax.f32 %v1153, %v1025
    %v1186 = vmax.f32 %v1154, %v1026
    %v1187 = vmax.f32 %v1155, %v1027
    %v1188 = vmax.f32 %v1156, %v1028
    %v1189 = vmax.f32 %v1157, %v1029
    %v1190 = vmax.f32 %v1158, %v1030
    %1191 = vst [vmem:[#allocation3] sm:$0xff] %v1159
    %1192 = vst [vmem:[#allocation3 + $0x8] sm:$0xff] %v1160
    %1193 = vst [vmem:[#allocation3 + $0x10] sm:$0xff] %v1161
    %1194 = vst [vmem:[#allocation3 + $0x18] sm:$0xff] %v1162
    %1195 = vst [vmem:[#allocation3 + $0x20] sm:$0xff] %v1163
    %1196 = vst [vmem:[#allocation3 + $0x28] sm:$0xff] %v1164
    %1197 = vst [vmem:[#allocation3 + $0x30] sm:$0xff] %v1165
    %1198 = vst [vmem:[#allocation3 + $0x38] sm:$0xff] %v1166
    %1199 = vst [vmem:[#allocation3 + $0x40] sm:$0xff] %v1167
    %1200 = vst [vmem:[#allocation3 + $0x48] sm:$0xff] %v1168
    %1201 = vst [vmem:[#allocation3 + $0x50] sm:$0xff] %v1169
    %1202 = vst [vmem:[#allocation3 + $0x58] sm:$0xff] %v1170
    %1203 = vst [vmem:[#allocation3 + $0x60] sm:$0xff] %v1171
    %1204 = vst [vmem:[#allocation3 + $0x68] sm:$0xff] %v1172
    %1205 = vst [vmem:[#allocation3 + $0x70] sm:$0xff] %v1173
    %1206 = vst [vmem:[#allocation3 + $0x78] sm:$0xff] %v1174
    %1207 = vst [vmem:[#allocation3 + $0x80] sm:$0xff] %v1175
    %1208 = vst [vmem:[#allocation3 + $0x88] sm:$0xff] %v1176
    %1209 = vst [vmem:[#allocation3 + $0x90] sm:$0xff] %v1177
    %1210 = vst [vmem:[#allocation3 + $0x98] sm:$0xff] %v1178
    %1211 = vst [vmem:[#allocation3 + $0xa0] sm:$0xff] %v1179
    %1212 = vst [vmem:[#allocation3 + $0xa8] sm:$0xff] %v1180
    %1213 = vst [vmem:[#allocation3 + $0xb0] sm:$0xff] %v1181
    %1214 = vst [vmem:[#allocation3 + $0xb8] sm:$0xff] %v1182
    %1215 = vst [vmem:[#allocation3 + $0xc0] sm:$0xff] %v1183
    %1216 = vst [vmem:[#allocation3 + $0xc8] sm:$0xff] %v1184
    %1217 = vst [vmem:[#allocation3 + $0xd0] sm:$0xff] %v1185
    %1218 = vst [vmem:[#allocation3 + $0xd8] sm:$0xff] %v1186
    %1219 = vst [vmem:[#allocation3 + $0xe0] sm:$0xff] %v1187
    %1220 = vst [vmem:[#allocation3 + $0xe8] sm:$0xff] %v1188
    %1221 = vst [vmem:[#allocation3 + $0xf0] sm:$0xff] %v1189
    %1222 = vst [vmem:[#allocation3 + $0xf8] sm:$0xff] %v1190
    %v1223 = vld [vmem:[#allocation4 + $0x28] sm:$0xff]
    %v1224 = vld [vmem:[#allocation4 + $0x68] sm:$0xff]
    %v1225 = vld [vmem:[#allocation4 + $0xa8] sm:$0xff]
    %v1226 = vld [vmem:[#allocation4 + $0xe8] sm:$0xff]
    %v1227 = vld [vmem:[#allocation4 + $0x128] sm:$0xff]
    %v1228 = vld [vmem:[#allocation4 + $0x168] sm:$0xff]
    %v1229 = vld [vmem:[#allocation4 + $0x1a8] sm:$0xff]
    %v1230 = vld [vmem:[#allocation4 + $0x1e8] sm:$0xff]
    %v1231 = vld [vmem:[#allocation4 + $0x228] sm:$0xff]
    %v1232 = vld [vmem:[#allocation4 + $0x268] sm:$0xff]
    %v1233 = vld [vmem:[#allocation4 + $0x2a8] sm:$0xff]
    %v1234 = vld [vmem:[#allocation4 + $0x2e8] sm:$0xff]
    %v1235 = vld [vmem:[#allocation4 + $0x328] sm:$0xff]
    %v1236 = vld [vmem:[#allocation4 + $0x368] sm:$0xff]
    %v1237 = vld [vmem:[#allocation4 + $0x3a8] sm:$0xff]
    %v1238 = vld [vmem:[#allocation4 + $0x3e8] sm:$0xff]
    %v1239 = vld [vmem:[#allocation4 + $0x428] sm:$0xff]
    %v1240 = vld [vmem:[#allocation4 + $0x468] sm:$0xff]
    %v1241 = vld [vmem:[#allocation4 + $0x4a8] sm:$0xff]
    %v1242 = vld [vmem:[#allocation4 + $0x4e8] sm:$0xff]
    %v1243 = vld [vmem:[#allocation4 + $0x528] sm:$0xff]
    %v1244 = vld [vmem:[#allocation4 + $0x568] sm:$0xff]
    %v1245 = vld [vmem:[#allocation4 + $0x5a8] sm:$0xff]
    %v1246 = vld [vmem:[#allocation4 + $0x5e8] sm:$0xff]
    %v1247 = vld [vmem:[#allocation4 + $0x628] sm:$0xff]
    %v1248 = vld [vmem:[#allocation4 + $0x668] sm:$0xff]
    %v1249 = vld [vmem:[#allocation4 + $0x6a8] sm:$0xff]
    %v1250 = vld [vmem:[#allocation4 + $0x6e8] sm:$0xff]
    %v1251 = vld [vmem:[#allocation4 + $0x728] sm:$0xff]
    %v1252 = vld [vmem:[#allocation4 + $0x768] sm:$0xff]
    %v1253 = vld [vmem:[#allocation4 + $0x7a8] sm:$0xff]
    %v1254 = vld [vmem:[#allocation4 + $0x7e8] sm:$0xff]
    %v1255 = vld [vmem:[#allocation2] sm:$0xff]
    %v1256 = vld [vmem:[#allocation2 + $0x8] sm:$0xff]
    %v1257 = vld [vmem:[#allocation2 + $0x10] sm:$0xff]
    %v1258 = vld [vmem:[#allocation2 + $0x18] sm:$0xff]
    %v1259 = vld [vmem:[#allocation2 + $0x20] sm:$0xff]
    %v1260 = vld [vmem:[#allocation2 + $0x28] sm:$0xff]
    %v1261 = vld [vmem:[#allocation2 + $0x30] sm:$0xff]
    %v1262 = vld [vmem:[#allocation2 + $0x38] sm:$0xff]
    %v1263 = vld [vmem:[#allocation2 + $0x40] sm:$0xff]
    %v1264 = vld [vmem:[#allocation2 + $0x48] sm:$0xff]
    %v1265 = vld [vmem:[#allocation2 + $0x50] sm:$0xff]
    %v1266 = vld [vmem:[#allocation2 + $0x58] sm:$0xff]
    %v1267 = vld [vmem:[#allocation2 + $0x60] sm:$0xff]
    %v1268 = vld [vmem:[#allocation2 + $0x68] sm:$0xff]
    %v1269 = vld [vmem:[#allocation2 + $0x70] sm:$0xff]
    %v1270 = vld [vmem:[#allocation2 + $0x78] sm:$0xff]
    %v1271 = vld [vmem:[#allocation2 + $0x80] sm:$0xff]
    %v1272 = vld [vmem:[#allocation2 + $0x88] sm:$0xff]
    %v1273 = vld [vmem:[#allocation2 + $0x90] sm:$0xff]
    %v1274 = vld [vmem:[#allocation2 + $0x98] sm:$0xff]
    %v1275 = vld [vmem:[#allocation2 + $0xa0] sm:$0xff]
    %v1276 = vld [vmem:[#allocation2 + $0xa8] sm:$0xff]
    %v1277 = vld [vmem:[#allocation2 + $0xb0] sm:$0xff]
    %v1278 = vld [vmem:[#allocation2 + $0xb8] sm:$0xff]
    %v1279 = vld [vmem:[#allocation2 + $0xc0] sm:$0xff]
    %v1280 = vld [vmem:[#allocation2 + $0xc8] sm:$0xff]
    %v1281 = vld [vmem:[#allocation2 + $0xd0] sm:$0xff]
    %v1282 = vld [vmem:[#allocation2 + $0xd8] sm:$0xff]
    %v1283 = vld [vmem:[#allocation2 + $0xe0] sm:$0xff]
    %v1284 = vld [vmem:[#allocation2 + $0xe8] sm:$0xff]
    %v1285 = vld [vmem:[#allocation2 + $0xf0] sm:$0xff]
    %v1286 = vld [vmem:[#allocation2 + $0xf8] sm:$0xff]
    %v1287 = vadd.f32 %v1255, %v1223
    %v1288 = vadd.f32 %v1256, %v1224
    %v1289 = vadd.f32 %v1257, %v1225
    %v1290 = vadd.f32 %v1258, %v1226
    %v1291 = vadd.f32 %v1259, %v1227
    %v1292 = vadd.f32 %v1260, %v1228
    %v1293 = vadd.f32 %v1261, %v1229
    %v1294 = vadd.f32 %v1262, %v1230
    %v1295 = vadd.f32 %v1263, %v1231
    %v1296 = vadd.f32 %v1264, %v1232
    %v1297 = vadd.f32 %v1265, %v1233
    %v1298 = vadd.f32 %v1266, %v1234
    %v1299 = vadd.f32 %v1267, %v1235
    %v1300 = vadd.f32 %v1268, %v1236
    %v1301 = vadd.f32 %v1269, %v1237
    %v1302 = vadd.f32 %v1270, %v1238
    %v1303 = vadd.f32 %v1271, %v1239
    %v1304 = vadd.f32 %v1272, %v1240
    %v1305 = vadd.f32 %v1273, %v1241
    %v1306 = vadd.f32 %v1274, %v1242
    %v1307 = vadd.f32 %v1275, %v1243
    %v1308 = vadd.f32 %v1276, %v1244
    %v1309 = vadd.f32 %v1277, %v1245
    %v1310 = vadd.f32 %v1278, %v1246
    %v1311 = vadd.f32 %v1279, %v1247
    %v1312 = vadd.f32 %v1280, %v1248
    %v1313 = vadd.f32 %v1281, %v1249
    %v1314 = vadd.f32 %v1282, %v1250
    %v1315 = vadd.f32 %v1283, %v1251
    %v1316 = vadd.f32 %v1284, %v1252
    %v1317 = vadd.f32 %v1285, %v1253
    %v1318 = vadd.f32 %v1286, %v1254
    %1319 = vst [vmem:[#allocation2] sm:$0xff] %v1287
    %1320 = vst [vmem:[#allocation2 + $0x8] sm:$0xff] %v1288
    %1321 = vst [vmem:[#allocation2 + $0x10] sm:$0xff] %v1289
    %1322 = vst [vmem:[#allocation2 + $0x18] sm:$0xff] %v1290
    %1323 = vst [vmem:[#allocation2 + $0x20] sm:$0xff] %v1291
    %1324 = vst [vmem:[#allocation2 + $0x28] sm:$0xff] %v1292
    %1325 = vst [vmem:[#allocation2 + $0x30] sm:$0xff] %v1293
    %1326 = vst [vmem:[#allocation2 + $0x38] sm:$0xff] %v1294
    %1327 = vst [vmem:[#allocation2 + $0x40] sm:$0xff] %v1295
    %1328 = vst [vmem:[#allocation2 + $0x48] sm:$0xff] %v1296
    %1329 = vst [vmem:[#allocation2 + $0x50] sm:$0xff] %v1297
    %1330 = vst [vmem:[#allocation2 + $0x58] sm:$0xff] %v1298
    %1331 = vst [vmem:[#allocation2 + $0x60] sm:$0xff] %v1299
    %1332 = vst [vmem:[#allocation2 + $0x68] sm:$0xff] %v1300
    %1333 = vst [vmem:[#allocation2 + $0x70] sm:$0xff] %v1301
    %1334 = vst [vmem:[#allocation2 + $0x78] sm:$0xff] %v1302
    %1335 = vst [vmem:[#allocation2 + $0x80] sm:$0xff] %v1303
    %1336 = vst [vmem:[#allocation2 + $0x88] sm:$0xff] %v1304
    %1337 = vst [vmem:[#allocation2 + $0x90] sm:$0xff] %v1305
    %1338 = vst [vmem:[#allocation2 + $0x98] sm:$0xff] %v1306
    %1339 = vst [vmem:[#allocation2 + $0xa0] sm:$0xff] %v1307
    %1340 = vst [vmem:[#allocation2 + $0xa8] sm:$0xff] %v1308
    %1341 = vst [vmem:[#allocation2 + $0xb0] sm:$0xff] %v1309
    %1342 = vst [vmem:[#allocation2 + $0xb8] sm:$0xff] %v1310
    %1343 = vst [vmem:[#allocation2 + $0xc0] sm:$0xff] %v1311
    %1344 = vst [vmem:[#allocation2 + $0xc8] sm:$0xff] %v1312
    %1345 = vst [vmem:[#allocation2 + $0xd0] sm:$0xff] %v1313
    %1346 = vst [vmem:[#allocation2 + $0xd8] sm:$0xff] %v1314
    %1347 = vst [vmem:[#allocation2 + $0xe0] sm:$0xff] %v1315
    %1348 = vst [vmem:[#allocation2 + $0xe8] sm:$0xff] %v1316
    %1349 = vst [vmem:[#allocation2 + $0xf0] sm:$0xff] %v1317
    %1350 = vst [vmem:[#allocation2 + $0xf8] sm:$0xff] %v1318
    %v1351 = vld [vmem:[#allocation3] sm:$0xff]
    %v1352 = vld [vmem:[#allocation3 + $0x8] sm:$0xff]
    %v1353 = vld [vmem:[#allocation3 + $0x10] sm:$0xff]
    %v1354 = vld [vmem:[#allocation3 + $0x18] sm:$0xff]
    %v1355 = vld [vmem:[#allocation3 + $0x20] sm:$0xff]
    %v1356 = vld [vmem:[#allocation3 + $0x28] sm:$0xff]
    %v1357 = vld [vmem:[#allocation3 + $0x30] sm:$0xff]
    %v1358 = vld [vmem:[#allocation3 + $0x38] sm:$0xff]
    %v1359 = vld [vmem:[#allocation3 + $0x40] sm:$0xff]
    %v1360 = vld [vmem:[#allocation3 + $0x48] sm:$0xff]
    %v1361 = vld [vmem:[#allocation3 + $0x50] sm:$0xff]
    %v1362 = vld [vmem:[#allocation3 + $0x58] sm:$0xff]
    %v1363 = vld [vmem:[#allocation3 + $0x60] sm:$0xff]
    %v1364 = vld [vmem:[#allocation3 + $0x68] sm:$0xff]
    %v1365 = vld [vmem:[#allocation3 + $0x70] sm:$0xff]
    %v1366 = vld [vmem:[#allocation3 + $0x78] sm:$0xff]
    %v1367 = vld [vmem:[#allocation3 + $0x80] sm:$0xff]
    %v1368 = vld [vmem:[#allocation3 + $0x88] sm:$0xff]
    %v1369 = vld [vmem:[#allocation3 + $0x90] sm:$0xff]
    %v1370 = vld [vmem:[#allocation3 + $0x98] sm:$0xff]
    %v1371 = vld [vmem:[#allocation3 + $0xa0] sm:$0xff]
    %v1372 = vld [vmem:[#allocation3 + $0xa8] sm:$0xff]
    %v1373 = vld [vmem:[#allocation3 + $0xb0] sm:$0xff]
    %v1374 = vld [vmem:[#allocation3 + $0xb8] sm:$0xff]
    %v1375 = vld [vmem:[#allocation3 + $0xc0] sm:$0xff]
    %v1376 = vld [vmem:[#allocation3 + $0xc8] sm:$0xff]
    %v1377 = vld [vmem:[#allocation3 + $0xd0] sm:$0xff]
    %v1378 = vld [vmem:[#allocation3 + $0xd8] sm:$0xff]
    %v1379 = vld [vmem:[#allocation3 + $0xe0] sm:$0xff]
    %v1380 = vld [vmem:[#allocation3 + $0xe8] sm:$0xff]
    %v1381 = vld [vmem:[#allocation3 + $0xf0] sm:$0xff]
    %v1382 = vld [vmem:[#allocation3 + $0xf8] sm:$0xff]
    %v1383 = vmax.f32 %v1351, %v1223
    %v1384 = vmax.f32 %v1352, %v1224
    %v1385 = vmax.f32 %v1353, %v1225
    %v1386 = vmax.f32 %v1354, %v1226
    %v1387 = vmax.f32 %v1355, %v1227
    %v1388 = vmax.f32 %v1356, %v1228
    %v1389 = vmax.f32 %v1357, %v1229
    %v1390 = vmax.f32 %v1358, %v1230
    %v1391 = vmax.f32 %v1359, %v1231
    %v1392 = vmax.f32 %v1360, %v1232
    %v1393 = vmax.f32 %v1361, %v1233
    %v1394 = vmax.f32 %v1362, %v1234
    %v1395 = vmax.f32 %v1363, %v1235
    %v1396 = vmax.f32 %v1364, %v1236
    %v1397 = vmax.f32 %v1365, %v1237
    %v1398 = vmax.f32 %v1366, %v1238
    %v1399 = vmax.f32 %v1367, %v1239
    %v1400 = vmax.f32 %v1368, %v1240
    %v1401 = vmax.f32 %v1369, %v1241
    %v1402 = vmax.f32 %v1370, %v1242
    %v1403 = vmax.f32 %v1371, %v1243
    %v1404 = vmax.f32 %v1372, %v1244
    %v1405 = vmax.f32 %v1373, %v1245
    %v1406 = vmax.f32 %v1374, %v1246
    %v1407 = vmax.f32 %v1375, %v1247
    %v1408 = vmax.f32 %v1376, %v1248
    %v1409 = vmax.f32 %v1377, %v1249
    %v1410 = vmax.f32 %v1378, %v1250
    %v1411 = vmax.f32 %v1379, %v1251
    %v1412 = vmax.f32 %v1380, %v1252
    %v1413 = vmax.f32 %v1381, %v1253
    %v1414 = vmax.f32 %v1382, %v1254
    %1415 = vst [vmem:[#allocation3] sm:$0xff] %v1383
    %1416 = vst [vmem:[#allocation3 + $0x8] sm:$0xff] %v1384
    %1417 = vst [vmem:[#allocation3 + $0x10] sm:$0xff] %v1385
    %1418 = vst [vmem:[#allocation3 + $0x18] sm:$0xff] %v1386
    %1419 = vst [vmem:[#allocation3 + $0x20] sm:$0xff] %v1387
    %1420 = vst [vmem:[#allocation3 + $0x28] sm:$0xff] %v1388
    %1421 = vst [vmem:[#allocation3 + $0x30] sm:$0xff] %v1389
    %1422 = vst [vmem:[#allocation3 + $0x38] sm:$0xff] %v1390
    %1423 = vst [vmem:[#allocation3 + $0x40] sm:$0xff] %v1391
    %1424 = vst [vmem:[#allocation3 + $0x48] sm:$0xff] %v1392
    %1425 = vst [vmem:[#allocation3 + $0x50] sm:$0xff] %v1393
    %1426 = vst [vmem:[#allocation3 + $0x58] sm:$0xff] %v1394
    %1427 = vst [vmem:[#allocation3 + $0x60] sm:$0xff] %v1395
    %1428 = vst [vmem:[#allocation3 + $0x68] sm:$0xff] %v1396
    %1429 = vst [vmem:[#allocation3 + $0x70] sm:$0xff] %v1397
    %1430 = vst [vmem:[#allocation3 + $0x78] sm:$0xff] %v1398
    %1431 = vst [vmem:[#allocation3 + $0x80] sm:$0xff] %v1399
    %1432 = vst [vmem:[#allocation3 + $0x88] sm:$0xff] %v1400
    %1433 = vst [vmem:[#allocation3 + $0x90] sm:$0xff] %v1401
    %1434 = vst [vmem:[#allocation3 + $0x98] sm:$0xff] %v1402
    %1435 = vst [vmem:[#allocation3 + $0xa0] sm:$0xff] %v1403
    %1436 = vst [vmem:[#allocation3 + $0xa8] sm:$0xff] %v1404
    %1437 = vst [vmem:[#allocation3 + $0xb0] sm:$0xff] %v1405
    %1438 = vst [vmem:[#allocation3 + $0xb8] sm:$0xff] %v1406
    %1439 = vst [vmem:[#allocation3 + $0xc0] sm:$0xff] %v1407
    %1440 = vst [vmem:[#allocation3 + $0xc8] sm:$0xff] %v1408
    %1441 = vst [vmem:[#allocation3 + $0xd0] sm:$0xff] %v1409
    %1442 = vst [vmem:[#allocation3 + $0xd8] sm:$0xff] %v1410
    %1443 = vst [vmem:[#allocation3 + $0xe0] sm:$0xff] %v1411
    %1444 = vst [vmem:[#allocation3 + $0xe8] sm:$0xff] %v1412
    %1445 = vst [vmem:[#allocation3 + $0xf0] sm:$0xff] %v1413
    %1446 = vst [vmem:[#allocation3 + $0xf8] sm:$0xff] %v1414
    %v1447 = vld [vmem:[#allocation4 + $0x30] sm:$0xff]
    %v1448 = vld [vmem:[#allocation4 + $0x70] sm:$0xff]
    %v1449 = vld [vmem:[#allocation4 + $0xb0] sm:$0xff]
    %v1450 = vld [vmem:[#allocation4 + $0xf0] sm:$0xff]
    %v1451 = vld [vmem:[#allocation4 + $0x130] sm:$0xff]
    %v1452 = vld [vmem:[#allocation4 + $0x170] sm:$0xff]
    %v1453 = vld [vmem:[#allocation4 + $0x1b0] sm:$0xff]
    %v1454 = vld [vmem:[#allocation4 + $0x1f0] sm:$0xff]
    %v1455 = vld [vmem:[#allocation4 + $0x230] sm:$0xff]
    %v1456 = vld [vmem:[#allocation4 + $0x270] sm:$0xff]
    %v1457 = vld [vmem:[#allocation4 + $0x2b0] sm:$0xff]
    %v1458 = vld [vmem:[#allocation4 + $0x2f0] sm:$0xff]
    %v1459 = vld [vmem:[#allocation4 + $0x330] sm:$0xff]
    %v1460 = vld [vmem:[#allocation4 + $0x370] sm:$0xff]
    %v1461 = vld [vmem:[#allocation4 + $0x3b0] sm:$0xff]
    %v1462 = vld [vmem:[#allocation4 + $0x3f0] sm:$0xff]
    %v1463 = vld [vmem:[#allocation4 + $0x430] sm:$0xff]
    %v1464 = vld [vmem:[#allocation4 + $0x470] sm:$0xff]
    %v1465 = vld [vmem:[#allocation4 + $0x4b0] sm:$0xff]
    %v1466 = vld [vmem:[#allocation4 + $0x4f0] sm:$0xff]
    %v1467 = vld [vmem:[#allocation4 + $0x530] sm:$0xff]
    %v1468 = vld [vmem:[#allocation4 + $0x570] sm:$0xff]
    %v1469 = vld [vmem:[#allocation4 + $0x5b0] sm:$0xff]
    %v1470 = vld [vmem:[#allocation4 + $0x5f0] sm:$0xff]
    %v1471 = vld [vmem:[#allocation4 + $0x630] sm:$0xff]
    %v1472 = vld [vmem:[#allocation4 + $0x670] sm:$0xff]
    %v1473 = vld [vmem:[#allocation4 + $0x6b0] sm:$0xff]
    %v1474 = vld [vmem:[#allocation4 + $0x6f0] sm:$0xff]
    %v1475 = vld [vmem:[#allocation4 + $0x730] sm:$0xff]
    %v1476 = vld [vmem:[#allocation4 + $0x770] sm:$0xff]
    %v1477 = vld [vmem:[#allocation4 + $0x7b0] sm:$0xff]
    %v1478 = vld [vmem:[#allocation4 + $0x7f0] sm:$0xff]
    %v1479 = vld [vmem:[#allocation2] sm:$0xff]
    %v1480 = vld [vmem:[#allocation2 + $0x8] sm:$0xff]
    %v1481 = vld [vmem:[#allocation2 + $0x10] sm:$0xff]
    %v1482 = vld [vmem:[#allocation2 + $0x18] sm:$0xff]
    %v1483 = vld [vmem:[#allocation2 + $0x20] sm:$0xff]
    %v1484 = vld [vmem:[#allocation2 + $0x28] sm:$0xff]
    %v1485 = vld [vmem:[#allocation2 + $0x30] sm:$0xff]
    %v1486 = vld [vmem:[#allocation2 + $0x38] sm:$0xff]
    %v1487 = vld [vmem:[#allocation2 + $0x40] sm:$0xff]
    %v1488 = vld [vmem:[#allocation2 + $0x48] sm:$0xff]
    %v1489 = vld [vmem:[#allocation2 + $0x50] sm:$0xff]
    %v1490 = vld [vmem:[#allocation2 + $0x58] sm:$0xff]
    %v1491 = vld [vmem:[#allocation2 + $0x60] sm:$0xff]
    %v1492 = vld [vmem:[#allocation2 + $0x68] sm:$0xff]
    %v1493 = vld [vmem:[#allocation2 + $0x70] sm:$0xff]
    %v1494 = vld [vmem:[#allocation2 + $0x78] sm:$0xff]
    %v1495 = vld [vmem:[#allocation2 + $0x80] sm:$0xff]
    %v1496 = vld [vmem:[#allocation2 + $0x88] sm:$0xff]
    %v1497 = vld [vmem:[#allocation2 + $0x90] sm:$0xff]
    %v1498 = vld [vmem:[#allocation2 + $0x98] sm:$0xff]
    %v1499 = vld [vmem:[#allocation2 + $0xa0] sm:$0xff]
    %v1500 = vld [vmem:[#allocation2 + $0xa8] sm:$0xff]
    %v1501 = vld [vmem:[#allocation2 + $0xb0] sm:$0xff]
    %v1502 = vld [vmem:[#allocation2 + $0xb8] sm:$0xff]
    %v1503 = vld [vmem:[#allocation2 + $0xc0] sm:$0xff]
    %v1504 = vld [vmem:[#allocation2 + $0xc8] sm:$0xff]
    %v1505 = vld [vmem:[#allocation2 + $0xd0] sm:$0xff]
    %v1506 = vld [vmem:[#allocation2 + $0xd8] sm:$0xff]
    %v1507 = vld [vmem:[#allocation2 + $0xe0] sm:$0xff]
    %v1508 = vld [vmem:[#allocation2 + $0xe8] sm:$0xff]
    %v1509 = vld [vmem:[#allocation2 + $0xf0] sm:$0xff]
    %v1510 = vld [vmem:[#allocation2 + $0xf8] sm:$0xff]
    %v1511 = vadd.f32 %v1479, %v1447
    %v1512 = vadd.f32 %v1480, %v1448
    %v1513 = vadd.f32 %v1481, %v1449
    %v1514 = vadd.f32 %v1482, %v1450
    %v1515 = vadd.f32 %v1483, %v1451
    %v1516 = vadd.f32 %v1484, %v1452
    %v1517 = vadd.f32 %v1485, %v1453
    %v1518 = vadd.f32 %v1486, %v1454
    %v1519 = vadd.f32 %v1487, %v1455
    %v1520 = vadd.f32 %v1488, %v1456
    %v1521 = vadd.f32 %v1489, %v1457
    %v1522 = vadd.f32 %v1490, %v1458
    %v1523 = vadd.f32 %v1491, %v1459
    %v1524 = vadd.f32 %v1492, %v1460
    %v1525 = vadd.f32 %v1493, %v1461
    %v1526 = vadd.f32 %v1494, %v1462
    %v1527 = vadd.f32 %v1495, %v1463
    %v1528 = vadd.f32 %v1496, %v1464
    %v1529 = vadd.f32 %v1497, %v1465
    %v1530 = vadd.f32 %v1498, %v1466
    %v1531 = vadd.f32 %v1499, %v1467
    %v1532 = vadd.f32 %v1500, %v1468
    %v1533 = vadd.f32 %v1501, %v1469
    %v1534 = vadd.f32 %v1502, %v1470
    %v1535 = vadd.f32 %v1503, %v1471
    %v1536 = vadd.f32 %v1504, %v1472
    %v1537 = vadd.f32 %v1505, %v1473
    %v1538 = vadd.f32 %v1506, %v1474
    %v1539 = vadd.f32 %v1507, %v1475
    %v1540 = vadd.f32 %v1508, %v1476
    %v1541 = vadd.f32 %v1509, %v1477
    %v1542 = vadd.f32 %v1510, %v1478
    %1543 = vst [vmem:[#allocation2] sm:$0xff] %v1511
    %1544 = vst [vmem:[#allocation2 + $0x8] sm:$0xff] %v1512
    %1545 = vst [vmem:[#allocation2 + $0x10] sm:$0xff] %v1513
    %1546 = vst [vmem:[#allocation2 + $0x18] sm:$0xff] %v1514
    %1547 = vst [vmem:[#allocation2 + $0x20] sm:$0xff] %v1515
    %1548 = vst [vmem:[#allocation2 + $0x28] sm:$0xff] %v1516
    %1549 = vst [vmem:[#allocation2 + $0x30] sm:$0xff] %v1517
    %1550 = vst [vmem:[#allocation2 + $0x38] sm:$0xff] %v1518
    %1551 = vst [vmem:[#allocation2 + $0x40] sm:$0xff] %v1519
    %1552 = vst [vmem:[#allocation2 + $0x48] sm:$0xff] %v1520
    %1553 = vst [vmem:[#allocation2 + $0x50] sm:$0xff] %v1521
    %1554 = vst [vmem:[#allocation2 + $0x58] sm:$0xff] %v1522
    %1555 = vst [vmem:[#allocation2 + $0x60] sm:$0xff] %v1523
    %1556 = vst [vmem:[#allocation2 + $0x68] sm:$0xff] %v1524
    %1557 = vst [vmem:[#allocation2 + $0x70] sm:$0xff] %v1525
    %1558 = vst [vmem:[#allocation2 + $0x78] sm:$0xff] %v1526
    %1559 = vst [vmem:[#allocation2 + $0x80] sm:$0xff] %v1527
    %1560 = vst [vmem:[#allocation2 + $0x88] sm:$0xff] %v1528
    %1561 = vst [vmem:[#allocation2 + $0x90] sm:$0xff] %v1529
    %1562 = vst [vmem:[#allocation2 + $0x98] sm:$0xff] %v1530
    %1563 = vst [vmem:[#allocation2 + $0xa0] sm:$0xff] %v1531
    %1564 = vst [vmem:[#allocation2 + $0xa8] sm:$0xff] %v1532
    %1565 = vst [vmem:[#allocation2 + $0xb0] sm:$0xff] %v1533
    %1566 = vst [vmem:[#allocation2 + $0xb8] sm:$0xff] %v1534
    %1567 = vst [vmem:[#allocation2 + $0xc0] sm:$0xff] %v1535
    %1568 = vst [vmem:[#allocation2 + $0xc8] sm:$0xff] %v1536
    %1569 = vst [vmem:[#allocation2 + $0xd0] sm:$0xff] %v1537
    %1570 = vst [vmem:[#allocation2 + $0xd8] sm:$0xff] %v1538
    %1571 = vst [vmem:[#allocation2 + $0xe0] sm:$0xff] %v1539
    %1572 = vst [vmem:[#allocation2 + $0xe8] sm:$0xff] %v1540
    %1573 = vst [vmem:[#allocation2 + $0xf0] sm:$0xff] %v1541
    %1574 = vst [vmem:[#allocation2 + $0xf8] sm:$0xff] %v1542
    %v1575 = vld [vmem:[#allocation3] sm:$0xff]
    %v1576 = vld [vmem:[#allocation3 + $0x8] sm:$0xff]
    %v1577 = vld [vmem:[#allocation3 + $0x10] sm:$0xff]
    %v1578 = vld [vmem:[#allocation3 + $0x18] sm:$0xff]
    %v1579 = vld [vmem:[#allocation3 + $0x20] sm:$0xff]
    %v1580 = vld [vmem:[#allocation3 + $0x28] sm:$0xff]
    %v1581 = vld [vmem:[#allocation3 + $0x30] sm:$0xff]
    %v1582 = vld [vmem:[#allocation3 + $0x38] sm:$0xff]
    %v1583 = vld [vmem:[#allocation3 + $0x40] sm:$0xff]
    %v1584 = vld [vmem:[#allocation3 + $0x48] sm:$0xff]
    %v1585 = vld [vmem:[#allocation3 + $0x50] sm:$0xff]
    %v1586 = vld [vmem:[#allocation3 + $0x58] sm:$0xff]
    %v1587 = vld [vmem:[#allocation3 + $0x60] sm:$0xff]
    %v1588 = vld [vmem:[#allocation3 + $0x68] sm:$0xff]
    %v1589 = vld [vmem:[#allocation3 + $0x70] sm:$0xff]
    %v1590 = vld [vmem:[#allocation3 + $0x78] sm:$0xff]
    %v1591 = vld [vmem:[#allocation3 + $0x80] sm:$0xff]
    %v1592 = vld [vmem:[#allocation3 + $0x88] sm:$0xff]
    %v1593 = vld [vmem:[#allocation3 + $0x90] sm:$0xff]
    %v1594 = vld [vmem:[#allocation3 + $0x98] sm:$0xff]
    %v1595 = vld [vmem:[#allocation3 + $0xa0] sm:$0xff]
    %v1596 = vld [vmem:[#allocation3 + $0xa8] sm:$0xff]
    %v1597 = vld [vmem:[#allocation3 + $0xb0] sm:$0xff]
    %v1598 = vld [vmem:[#allocation3 + $0xb8] sm:$0xff]
    %v1599 = vld [vmem:[#allocation3 + $0xc0] sm:$0xff]
    %v1600 = vld [vmem:[#allocation3 + $0xc8] sm:$0xff]
    %v1601 = vld [vmem:[#allocation3 + $0xd0] sm:$0xff]
    %v1602 = vld [vmem:[#allocation3 + $0xd8] sm:$0xff]
    %v1603 = vld [vmem:[#allocation3 + $0xe0] sm:$0xff]
    %v1604 = vld [vmem:[#allocation3 + $0xe8] sm:$0xff]
    %v1605 = vld [vmem:[#allocation3 + $0xf0] sm:$0xff]
    %v1606 = vld [vmem:[#allocation3 + $0xf8] sm:$0xff]
    %v1607 = vmax.f32 %v1575, %v1447
    %v1608 = vmax.f32 %v1576, %v1448
    %v1609 = vmax.f32 %v1577, %v1449
    %v1610 = vmax.f32 %v1578, %v1450
    %v1611 = vmax.f32 %v1579, %v1451
    %v1612 = vmax.f32 %v1580, %v1452
    %v1613 = vmax.f32 %v1581, %v1453
    %v1614 = vmax.f32 %v1582, %v1454
    %v1615 = vmax.f32 %v1583, %v1455
    %v1616 = vmax.f32 %v1584, %v1456
    %v1617 = vmax.f32 %v1585, %v1457
    %v1618 = vmax.f32 %v1586, %v1458
    %v1619 = vmax.f32 %v1587, %v1459
    %v1620 = vmax.f32 %v1588, %v1460
    %v1621 = vmax.f32 %v1589, %v1461
    %v1622 = vmax.f32 %v1590, %v1462
    %v1623 = vmax.f32 %v1591, %v1463
    %v1624 = vmax.f32 %v1592, %v1464
    %v1625 = vmax.f32 %v1593, %v1465
    %v1626 = vmax.f32 %v1594, %v1466
    %v1627 = vmax.f32 %v1595, %v1467
    %v1628 = vmax.f32 %v1596, %v1468
    %v1629 = vmax.f32 %v1597, %v1469
    %v1630 = vmax.f32 %v1598, %v1470
    %v1631 = vmax.f32 %v1599, %v1471
    %v1632 = vmax.f32 %v1600, %v1472
    %v1633 = vmax.f32 %v1601, %v1473
    %v1634 = vmax.f32 %v1602, %v1474
    %v1635 = vmax.f32 %v1603, %v1475
    %v1636 = vmax.f32 %v1604, %v1476
    %v1637 = vmax.f32 %v1605, %v1477
    %v1638 = vmax.f32 %v1606, %v1478
    %1639 = vst [vmem:[#allocation3] sm:$0xff] %v1607
    %1640 = vst [vmem:[#allocation3 + $0x8] sm:$0xff] %v1608
    %1641 = vst [vmem:[#allocation3 + $0x10] sm:$0xff] %v1609
    %1642 = vst [vmem:[#allocation3 + $0x18] sm:$0xff] %v1610
    %1643 = vst [vmem:[#allocation3 + $0x20] sm:$0xff] %v1611
    %1644 = vst [vmem:[#allocation3 + $0x28] sm:$0xff] %v1612
    %1645 = vst [vmem:[#allocation3 + $0x30] sm:$0xff] %v1613
    %1646 = vst [vmem:[#allocation3 + $0x38] sm:$0xff] %v1614
    %1647 = vst [vmem:[#allocation3 + $0x40] sm:$0xff] %v1615
    %1648 = vst [vmem:[#allocation3 + $0x48] sm:$0xff] %v1616
    %1649 = vst [vmem:[#allocation3 + $0x50] sm:$0xff] %v1617
    %1650 = vst [vmem:[#allocation3 + $0x58] sm:$0xff] %v1618
    %1651 = vst [vmem:[#allocation3 + $0x60] sm:$0xff] %v1619
    %1652 = vst [vmem:[#allocation3 + $0x68] sm:$0xff] %v1620
    %1653 = vst [vmem:[#allocation3 + $0x70] sm:$0xff] %v1621
    %1654 = vst [vmem:[#allocation3 + $0x78] sm:$0xff] %v1622
    %1655 = vst [vmem:[#allocation3 + $0x80] sm:$0xff] %v1623
    %1656 = vst [vmem:[#allocation3 + $0x88] sm:$0xff] %v1624
    %1657 = vst [vmem:[#allocation3 + $0x90] sm:$0xff] %v1625
    %1658 = vst [vmem:[#allocation3 + $0x98] sm:$0xff] %v1626
    %1659 = vst [vmem:[#allocation3 + $0xa0] sm:$0xff] %v1627
    %1660 = vst [vmem:[#allocation3 + $0xa8] sm:$0xff] %v1628
    %1661 = vst [vmem:[#allocation3 + $0xb0] sm:$0xff] %v1629
    %1662 = vst [vmem:[#allocation3 + $0xb8] sm:$0xff] %v1630
    %1663 = vst [vmem:[#allocation3 + $0xc0] sm:$0xff] %v1631
    %1664 = vst [vmem:[#allocation3 + $0xc8] sm:$0xff] %v1632
    %1665 = vst [vmem:[#allocation3 + $0xd0] sm:$0xff] %v1633
    %1666 = vst [vmem:[#allocation3 + $0xd8] sm:$0xff] %v1634
    %1667 = vst [vmem:[#allocation3 + $0xe0] sm:$0xff] %v1635
    %1668 = vst [vmem:[#allocation3 + $0xe8] sm:$0xff] %v1636
    %1669 = vst [vmem:[#allocation3 + $0xf0] sm:$0xff] %v1637
    %1670 = vst [vmem:[#allocation3 + $0xf8] sm:$0xff] %v1638
    %v1671 = vld [vmem:[#allocation4 + $0x38] sm:$0xff]
    %v1672 = vld [vmem:[#allocation4 + $0x78] sm:$0xff]
    %v1673 = vld [vmem:[#allocation4 + $0xb8] sm:$0xff]
    %v1674 = vld [vmem:[#allocation4 + $0xf8] sm:$0xff]
    %v1675 = vld [vmem:[#allocation4 + $0x138] sm:$0xff]
    %v1676 = vld [vmem:[#allocation4 + $0x178] sm:$0xff]
    %v1677 = vld [vmem:[#allocation4 + $0x1b8] sm:$0xff]
    %v1678 = vld [vmem:[#allocation4 + $0x1f8] sm:$0xff]
    %v1679 = vld [vmem:[#allocation4 + $0x238] sm:$0xff]
    %v1680 = vld [vmem:[#allocation4 + $0x278] sm:$0xff]
    %v1681 = vld [vmem:[#allocation4 + $0x2b8] sm:$0xff]
    %v1682 = vld [vmem:[#allocation4 + $0x2f8] sm:$0xff]
    %v1683 = vld [vmem:[#allocation4 + $0x338] sm:$0xff]
    %v1684 = vld [vmem:[#allocation4 + $0x378] sm:$0xff]
    %v1685 = vld [vmem:[#allocation4 + $0x3b8] sm:$0xff]
    %v1686 = vld [vmem:[#allocation4 + $0x3f8] sm:$0xff]
    %v1687 = vld [vmem:[#allocation4 + $0x438] sm:$0xff]
    %v1688 = vld [vmem:[#allocation4 + $0x478] sm:$0xff]
    %v1689 = vld [vmem:[#allocation4 + $0x4b8] sm:$0xff]
    %v1690 = vld [vmem:[#allocation4 + $0x4f8] sm:$0xff]
    %v1691 = vld [vmem:[#allocation4 + $0x538] sm:$0xff]
    %v1692 = vld [vmem:[#allocation4 + $0x578] sm:$0xff]
    %v1693 = vld [vmem:[#allocation4 + $0x5b8] sm:$0xff]
    %v1694 = vld [vmem:[#allocation4 + $0x5f8] sm:$0xff]
    %v1695 = vld [vmem:[#allocation4 + $0x638] sm:$0xff]
    %v1696 = vld [vmem:[#allocation4 + $0x678] sm:$0xff]
    %v1697 = vld [vmem:[#allocation4 + $0x6b8] sm:$0xff]
    %v1698 = vld [vmem:[#allocation4 + $0x6f8] sm:$0xff]
    %v1699 = vld [vmem:[#allocation4 + $0x738] sm:$0xff]
    %v1700 = vld [vmem:[#allocation4 + $0x778] sm:$0xff]
    %v1701 = vld [vmem:[#allocation4 + $0x7b8] sm:$0xff]
    %v1702 = vld [vmem:[#allocation4 + $0x7f8] sm:$0xff]
    %v1703 = vld [vmem:[#allocation2] sm:$0xff]
    %v1704 = vld [vmem:[#allocation2 + $0x8] sm:$0xff]
    %v1705 = vld [vmem:[#allocation2 + $0x10] sm:$0xff]
    %v1706 = vld [vmem:[#allocation2 + $0x18] sm:$0xff]
    %v1707 = vld [vmem:[#allocation2 + $0x20] sm:$0xff]
    %v1708 = vld [vmem:[#allocation2 + $0x28] sm:$0xff]
    %v1709 = vld [vmem:[#allocation2 + $0x30] sm:$0xff]
    %v1710 = vld [vmem:[#allocation2 + $0x38] sm:$0xff]
    %v1711 = vld [vmem:[#allocation2 + $0x40] sm:$0xff]
    %v1712 = vld [vmem:[#allocation2 + $0x48] sm:$0xff]
    %v1713 = vld [vmem:[#allocation2 + $0x50] sm:$0xff]
    %v1714 = vld [vmem:[#allocation2 + $0x58] sm:$0xff]
    %v1715 = vld [vmem:[#allocation2 + $0x60] sm:$0xff]
    %v1716 = vld [vmem:[#allocation2 + $0x68] sm:$0xff]
    %v1717 = vld [vmem:[#allocation2 + $0x70] sm:$0xff]
    %v1718 = vld [vmem:[#allocation2 + $0x78] sm:$0xff]
    %v1719 = vld [vmem:[#allocation2 + $0x80] sm:$0xff]
    %v1720 = vld [vmem:[#allocation2 + $0x88] sm:$0xff]
    %v1721 = vld [vmem:[#allocation2 + $0x90] sm:$0xff]
    %v1722 = vld [vmem:[#allocation2 + $0x98] sm:$0xff]
    %v1723 = vld [vmem:[#allocation2 + $0xa0] sm:$0xff]
    %v1724 = vld [vmem:[#allocation2 + $0xa8] sm:$0xff]
    %v1725 = vld [vmem:[#allocation2 + $0xb0] sm:$0xff]
    %v1726 = vld [vmem:[#allocation2 + $0xb8] sm:$0xff]
    %v1727 = vld [vmem:[#allocation2 + $0xc0] sm:$0xff]
    %v1728 = vld [vmem:[#allocation2 + $0xc8] sm:$0xff]
    %v1729 = vld [vmem:[#allocation2 + $0xd0] sm:$0xff]
    %v1730 = vld [vmem:[#allocation2 + $0xd8] sm:$0xff]
    %v1731 = vld [vmem:[#allocation2 + $0xe0] sm:$0xff]
    %v1732 = vld [vmem:[#allocation2 + $0xe8] sm:$0xff]
    %v1733 = vld [vmem:[#allocation2 + $0xf0] sm:$0xff]
    %v1734 = vld [vmem:[#allocation2 + $0xf8] sm:$0xff]
    %v1735 = vadd.f32 %v1703, %v1671
    %v1736 = vadd.f32 %v1704, %v1672
    %v1737 = vadd.f32 %v1705, %v1673
    %v1738 = vadd.f32 %v1706, %v1674
    %v1739 = vadd.f32 %v1707, %v1675
    %v1740 = vadd.f32 %v1708, %v1676
    %v1741 = vadd.f32 %v1709, %v1677
    %v1742 = vadd.f32 %v1710, %v1678
    %v1743 = vadd.f32 %v1711, %v1679
    %v1744 = vadd.f32 %v1712, %v1680
    %v1745 = vadd.f32 %v1713, %v1681
    %v1746 = vadd.f32 %v1714, %v1682
    %v1747 = vadd.f32 %v1715, %v1683
    %v1748 = vadd.f32 %v1716, %v1684
    %v1749 = vadd.f32 %v1717, %v1685
    %v1750 = vadd.f32 %v1718, %v1686
    %v1751 = vadd.f32 %v1719, %v1687
    %v1752 = vadd.f32 %v1720, %v1688
    %v1753 = vadd.f32 %v1721, %v1689
    %v1754 = vadd.f32 %v1722, %v1690
    %v1755 = vadd.f32 %v1723, %v1691
    %v1756 = vadd.f32 %v1724, %v1692
    %v1757 = vadd.f32 %v1725, %v1693
    %v1758 = vadd.f32 %v1726, %v1694
    %v1759 = vadd.f32 %v1727, %v1695
    %v1760 = vadd.f32 %v1728, %v1696
    %v1761 = vadd.f32 %v1729, %v1697
    %v1762 = vadd.f32 %v1730, %v1698
    %v1763 = vadd.f32 %v1731, %v1699
    %v1764 = vadd.f32 %v1732, %v1700
    %v1765 = vadd.f32 %v1733, %v1701
    %v1766 = vadd.f32 %v1734, %v1702
    %1767 = vst [vmem:[#allocation2] sm:$0xff] %v1735
    %1768 = vst [vmem:[#allocation2 + $0x8] sm:$0xff] %v1736
    %1769 = vst [vmem:[#allocation2 + $0x10] sm:$0xff] %v1737
    %1770 = vst [vmem:[#allocation2 + $0x18] sm:$0xff] %v1738
    %1771 = vst [vmem:[#allocation2 + $0x20] sm:$0xff] %v1739
    %1772 = vst [vmem:[#allocation2 + $0x28] sm:$0xff] %v1740
    %1773 = vst [vmem:[#allocation2 + $0x30] sm:$0xff] %v1741
    %1774 = vst [vmem:[#allocation2 + $0x38] sm:$0xff] %v1742
    %1775 = vst [vmem:[#allocation2 + $0x40] sm:$0xff] %v1743
    %1776 = vst [vmem:[#allocation2 + $0x48] sm:$0xff] %v1744
    %1777 = vst [vmem:[#allocation2 + $0x50] sm:$0xff] %v1745
    %1778 = vst [vmem:[#allocation2 + $0x58] sm:$0xff] %v1746
    %1779 = vst [vmem:[#allocation2 + $0x60] sm:$0xff] %v1747
    %1780 = vst [vmem:[#allocation2 + $0x68] sm:$0xff] %v1748
    %1781 = vst [vmem:[#allocation2 + $0x70] sm:$0xff] %v1749
    %1782 = vst [vmem:[#allocation2 + $0x78] sm:$0xff] %v1750
    %1783 = vst [vmem:[#allocation2 + $0x80] sm:$0xff] %v1751
    %1784 = vst [vmem:[#allocation2 + $0x88] sm:$0xff] %v1752
    %1785 = vst [vmem:[#allocation2 + $0x90] sm:$0xff] %v1753
    %1786 = vst [vmem:[#allocation2 + $0x98] sm:$0xff] %v1754
    %1787 = vst [vmem:[#allocation2 + $0xa0] sm:$0xff] %v1755
    %1788 = vst [vmem:[#allocation2 + $0xa8] sm:$0xff] %v1756
    %1789 = vst [vmem:[#allocation2 + $0xb0] sm:$0xff] %v1757
    %1790 = vst [vmem:[#allocation2 + $0xb8] sm:$0xff] %v1758
    %1791 = vst [vmem:[#allocation2 + $0xc0] sm:$0xff] %v1759
    %1792 = vst [vmem:[#allocation2 + $0xc8] sm:$0xff] %v1760
    %1793 = vst [vmem:[#allocation2 + $0xd0] sm:$0xff] %v1761
    %1794 = vst [vmem:[#allocation2 + $0xd8] sm:$0xff] %v1762
    %1795 = vst [vmem:[#allocation2 + $0xe0] sm:$0xff] %v1763
    %1796 = vst [vmem:[#allocation2 + $0xe8] sm:$0xff] %v1764
    %1797 = vst [vmem:[#allocation2 + $0xf0] sm:$0xff] %v1765
    %1798 = vst [vmem:[#allocation2 + $0xf8] sm:$0xff] %v1766
    %v1799 = vld [vmem:[#allocation3] sm:$0xff]
    %v1800 = vld [vmem:[#allocation3 + $0x8] sm:$0xff]
    %v1801 = vld [vmem:[#allocation3 + $0x10] sm:$0xff]
    %v1802 = vld [vmem:[#allocation3 + $0x18] sm:$0xff]
    %v1803 = vld [vmem:[#allocation3 + $0x20] sm:$0xff]
    %v1804 = vld [vmem:[#allocation3 + $0x28] sm:$0xff]
    %v1805 = vld [vmem:[#allocation3 + $0x30] sm:$0xff]
    %v1806 = vld [vmem:[#allocation3 + $0x38] sm:$0xff]
    %v1807 = vld [vmem:[#allocation3 + $0x40] sm:$0xff]
    %v1808 = vld [vmem:[#allocation3 + $0x48] sm:$0xff]
    %v1809 = vld [vmem:[#allocation3 + $0x50] sm:$0xff]
    %v1810 = vld [vmem:[#allocation3 + $0x58] sm:$0xff]
    %v1811 = vld [vmem:[#allocation3 + $0x60] sm:$0xff]
    %v1812 = vld [vmem:[#allocation3 + $0x68] sm:$0xff]
    %v1813 = vld [vmem:[#allocation3 + $0x70] sm:$0xff]
    %v1814 = vld [vmem:[#allocation3 + $0x78] sm:$0xff]
    %v1815 = vld [vmem:[#allocation3 + $0x80] sm:$0xff]
    %v1816 = vld [vmem:[#allocation3 + $0x88] sm:$0xff]
    %v1817 = vld [vmem:[#allocation3 + $0x90] sm:$0xff]
    %v1818 = vld [vmem:[#allocation3 + $0x98] sm:$0xff]
    %v1819 = vld [vmem:[#allocation3 + $0xa0] sm:$0xff]
    %v1820 = vld [vmem:[#allocation3 + $0xa8] sm:$0xff]
    %v1821 = vld [vmem:[#allocation3 + $0xb0] sm:$0xff]
    %v1822 = vld [vmem:[#allocation3 + $0xb8] sm:$0xff]
    %v1823 = vld [vmem:[#allocation3 + $0xc0] sm:$0xff]
    %v1824 = vld [vmem:[#allocation3 + $0xc8] sm:$0xff]
    %v1825 = vld [vmem:[#allocation3 + $0xd0] sm:$0xff]
    %v1826 = vld [vmem:[#allocation3 + $0xd8] sm:$0xff]
    %v1827 = vld [vmem:[#allocation3 + $0xe0] sm:$0xff]
    %v1828 = vld [vmem:[#allocation3 + $0xe8] sm:$0xff]
    %v1829 = vld [vmem:[#allocation3 + $0xf0] sm:$0xff]
    %v1830 = vld [vmem:[#allocation3 + $0xf8] sm:$0xff]
    %v1831 = vmax.f32 %v1799, %v1671
    %v1832 = vmax.f32 %v1800, %v1672
    %v1833 = vmax.f32 %v1801, %v1673
    %v1834 = vmax.f32 %v1802, %v1674
    %v1835 = vmax.f32 %v1803, %v1675
    %v1836 = vmax.f32 %v1804, %v1676
    %v1837 = vmax.f32 %v1805, %v1677
    %v1838 = vmax.f32 %v1806, %v1678
    %v1839 = vmax.f32 %v1807, %v1679
    %v1840 = vmax.f32 %v1808, %v1680
    %v1841 = vmax.f32 %v1809, %v1681
    %v1842 = vmax.f32 %v1810, %v1682
    %v1843 = vmax.f32 %v1811, %v1683
    %v1844 = vmax.f32 %v1812, %v1684
    %v1845 = vmax.f32 %v1813, %v1685
    %v1846 = vmax.f32 %v1814, %v1686
    %v1847 = vmax.f32 %v1815, %v1687
    %v1848 = vmax.f32 %v1816, %v1688
    %v1849 = vmax.f32 %v1817, %v1689
    %v1850 = vmax.f32 %v1818, %v1690
    %v1851 = vmax.f32 %v1819, %v1691
    %v1852 = vmax.f32 %v1820, %v1692
    %v1853 = vmax.f32 %v1821, %v1693
    %v1854 = vmax.f32 %v1822, %v1694
    %v1855 = vmax.f32 %v1823, %v1695
    %v1856 = vmax.f32 %v1824, %v1696
    %v1857 = vmax.f32 %v1825, %v1697
    %v1858 = vmax.f32 %v1826, %v1698
    %v1859 = vmax.f32 %v1827, %v1699
    %v1860 = vmax.f32 %v1828, %v1700
    %v1861 = vmax.f32 %v1829, %v1701
    %v1862 = vmax.f32 %v1830, %v1702
    %1863 = vst [vmem:[#allocation3] sm:$0xff] %v1831
    %1864 = vst [vmem:[#allocation3 + $0x8] sm:$0xff] %v1832
    %1865 = vst [vmem:[#allocation3 + $0x10] sm:$0xff] %v1833
    %1866 = vst [vmem:[#allocation3 + $0x18] sm:$0xff] %v1834
    %1867 = vst [vmem:[#allocation3 + $0x20] sm:$0xff] %v1835
    %1868 = vst [vmem:[#allocation3 + $0x28] sm:$0xff] %v1836
    %1869 = vst [vmem:[#allocation3 + $0x30] sm:$0xff] %v1837
    %1870 = vst [vmem:[#allocation3 + $0x38] sm:$0xff] %v1838
    %1871 = vst [vmem:[#allocation3 + $0x40] sm:$0xff] %v1839
    %1872 = vst [vmem:[#allocation3 + $0x48] sm:$0xff] %v1840
    %1873 = vst [vmem:[#allocation3 + $0x50] sm:$0xff] %v1841
    %1874 = vst [vmem:[#allocation3 + $0x58] sm:$0xff] %v1842
    %1875 = vst [vmem:[#allocation3 + $0x60] sm:$0xff] %v1843
    %1876 = vst [vmem:[#allocation3 + $0x68] sm:$0xff] %v1844
    %1877 = vst [vmem:[#allocation3 + $0x70] sm:$0xff] %v1845
    %1878 = vst [vmem:[#allocation3 + $0x78] sm:$0xff] %v1846
    %1879 = vst [vmem:[#allocation3 + $0x80] sm:$0xff] %v1847
    %1880 = vst [vmem:[#allocation3 + $0x88] sm:$0xff] %v1848
    %1881 = vst [vmem:[#allocation3 + $0x90] sm:$0xff] %v1849
    %1882 = vst [vmem:[#allocation3 + $0x98] sm:$0xff] %v1850
    %1883 = vst [vmem:[#allocation3 + $0xa0] sm:$0xff] %v1851
    %1884 = vst [vmem:[#allocation3 + $0xa8] sm:$0xff] %v1852
    %1885 = vst [vmem:[#allocation3 + $0xb0] sm:$0xff] %v1853
    %1886 = vst [vmem:[#allocation3 + $0xb8] sm:$0xff] %v1854
    %1887 = vst [vmem:[#allocation3 + $0xc0] sm:$0xff] %v1855
    %1888 = vst [vmem:[#allocation3 + $0xc8] sm:$0xff] %v1856
    %1889 = vst [vmem:[#allocation3 + $0xd0] sm:$0xff] %v1857
    %1890 = vst [vmem:[#allocation3 + $0xd8] sm:$0xff] %v1858
    %1891 = vst [vmem:[#allocation3 + $0xe0] sm:$0xff] %v1859
    %1892 = vst [vmem:[#allocation3 + $0xe8] sm:$0xff] %v1860
    %1893 = vst [vmem:[#allocation3 + $0xf0] sm:$0xff] %v1861
    %1894 = vst [vmem:[#allocation3 + $0xf8] sm:$0xff] %v1862
    // Predicated region
    $region30: #{tpu_custom_call.1} parent=1 // pred_check
      %p1895 = pneg %p35
    $region31: #{tpu_custom_call.1} parent=1 // pred_check_branch
      %1897 = sbr.rel (%p1895) target = $region33
    $region32: #{tpu_custom_call.1} parent=1 // pred_region
      %v1898 = vld [vmem:[#allocation2] sm:$0xff]
      %v1899 = vld [vmem:[#allocation2 + $0x8] sm:$0xff]
      %v1900 = vld [vmem:[#allocation2 + $0x10] sm:$0xff]
      %v1901 = vld [vmem:[#allocation2 + $0x18] sm:$0xff]
      %v1902 = vld [vmem:[#allocation2 + $0x20] sm:$0xff]
      %v1903 = vld [vmem:[#allocation2 + $0x28] sm:$0xff]
      %v1904 = vld [vmem:[#allocation2 + $0x30] sm:$0xff]
      %v1905 = vld [vmem:[#allocation2 + $0x38] sm:$0xff]
      %v1906 = vld [vmem:[#allocation2 + $0x40] sm:$0xff]
      %v1907 = vld [vmem:[#allocation2 + $0x48] sm:$0xff]
      %v1908 = vld [vmem:[#allocation2 + $0x50] sm:$0xff]
      %v1909 = vld [vmem:[#allocation2 + $0x58] sm:$0xff]
      %v1910 = vld [vmem:[#allocation2 + $0x60] sm:$0xff]
      %v1911 = vld [vmem:[#allocation2 + $0x68] sm:$0xff]
      %v1912 = vld [vmem:[#allocation2 + $0x70] sm:$0xff]
      %v1913 = vld [vmem:[#allocation2 + $0x78] sm:$0xff]
      %v1914 = vld [vmem:[#allocation2 + $0x80] sm:$0xff]
      %v1915 = vld [vmem:[#allocation2 + $0x88] sm:$0xff]
      %v1916 = vld [vmem:[#allocation2 + $0x90] sm:$0xff]
      %v1917 = vld [vmem:[#allocation2 + $0x98] sm:$0xff]
      %v1918 = vld [vmem:[#allocation2 + $0xa0] sm:$0xff]
      %v1919 = vld [vmem:[#allocation2 + $0xa8] sm:$0xff]
      %v1920 = vld [vmem:[#allocation2 + $0xb0] sm:$0xff]
      %v1921 = vld [vmem:[#allocation2 + $0xb8] sm:$0xff]
      %v1922 = vld [vmem:[#allocation2 + $0xc0] sm:$0xff]
      %v1923 = vld [vmem:[#allocation2 + $0xc8] sm:$0xff]
      %v1924 = vld [vmem:[#allocation2 + $0xd0] sm:$0xff]
      %v1925 = vld [vmem:[#allocation2 + $0xd8] sm:$0xff]
      %v1926 = vld [vmem:[#allocation2 + $0xe0] sm:$0xff]
      %v1927 = vld [vmem:[#allocation2 + $0xe8] sm:$0xff]
      %v1928 = vld [vmem:[#allocation2 + $0xf0] sm:$0xff]
      %v1929 = vld [vmem:[#allocation2 + $0xf8] sm:$0xff]
      %1930 = vadd.xlane.f32.xlu0 %v1898
      %v1931 = vpop.xlane.xlu0 %1930
      %1932 = vadd.xlane.f32.xlu0 %v1899
      %v1933 = vpop.xlane.xlu0 %1932
      %1934 = vadd.xlane.f32.xlu0 %v1900
      %v1935 = vpop.xlane.xlu0 %1934
      %1936 = vadd.xlane.f32.xlu0 %v1901
      %v1937 = vpop.xlane.xlu0 %1936
      %1938 = vadd.xlane.f32.xlu0 %v1902
      %v1939 = vpop.xlane.xlu0 %1938
      %1940 = vadd.xlane.f32.xlu0 %v1903
      %v1941 = vpop.xlane.xlu0 %1940
      %1942 = vadd.xlane.f32.xlu0 %v1904
      %v1943 = vpop.xlane.xlu0 %1942
      %1944 = vadd.xlane.f32.xlu0 %v1905
      %v1945 = vpop.xlane.xlu0 %1944
      %1946 = vadd.xlane.f32.xlu0 %v1906
      %v1947 = vpop.xlane.xlu0 %1946
      %1948 = vadd.xlane.f32.xlu0 %v1907
      %v1949 = vpop.xlane.xlu0 %1948
      %1950 = vadd.xlane.f32.xlu0 %v1908
      %v1951 = vpop.xlane.xlu0 %1950
      %1952 = vadd.xlane.f32.xlu0 %v1909
      %v1953 = vpop.xlane.xlu0 %1952
      %1954 = vadd.xlane.f32.xlu0 %v1910
      %v1955 = vpop.xlane.xlu0 %1954
      %1956 = vadd.xlane.f32.xlu0 %v1911
      %v1957 = vpop.xlane.xlu0 %1956
      %1958 = vadd.xlane.f32.xlu0 %v1912
      %v1959 = vpop.xlane.xlu0 %1958
      %1960 = vadd.xlane.f32.xlu0 %v1913
      %v1961 = vpop.xlane.xlu0 %1960
      %1962 = vadd.xlane.f32.xlu0 %v1914
      %v1963 = vpop.xlane.xlu0 %1962
      %1964 = vadd.xlane.f32.xlu0 %v1915
      %v1965 = vpop.xlane.xlu0 %1964
      %1966 = vadd.xlane.f32.xlu0 %v1916
      %v1967 = vpop.xlane.xlu0 %1966
      %1968 = vadd.xlane.f32.xlu0 %v1917
      %v1969 = vpop.xlane.xlu0 %1968
      %1970 = vadd.xlane.f32.xlu0 %v1918
      %v1971 = vpop.xlane.xlu0 %1970
      %1972 = vadd.xlane.f32.xlu0 %v1919
      %v1973 = vpop.xlane.xlu0 %1972
      %1974 = vadd.xlane.f32.xlu0 %v1920
      %v1975 = vpop.xlane.xlu0 %1974
      %1976 = vadd.xlane.f32.xlu0 %v1921
      %v1977 = vpop.xlane.xlu0 %1976
      %1978 = vadd.xlane.f32.xlu0 %v1922
      %v1979 = vpop.xlane.xlu0 %1978
      %1980 = vadd.xlane.f32.xlu0 %v1923
      %v1981 = vpop.xlane.xlu0 %1980
      %1982 = vadd.xlane.f32.xlu0 %v1924
      %v1983 = vpop.xlane.xlu0 %1982
      %1984 = vadd.xlane.f32.xlu0 %v1925
      %v1985 = vpop.xlane.xlu0 %1984
      %1986 = vadd.xlane.f32.xlu0 %v1926
      %v1987 = vpop.xlane.xlu0 %1986
      %1988 = vadd.xlane.f32.xlu0 %v1927
      %v1989 = vpop.xlane.xlu0 %1988
      %1990 = vadd.xlane.f32.xlu0 %v1928
      %v1991 = vpop.xlane.xlu0 %1990
      %1992 = vadd.xlane.f32.xlu0 %v1929
      %v1993 = vpop.xlane.xlu0 %1992
      %v1994 = vmul.f32 %v1931, 0.0009765625
      %v1995 = vmul.f32 %v1933, 0.0009765625
      %v1996 = vmul.f32 %v1935, 0.0009765625
      %v1997 = vmul.f32 %v1937, 0.0009765625
      %v1998 = vmul.f32 %v1939, 0.0009765625
      %v1999 = vmul.f32 %v1941, 0.0009765625
      %v2000 = vmul.f32 %v1943, 0.0009765625
      %v2001 = vmul.f32 %v1945, 0.0009765625
      %v2002 = vmul.f32 %v1947, 0.0009765625
      %v2003 = vmul.f32 %v1949, 0.0009765625
      %v2004 = vmul.f32 %v1951, 0.0009765625
      %v2005 = vmul.f32 %v1953, 0.0009765625
      %v2006 = vmul.f32 %v1955, 0.0009765625
      %v2007 = vmul.f32 %v1957, 0.0009765625
      %v2008 = vmul.f32 %v1959, 0.0009765625
      %v2009 = vmul.f32 %v1961, 0.0009765625
      %v2010 = vmul.f32 %v1963, 0.0009765625
      %v2011 = vmul.f32 %v1965, 0.0009765625
      %v2012 = vmul.f32 %v1967, 0.0009765625
      %v2013 = vmul.f32 %v1969, 0.0009765625
      %v2014 = vmul.f32 %v1971, 0.0009765625
      %v2015 = vmul.f32 %v1973, 0.0009765625
      %v2016 = vmul.f32 %v1975, 0.0009765625
      %v2017 = vmul.f32 %v1977, 0.0009765625
      %v2018 = vmul.f32 %v1979, 0.0009765625
      %v2019 = vmul.f32 %v1981, 0.0009765625
      %v2020 = vmul.f32 %v1983, 0.0009765625
      %v2021 = vmul.f32 %v1985, 0.0009765625
      %v2022 = vmul.f32 %v1987, 0.0009765625
      %v2023 = vmul.f32 %v1989, 0.0009765625
      %v2024 = vmul.f32 %v1991, 0.0009765625
      %v2025 = vmul.f32 %v1993, 0.0009765625
      %v2026 = vld [vmem:[#allocation3] sm:$0xff]
      %v2027 = vld [vmem:[#allocation3 + $0x8] sm:$0xff]
      %v2028 = vld [vmem:[#allocation3 + $0x10] sm:$0xff]
      %v2029 = vld [vmem:[#allocation3 + $0x18] sm:$0xff]
      %v2030 = vld [vmem:[#allocation3 + $0x20] sm:$0xff]
      %v2031 = vld [vmem:[#allocation3 + $0x28] sm:$0xff]
      %v2032 = vld [vmem:[#allocation3 + $0x30] sm:$0xff]
      %v2033 = vld [vmem:[#allocation3 + $0x38] sm:$0xff]
      %v2034 = vld [vmem:[#allocation3 + $0x40] sm:$0xff]
      %v2035 = vld [vmem:[#allocation3 + $0x48] sm:$0xff]
      %v2036 = vld [vmem:[#allocation3 + $0x50] sm:$0xff]
      %v2037 = vld [vmem:[#allocation3 + $0x58] sm:$0xff]
      %v2038 = vld [vmem:[#allocation3 + $0x60] sm:$0xff]
      %v2039 = vld [vmem:[#allocation3 + $0x68] sm:$0xff]
      %v2040 = vld [vmem:[#allocation3 + $0x70] sm:$0xff]
      %v2041 = vld [vmem:[#allocation3 + $0x78] sm:$0xff]
      %v2042 = vld [vmem:[#allocation3 + $0x80] sm:$0xff]
      %v2043 = vld [vmem:[#allocation3 + $0x88] sm:$0xff]
      %v2044 = vld [vmem:[#allocation3 + $0x90] sm:$0xff]
      %v2045 = vld [vmem:[#allocation3 + $0x98] sm:$0xff]
      %v2046 = vld [vmem:[#allocation3 + $0xa0] sm:$0xff]
      %v2047 = vld [vmem:[#allocation3 + $0xa8] sm:$0xff]
      %v2048 = vld [vmem:[#allocation3 + $0xb0] sm:$0xff]
      %v2049 = vld [vmem:[#allocation3 + $0xb8] sm:$0xff]
      %v2050 = vld [vmem:[#allocation3 + $0xc0] sm:$0xff]
      %v2051 = vld [vmem:[#allocation3 + $0xc8] sm:$0xff]
      %v2052 = vld [vmem:[#allocation3 + $0xd0] sm:$0xff]
      %v2053 = vld [vmem:[#allocation3 + $0xd8] sm:$0xff]
      %v2054 = vld [vmem:[#allocation3 + $0xe0] sm:$0xff]
      %v2055 = vld [vmem:[#allocation3 + $0xe8] sm:$0xff]
      %v2056 = vld [vmem:[#allocation3 + $0xf0] sm:$0xff]
      %v2057 = vld [vmem:[#allocation3 + $0xf8] sm:$0xff]
      %2058 = vmax.xlane.f32.xlu0 %v2026
      %v2059 = vpop.xlane.xlu0 %2058
      %2060 = vmax.xlane.f32.xlu0 %v2027
      %v2061 = vpop.xlane.xlu0 %2060
      %2062 = vmax.xlane.f32.xlu0 %v2028
      %v2063 = vpop.xlane.xlu0 %2062
      %2064 = vmax.xlane.f32.xlu0 %v2029
      %v2065 = vpop.xlane.xlu0 %2064
      %2066 = vmax.xlane.f32.xlu0 %v2030
      %v2067 = vpop.xlane.xlu0 %2066
      %2068 = vmax.xlane.f32.xlu0 %v2031
      %v2069 = vpop.xlane.xlu0 %2068
      %2070 = vmax.xlane.f32.xlu0 %v2032
      %v2071 = vpop.xlane.xlu0 %2070
      %2072 = vmax.xlane.f32.xlu0 %v2033
      %v2073 = vpop.xlane.xlu0 %2072
      %2074 = vmax.xlane.f32.xlu0 %v2034
      %v2075 = vpop.xlane.xlu0 %2074
      %2076 = vmax.xlane.f32.xlu0 %v2035
      %v2077 = vpop.xlane.xlu0 %2076
      %2078 = vmax.xlane.f32.xlu0 %v2036
      %v2079 = vpop.xlane.xlu0 %2078
      %2080 = vmax.xlane.f32.xlu0 %v2037
      %v2081 = vpop.xlane.xlu0 %2080
      %2082 = vmax.xlane.f32.xlu0 %v2038
      %v2083 = vpop.xlane.xlu0 %2082
      %2084 = vmax.xlane.f32.xlu0 %v2039
      %v2085 = vpop.xlane.xlu0 %2084
      %2086 = vmax.xlane.f32.xlu0 %v2040
      %v2087 = vpop.xlane.xlu0 %2086
      %2088 = vmax.xlane.f32.xlu0 %v2041
      %v2089 = vpop.xlane.xlu0 %2088
      %2090 = vmax.xlane.f32.xlu0 %v2042
      %v2091 = vpop.xlane.xlu0 %2090
      %2092 = vmax.xlane.f32.xlu0 %v2043
      %v2093 = vpop.xlane.xlu0 %2092
      %2094 = vmax.xlane.f32.xlu0 %v2044
      %v2095 = vpop.xlane.xlu0 %2094
      %2096 = vmax.xlane.f32.xlu0 %v2045
      %v2097 = vpop.xlane.xlu0 %2096
      %2098 = vmax.xlane.f32.xlu0 %v2046
      %v2099 = vpop.xlane.xlu0 %2098
      %2100 = vmax.xlane.f32.xlu0 %v2047
      %v2101 = vpop.xlane.xlu0 %2100
      %2102 = vmax.xlane.f32.xlu0 %v2048
      %v2103 = vpop.xlane.xlu0 %2102
      %2104 = vmax.xlane.f32.xlu0 %v2049
      %v2105 = vpop.xlane.xlu0 %2104
      %2106 = vmax.xlane.f32.xlu0 %v2050
      %v2107 = vpop.xlane.xlu0 %2106
      %2108 = vmax.xlane.f32.xlu0 %v2051
      %v2109 = vpop.xlane.xlu0 %2108
      %2110 = vmax.xlane.f32.xlu0 %v2052
      %v2111 = vpop.xlane.xlu0 %2110
      %2112 = vmax.xlane.f32.xlu0 %v2053
      %v2113 = vpop.xlane.xlu0 %2112
      %2114 = vmax.xlane.f32.xlu0 %v2054
      %v2115 = vpop.xlane.xlu0 %2114
      %2116 = vmax.xlane.f32.xlu0 %v2055
      %v2117 = vpop.xlane.xlu0 %2116
      %2118 = vmax.xlane.f32.xlu0 %v2056
      %v2119 = vpop.xlane.xlu0 %2118
      %2120 = vmax.xlane.f32.xlu0 %v2057
      %v2121 = vpop.xlane.xlu0 %2120
      %v2122 = vld [vmem:[%s1] sm:$0xff]
      %v2123 = vld [vmem:[%s1 + $0x8] sm:$0xff]
      %v2124 = vld [vmem:[%s1 + $0x10] sm:$0xff]
      %v2125 = vld [vmem:[%s1 + $0x18] sm:$0xff]
      %v2126 = vld [vmem:[%s1 + $0x20] sm:$0xff]
      %v2127 = vld [vmem:[%s1 + $0x28] sm:$0xff]
      %v2128 = vld [vmem:[%s1 + $0x30] sm:$0xff]
      %v2129 = vld [vmem:[%s1 + $0x38] sm:$0xff]
      %v2130 = vld [vmem:[%s2] sm:$0x1]
      %v2131 = vld [vmem:[%s3] sm:$0xf]
      %v2132 = vld [vmem:[%s4] sm:$0x1]
      %v2134 = vlaneseq
      %v2135 = vshrl.u32 %v2134, 7
      %v2136 = vsub.s32 0, %v2135
      %v2137 = vrot.slane %v2130, %v2136
      %v2171 = vlaneseq
      %v2172 = vand.u32 %v2171, 127
      %v2173 = vlaneseq
      %v2174 = vshrl.u32 %v2173, 7
      %v2175 = vsub.s32 %v2172, %v2174
      %v2176 = vrot.slane %v1994, %v2175
      %v2177 = vadd.s32 %v2172, 4294967288
      %v2178 = vlaneseq
      %v2179 = vshrl.u32 %v2178, 7
      %v2180 = vsub.s32 %v2177, %v2179
      %v2181 = vrot.slane %v1995, %v2180
      %vm2182 = vcmask 130112
      %v2183 = vsel %vm2182, %v2181, %v2176
      %v2184 = vadd.s32 %v2172, 4294967280
      %v2185 = vlaneseq
      %v2186 = vshrl.u32 %v2185, 7
      %v2187 = vsub.s32 %v2184, %v2186
      %v2188 = vrot.slane %v1996, %v2187
      %vm2189 = vcmask 195712
      %v2190 = vsel %vm2189, %v2188, %v2183
      %v2191 = vadd.s32 %v2172, 4294967272
      %v2192 = vlaneseq
      %v2193 = vshrl.u32 %v2192, 7
      %v2194 = vsub.s32 %v2191, %v2193
      %v2195 = vrot.slane %v1997, %v2194
      %vm2196 = vcmask 261312
      %v2197 = vsel %vm2196, %v2195, %v2190
      %v2198 = vadd.s32 %v2172, 4294967264
      %v2199 = vlaneseq
      %v2200 = vshrl.u32 %v2199, 7
      %v2201 = vsub.s32 %v2198, %v2200
      %v2202 = vrot.slane %v1998, %v2201
      %vm2203 = vcmask 326912
      %v2204 = vsel %vm2203, %v2202, %v2197
      %v2205 = vadd.s32 %v2172, 4294967256
      %v2206 = vlaneseq
      %v2207 = vshrl.u32 %v2206, 7
      %v2208 = vsub.s32 %v2205, %v2207
      %v2209 = vrot.slane %v1999, %v2208
      %vm2210 = vcmask 392512
      %v2211 = vsel %vm2210, %v2209, %v2204
      %v2212 = vadd.s32 %v2172, 4294967248
      %v2213 = vlaneseq
      %v2214 = vshrl.u32 %v2213, 7
      %v2215 = vsub.s32 %v2212, %v2214
      %v2216 = vrot.slane %v2000, %v2215
      %vm2217 = vcmask 458112
      %v2218 = vsel %vm2217, %v2216, %v2211
      %v2219 = vadd.s32 %v2172, 4294967240
      %v2220 = vlaneseq
      %v2221 = vshrl.u32 %v2220, 7
      %v2222 = vsub.s32 %v2219, %v2221
      %v2223 = vrot.slane %v2001, %v2222
      %vm2224 = vcmask 523712
      %v2225 = vsel %vm2224, %v2223, %v2218
      %v2226 = vlaneseq
      %v2227 = vshrl.u32 %v2226, 7
      %v2228 = vsub.s32 %v2172, %v2227
      %v2229 = vrot.slane %v2002, %v2228
      %v2230 = vlaneseq
      %v2231 = vshrl.u32 %v2230, 7
      %v2232 = vsub.s32 %v2177, %v2231
      %v2233 = vrot.slane %v2003, %v2232
      %v2234 = vsel %vm2182, %v2233, %v2229
      %v2235 = vlaneseq
      %v2236 = vshrl.u32 %v2235, 7
      %v2237 = vsub.s32 %v2184, %v2236
      %v2238 = vrot.slane %v2004, %v2237
      %v2239 = vsel %vm2189, %v2238, %v2234
      %v2240 = vlaneseq
      %v2241 = vshrl.u32 %v2240, 7
      %v2242 = vsub.s32 %v2191, %v2241
      %v2243 = vrot.slane %v2005, %v2242
      %v2244 = vsel %vm2196, %v2243, %v2239
      %v2245 = vlaneseq
      %v2246 = vshrl.u32 %v2245, 7
      %v2247 = vsub.s32 %v2198, %v2246
      %v2248 = vrot.slane %v2006, %v2247
      %v2249 = vsel %vm2203, %v2248, %v2244
      %v2250 = vlaneseq
      %v2251 = vshrl.u32 %v2250, 7
      %v2252 = vsub.s32 %v2205, %v2251
      %v2253 = vrot.slane %v2007, %v2252
      %v2254 = vsel %vm2210, %v2253, %v2249
      %v2255 = vlaneseq
      %v2256 = vshrl.u32 %v2255, 7
      %v2257 = vsub.s32 %v2212, %v2256
      %v2258 = vrot.slane %v2008, %v2257
      %v2259 = vsel %vm2217, %v2258, %v2254
      %v2260 = vlaneseq
      %v2261 = vshrl.u32 %v2260, 7
      %v2262 = vsub.s32 %v2219, %v2261
      %v2263 = vrot.slane %v2009, %v2262
      %v2264 = vsel %vm2224, %v2263, %v2259
      %v2265 = vlaneseq
      %v2266 = vshrl.u32 %v2265, 7
      %v2267 = vsub.s32 %v2172, %v2266
      %v2268 = vrot.slane %v2010, %v2267
      %v2269 = vlaneseq
      %v2270 = vshrl.u32 %v2269, 7
      %v2271 = vsub.s32 %v2177, %v2270
      %v2272 = vrot.slane %v2011, %v2271
      %v2273 = vsel %vm2182, %v2272, %v2268
      %v2274 = vlaneseq
      %v2275 = vshrl.u32 %v2274, 7
      %v2276 = vsub.s32 %v2184, %v2275
      %v2277 = vrot.slane %v2012, %v2276
      %v2278 = vsel %vm2189, %v2277, %v2273
      %v2279 = vlaneseq
      %v2280 = vshrl.u32 %v2279, 7
      %v2281 = vsub.s32 %v2191, %v2280
      %v2282 = vrot.slane %v2013, %v2281
      %v2283 = vsel %vm2196, %v2282, %v2278
      %v2284 = vlaneseq
      %v2285 = vshrl.u32 %v2284, 7
      %v2286 = vsub.s32 %v2198, %v2285
      %v2287 = vrot.slane %v2014, %v2286
      %v2288 = vsel %vm2203, %v2287, %v2283
      %v2289 = vlaneseq
      %v2290 = vshrl.u32 %v2289, 7
      %v2291 = vsub.s32 %v2205, %v2290
      %v2292 = vrot.slane %v2015, %v2291
      %v2293 = vsel %vm2210, %v2292, %v2288
      %v2294 = vlaneseq
      %v2295 = vshrl.u32 %v2294, 7
      %v2296 = vsub.s32 %v2212, %v2295
      %v2297 = vrot.slane %v2016, %v2296
      %v2298 = vsel %vm2217, %v2297, %v2293
      %v2299 = vlaneseq
      %v2300 = vshrl.u32 %v2299, 7
      %v2301 = vsub.s32 %v2219, %v2300
      %v2302 = vrot.slane %v2017, %v2301
      %v2303 = vsel %vm2224, %v2302, %v2298
      %v2304 = vlaneseq
      %v2305 = vshrl.u32 %v2304, 7
      %v2306 = vsub.s32 %v2172, %v2305
      %v2307 = vrot.slane %v2018, %v2306
      %v2308 = vlaneseq
      %v2309 = vshrl.u32 %v2308, 7
      %v2310 = vsub.s32 %v2177, %v2309
      %v2311 = vrot.slane %v2019, %v2310
      %v2312 = vsel %vm2182, %v2311, %v2307
      %v2313 = vlaneseq
      %v2314 = vshrl.u32 %v2313, 7
      %v2315 = vsub.s32 %v2184, %v2314
      %v2316 = vrot.slane %v2020, %v2315
      %v2317 = vsel %vm2189, %v2316, %v2312
      %v2318 = vlaneseq
      %v2319 = vshrl.u32 %v2318, 7
      %v2320 = vsub.s32 %v2191, %v2319
      %v2321 = vrot.slane %v2021, %v2320
      %v2322 = vsel %vm2196, %v2321, %v2317
      %v2323 = vlaneseq
      %v2324 = vshrl.u32 %v2323, 7
      %v2325 = vsub.s32 %v2198, %v2324
      %v2326 = vrot.slane %v2022, %v2325
      %v2327 = vsel %vm2203, %v2326, %v2322
      %v2328 = vlaneseq
      %v2329 = vshrl.u32 %v2328, 7
      %v2330 = vsub.s32 %v2205, %v2329
      %v2331 = vrot.slane %v2023, %v2330
      %v2332 = vsel %vm2210, %v2331, %v2327
      %v2333 = vlaneseq
      %v2334 = vshrl.u32 %v2333, 7
      %v2335 = vsub.s32 %v2212, %v2334
      %v2336 = vrot.slane %v2024, %v2335
      %v2337 = vsel %vm2217, %v2336, %v2332
      %v2338 = vlaneseq
      %v2339 = vshrl.u32 %v2338, 7
      %v2340 = vsub.s32 %v2219, %v2339
      %v2341 = vrot.slane %v2025, %v2340
      %v2342 = vsel %vm2224, %v2341, %v2337
      %vm2343 = vcmask 1041409
      %v2344 = vsel %vm2343, %v2264, %v2225
      %vm2345 = vcmask 1042434
      %v2346 = vsel %vm2345, %v2303, %v2344
      %vm2347 = vcmask 1043459
      %v2348 = vsel %vm2347, %v2342, %v2346
      %vm2349 = vcmask 523264
      %v2350 = vsel %vm2349, %v2348, 0
      %2352 = vmatprep.subr.mxu0 0.0
      %2353 = vmatpush1.msra.mxu0 %v2122
      %2354 = vmatprep.subr.mxu0 0.0
      %2355 = vmatpush1.msra.mxu0 %v2123
      %2356 = vmatprep.subr.mxu0 0.0
      %2357 = vmatpush1.msra.mxu0 %v2124
      %2358 = vmatprep.subr.mxu0 0.0
      %2359 = vmatpush1.msra.mxu0 %v2125
      %2360 = vmatprep.subr.mxu0 0.0
      %2361 = vmatpush1.msra.mxu0 %v2126
      %2362 = vmatprep.subr.mxu0 0.0
      %2363 = vmatpush1.msra.mxu0 %v2127
      %2364 = vmatprep.subr.mxu0 0.0
      %2365 = vmatpush1.msra.mxu0 %v2128
      %2366 = vmatprep.subr.mxu0 0.0
      %2367 = vmatpush1.msra.mxu0 %v2129
      %2368 = vmatprep.subr.mxu0 0.0
      %2369 = vmatpush1.msra.mxu0 0.0
      %2370 = vmatprep.subr.mxu0 0.0
      %2371 = vmatpush1.msra.mxu0 0.0
      %2372 = vmatprep.subr.mxu0 0.0
      %2373 = vmatpush1.msra.mxu0 0.0
      %2374 = vmatprep.subr.mxu0 0.0
      %2375 = vmatpush1.msra.mxu0 0.0
      %2376 = vmatprep.subr.mxu0 0.0
      %2377 = vmatpush1.msra.mxu0 0.0
      %2378 = vmatprep.subr.mxu0 0.0
      %2379 = vmatpush1.msra.mxu0 0.0
      %2380 = vmatprep.subr.mxu0 0.0
      %2381 = vmatpush1.msra.mxu0 0.0
      %2382 = vmatprep.subr.mxu0 0.0
      %2383 = vmatpush1.msra.mxu0 0.0
      %2384 = vmatprep.subr.mxu0 0.0
      %2385 = vmatpush1.msra.mxu0 0.0
      %2386 = vmatprep.subr.mxu0 0.0
      %2387 = vmatpush1.msra.mxu0 0.0
      %2388 = vmatprep.subr.mxu0 0.0
      %2389 = vmatpush1.msra.mxu0 0.0
      %2390 = vmatprep.subr.mxu0 0.0
      %2391 = vmatpush1.msra.mxu0 0.0
      %2392 = vmatprep.subr.mxu0 0.0
      %2393 = vmatpush1.msra.mxu0 0.0
      %2394 = vmatprep.subr.mxu0 0.0
      %2395 = vmatpush1.msra.mxu0 0.0
      %2396 = vmatprep.subr.mxu0 0.0
      %2397 = vmatpush1.msra.mxu0 0.0
      %2398 = vmatprep.subr.mxu0 0.0
      %2399 = vmatpush1.msra.mxu0 0.0
      %2400 = vmatprep.subr.mxu0 0.0
      %2401 = vmatpush1.msra.mxu0 0.0
      %2402 = vmatprep.subr.mxu0 0.0
      %2403 = vmatpush1.msra.mxu0 0.0
      %2404 = vmatprep.subr.mxu0 0.0
      %2405 = vmatpush1.msra.mxu0 0.0
      %2406 = vmatprep.subr.mxu0 0.0
      %2407 = vmatpush1.msra.mxu0 0.0
      %2408 = vmatprep.subr.mxu0 0.0
      %2409 = vmatpush1.msra.mxu0 0.0
      %2410 = vmatprep.subr.mxu0 0.0
      %2411 = vmatpush1.msra.mxu0 0.0
      %2412 = vmatprep.subr.mxu0 0.0
      %2413 = vmatpush1.msra.mxu0 0.0
      %2414 = vmatprep.subr.mxu0 0.0
      %2415 = vmatpush1.msra.mxu0 0.0
      %2416 = vmatprep.mubr.f32.mxu0 0.0
      %2417 = vmatmul.mubr.f32.gmra.mrb[0].mxu0 %v2350
      %v2418 = vpop.f32.mrb[0].mxu0
      %v2419 = vadd.f32 %v2137, %v2418
      %v2420 = vpop.f32.mrb[0].mxu0
      %2421 = vdwg.mxu0
      %v2423 = vlaneseq
      %v2424 = vshrl.u32 %v2423, 7
      %v2425 = vsub.s32 0, %v2424
      %v2426 = vrot.slane %v2132, %v2425
      %vm2428 = vcmask 31744
      %v2430 = vsel %vm2428, %v2419, 0
      %vm2432 = vcmask 1043456
      %v2434 = vsel %vm2432, %v2131, 0
      %2436 = vmatprep.subr.mxu0 0.0
      %2437 = vmatpush1.msra.mxu0 %v2434
      %2438 = vmatprep.subr.mxu0 0.0
      %2439 = vmatpush1.msra.mxu0 0.0
      %2440 = vmatprep.subr.mxu0 0.0
      %2441 = vmatpush1.msra.mxu0 0.0
      %2442 = vmatprep.subr.mxu0 0.0
      %2443 = vmatpush1.msra.mxu0 0.0
      %2444 = vmatprep.subr.mxu0 0.0
      %2445 = vmatpush1.msra.mxu0 0.0
      %2446 = vmatprep.subr.mxu0 0.0
      %2447 = vmatpush1.msra.mxu0 0.0
      %2448 = vmatprep.subr.mxu0 0.0
      %2449 = vmatpush1.msra.mxu0 0.0
      %2450 = vmatprep.subr.mxu0 0.0
      %2451 = vmatpush1.msra.mxu0 0.0
      %2452 = vmatprep.subr.mxu0 0.0
      %2453 = vmatpush1.msra.mxu0 0.0
      %2454 = vmatprep.subr.mxu0 0.0
      %2455 = vmatpush1.msra.mxu0 0.0
      %2456 = vmatprep.subr.mxu0 0.0
      %2457 = vmatpush1.msra.mxu0 0.0
      %2458 = vmatprep.subr.mxu0 0.0
      %2459 = vmatpush1.msra.mxu0 0.0
      %2460 = vmatprep.subr.mxu0 0.0
      %2461 = vmatpush1.msra.mxu0 0.0
      %2462 = vmatprep.subr.mxu0 0.0
      %2463 = vmatpush1.msra.mxu0 0.0
      %2464 = vmatprep.subr.mxu0 0.0
      %2465 = vmatpush1.msra.mxu0 0.0
      %2466 = vmatprep.subr.mxu0 0.0
      %2467 = vmatpush1.msra.mxu0 0.0
      %2468 = vmatprep.subr.mxu0 0.0
      %2469 = vmatpush1.msra.mxu0 0.0
      %2470 = vmatprep.subr.mxu0 0.0
      %2471 = vmatpush1.msra.mxu0 0.0
      %2472 = vmatprep.subr.mxu0 0.0
      %2473 = vmatpush1.msra.mxu0 0.0
      %2474 = vmatprep.subr.mxu0 0.0
      %2475 = vmatpush1.msra.mxu0 0.0
      %2476 = vmatprep.subr.mxu0 0.0
      %2477 = vmatpush1.msra.mxu0 0.0
      %2478 = vmatprep.subr.mxu0 0.0
      %2479 = vmatpush1.msra.mxu0 0.0
      %2480 = vmatprep.subr.mxu0 0.0
      %2481 = vmatpush1.msra.mxu0 0.0
      %2482 = vmatprep.subr.mxu0 0.0
      %2483 = vmatpush1.msra.mxu0 0.0
      %2484 = vmatprep.subr.mxu0 0.0
      %2485 = vmatpush1.msra.mxu0 0.0
      %2486 = vmatprep.subr.mxu0 0.0
      %2487 = vmatpush1.msra.mxu0 0.0
      %2488 = vmatprep.subr.mxu0 0.0
      %2489 = vmatpush1.msra.mxu0 0.0
      %2490 = vmatprep.subr.mxu0 0.0
      %2491 = vmatpush1.msra.mxu0 0.0
      %2492 = vmatprep.subr.mxu0 0.0
      %2493 = vmatpush1.msra.mxu0 0.0
      %2494 = vmatprep.subr.mxu0 0.0
      %2495 = vmatpush1.msra.mxu0 0.0
      %2496 = vmatprep.subr.mxu0 0.0
      %2497 = vmatpush1.msra.mxu0 0.0
      %2498 = vmatprep.subr.mxu0 0.0
      %2499 = vmatpush1.msra.mxu0 0.0
      %2500 = vmatprep.mubr.f32.mxu0 0.0
      %2501 = vmatmul.mubr.f32.gmra.mrb[0].mxu0 %v2430
      %v2502 = vpop.f32.mrb[0].mxu0
      %v2503 = vadd.f32 %v2426, %v2502
      %v2504 = vpop.f32.mrb[0].mxu0
      %2505 = vdwg.mxu0
      %v2506 = vmax.f32 %v2503, 0.0
      %v2539 = vlaneseq
      %v2540 = vshrl.u32 %v2539, 7
      %v2541 = vsub.s32 %v2172, %v2540
      %v2542 = vrot.slane %v2059, %v2541
      %v2543 = vlaneseq
      %v2544 = vshrl.u32 %v2543, 7
      %v2545 = vsub.s32 %v2177, %v2544
      %v2546 = vrot.slane %v2061, %v2545
      %v2547 = vsel %vm2182, %v2546, %v2542
      %v2548 = vlaneseq
      %v2549 = vshrl.u32 %v2548, 7
      %v2550 = vsub.s32 %v2184, %v2549
      %v2551 = vrot.slane %v2063, %v2550
      %v2552 = vsel %vm2189, %v2551, %v2547
      %v2553 = vlaneseq
      %v2554 = vshrl.u32 %v2553, 7
      %v2555 = vsub.s32 %v2191, %v2554
      %v2556 = vrot.slane %v2065, %v2555
      %v2557 = vsel %vm2196, %v2556, %v2552
      %v2558 = vlaneseq
      %v2559 = vshrl.u32 %v2558, 7
      %v2560 = vsub.s32 %v2198, %v2559
      %v2561 = vrot.slane %v2067, %v2560
      %v2562 = vsel %vm2203, %v2561, %v2557
      %v2563 = vlaneseq
      %v2564 = vshrl.u32 %v2563, 7
      %v2565 = vsub.s32 %v2205, %v2564
      %v2566 = vrot.slane %v2069, %v2565
      %v2567 = vsel %vm2210, %v2566, %v2562
      %v2568 = vlaneseq
      %v2569 = vshrl.u32 %v2568, 7
      %v2570 = vsub.s32 %v2212, %v2569
      %v2571 = vrot.slane %v2071, %v2570
      %v2572 = vsel %vm2217, %v2571, %v2567
      %v2573 = vlaneseq
      %v2574 = vshrl.u32 %v2573, 7
      %v2575 = vsub.s32 %v2219, %v2574
      %v2576 = vrot.slane %v2073, %v2575
      %v2577 = vsel %vm2224, %v2576, %v2572
      %v2578 = vlaneseq
      %v2579 = vshrl.u32 %v2578, 7
      %v2580 = vsub.s32 %v2172, %v2579
      %v2581 = vrot.slane %v2075, %v2580
      %v2582 = vlaneseq
      %v2583 = vshrl.u32 %v2582, 7
      %v2584 = vsub.s32 %v2177, %v2583
      %v2585 = vrot.slane %v2077, %v2584
      %v2586 = vsel %vm2182, %v2585, %v2581
      %v2587 = vlaneseq
      %v2588 = vshrl.u32 %v2587, 7
      %v2589 = vsub.s32 %v2184, %v2588
      %v2590 = vrot.slane %v2079, %v2589
      %v2591 = vsel %vm2189, %v2590, %v2586
      %v2592 = vlaneseq
      %v2593 = vshrl.u32 %v2592, 7
      %v2594 = vsub.s32 %v2191, %v2593
      %v2595 = vrot.slane %v2081, %v2594
      %v2596 = vsel %vm2196, %v2595, %v2591
      %v2597 = vlaneseq
      %v2598 = vshrl.u32 %v2597, 7
      %v2599 = vsub.s32 %v2198, %v2598
      %v2600 = vrot.slane %v2083, %v2599
      %v2601 = vsel %vm2203, %v2600, %v2596
      %v2602 = vlaneseq
      %v2603 = vshrl.u32 %v2602, 7
      %v2604 = vsub.s32 %v2205, %v2603
      %v2605 = vrot.slane %v2085, %v2604
      %v2606 = vsel %vm2210, %v2605, %v2601
      %v2607 = vlaneseq
      %v2608 = vshrl.u32 %v2607, 7
      %v2609 = vsub.s32 %v2212, %v2608
      %v2610 = vrot.slane %v2087, %v2609
      %v2611 = vsel %vm2217, %v2610, %v2606
      %v2612 = vlaneseq
      %v2613 = vshrl.u32 %v2612, 7
      %v2614 = vsub.s32 %v2219, %v2613
      %v2615 = vrot.slane %v2089, %v2614
      %v2616 = vsel %vm2224, %v2615, %v2611
      %v2617 = vlaneseq
      %v2618 = vshrl.u32 %v2617, 7
      %v2619 = vsub.s32 %v2172, %v2618
      %v2620 = vrot.slane %v2091, %v2619
      %v2621 = vlaneseq
      %v2622 = vshrl.u32 %v2621, 7
      %v2623 = vsub.s32 %v2177, %v2622
      %v2624 = vrot.slane %v2093, %v2623
      %v2625 = vsel %vm2182, %v2624, %v2620
      %v2626 = vlaneseq
      %v2627 = vshrl.u32 %v2626, 7
      %v2628 = vsub.s32 %v2184, %v2627
      %v2629 = vrot.slane %v2095, %v2628
      %v2630 = vsel %vm2189, %v2629, %v2625
      %v2631 = vlaneseq
      %v2632 = vshrl.u32 %v2631, 7
      %v2633 = vsub.s32 %v2191, %v2632
      %v2634 = vrot.slane %v2097, %v2633
      %v2635 = vsel %vm2196, %v2634, %v2630
      %v2636 = vlaneseq
      %v2637 = vshrl.u32 %v2636, 7
      %v2638 = vsub.s32 %v2198, %v2637
      %v2639 = vrot.slane %v2099, %v2638
      %v2640 = vsel %vm2203, %v2639, %v2635
      %v2641 = vlaneseq
      %v2642 = vshrl.u32 %v2641, 7
      %v2643 = vsub.s32 %v2205, %v2642
      %v2644 = vrot.slane %v2101, %v2643
      %v2645 = vsel %vm2210, %v2644, %v2640
      %v2646 = vlaneseq
      %v2647 = vshrl.u32 %v2646, 7
      %v2648 = vsub.s32 %v2212, %v2647
      %v2649 = vrot.slane %v2103, %v2648
      %v2650 = vsel %vm2217, %v2649, %v2645
      %v2651 = vlaneseq
      %v2652 = vshrl.u32 %v2651, 7
      %v2653 = vsub.s32 %v2219, %v2652
      %v2654 = vrot.slane %v2105, %v2653
      %v2655 = vsel %vm2224, %v2654, %v2650
      %v2656 = vlaneseq
      %v2657 = vshrl.u32 %v2656, 7
      %v2658 = vsub.s32 %v2172, %v2657
      %v2659 = vrot.slane %v2107, %v2658
      %v2660 = vlaneseq
      %v2661 = vshrl.u32 %v2660, 7
      %v2662 = vsub.s32 %v2177, %v2661
      %v2663 = vrot.slane %v2109, %v2662
      %v2664 = vsel %vm2182, %v2663, %v2659
      %v2665 = vlaneseq
      %v2666 = vshrl.u32 %v2665, 7
      %v2667 = vsub.s32 %v2184, %v2666
      %v2668 = vrot.slane %v2111, %v2667
      %v2669 = vsel %vm2189, %v2668, %v2664
      %v2670 = vlaneseq
      %v2671 = vshrl.u32 %v2670, 7
      %v2672 = vsub.s32 %v2191, %v2671
      %v2673 = vrot.slane %v2113, %v2672
      %v2674 = vsel %vm2196, %v2673, %v2669
      %v2675 = vlaneseq
      %v2676 = vshrl.u32 %v2675, 7
      %v2677 = vsub.s32 %v2198, %v2676
      %v2678 = vrot.slane %v2115, %v2677
      %v2679 = vsel %vm2203, %v2678, %v2674
      %v2680 = vlaneseq
      %v2681 = vshrl.u32 %v2680, 7
      %v2682 = vsub.s32 %v2205, %v2681
      %v2683 = vrot.slane %v2117, %v2682
      %v2684 = vsel %vm2210, %v2683, %v2679
      %v2685 = vlaneseq
      %v2686 = vshrl.u32 %v2685, 7
      %v2687 = vsub.s32 %v2212, %v2686
      %v2688 = vrot.slane %v2119, %v2687
      %v2689 = vsel %vm2217, %v2688, %v2684
      %v2690 = vlaneseq
      %v2691 = vshrl.u32 %v2690, 7
      %v2692 = vsub.s32 %v2219, %v2691
      %v2693 = vrot.slane %v2121, %v2692
      %v2694 = vsel %vm2224, %v2693, %v2689
      %v2695 = vsel %vm2343, %v2616, %v2577
      %v2696 = vsel %vm2345, %v2655, %v2695
      %v2697 = vsel %vm2347, %v2694, %v2696
      %v2698 = vsel %vm2349, %v2697, 0
      %2700 = vmatprep.subr.mxu0 0.0
      %2701 = vmatpush1.msra.mxu0 %v2122
      %2702 = vmatprep.subr.mxu0 0.0
      %2703 = vmatpush1.msra.mxu0 %v2123
      %2704 = vmatprep.subr.mxu0 0.0
      %2705 = vmatpush1.msra.mxu0 %v2124
      %2706 = vmatprep.subr.mxu0 0.0
      %2707 = vmatpush1.msra.mxu0 %v2125
      %2708 = vmatprep.subr.mxu0 0.0
      %2709 = vmatpush1.msra.mxu0 %v2126
      %2710 = vmatprep.subr.mxu0 0.0
      %2711 = vmatpush1.msra.mxu0 %v2127
      %2712 = vmatprep.subr.mxu0 0.0
      %2713 = vmatpush1.msra.mxu0 %v2128
      %2714 = vmatprep.subr.mxu0 0.0
      %2715 = vmatpush1.msra.mxu0 %v2129
      %2716 = vmatprep.subr.mxu0 0.0
      %2717 = vmatpush1.msra.mxu0 0.0
      %2718 = vmatprep.subr.mxu0 0.0
      %2719 = vmatpush1.msra.mxu0 0.0
      %2720 = vmatprep.subr.mxu0 0.0
      %2721 = vmatpush1.msra.mxu0 0.0
      %2722 = vmatprep.subr.mxu0 0.0
      %2723 = vmatpush1.msra.mxu0 0.0
      %2724 = vmatprep.subr.mxu0 0.0
      %2725 = vmatpush1.msra.mxu0 0.0
      %2726 = vmatprep.subr.mxu0 0.0
      %2727 = vmatpush1.msra.mxu0 0.0
      %2728 = vmatprep.subr.mxu0 0.0
      %2729 = vmatpush1.msra.mxu0 0.0
      %2730 = vmatprep.subr.mxu0 0.0
      %2731 = vmatpush1.msra.mxu0 0.0
      %2732 = vmatprep.subr.mxu0 0.0
      %2733 = vmatpush1.msra.mxu0 0.0
      %2734 = vmatprep.subr.mxu0 0.0
      %2735 = vmatpush1.msra.mxu0 0.0
      %2736 = vmatprep.subr.mxu0 0.0
      %2737 = vmatpush1.msra.mxu0 0.0
      %2738 = vmatprep.subr.mxu0 0.0
      %2739 = vmatpush1.msra.mxu0 0.0
      %2740 = vmatprep.subr.mxu0 0.0
      %2741 = vmatpush1.msra.mxu0 0.0
      %2742 = vmatprep.subr.mxu0 0.0
      %2743 = vmatpush1.msra.mxu0 0.0
      %2744 = vmatprep.subr.mxu0 0.0
      %2745 = vmatpush1.msra.mxu0 0.0
      %2746 = vmatprep.subr.mxu0 0.0
      %2747 = vmatpush1.msra.mxu0 0.0
      %2748 = vmatprep.subr.mxu0 0.0
      %2749 = vmatpush1.msra.mxu0 0.0
      %2750 = vmatprep.subr.mxu0 0.0
      %2751 = vmatpush1.msra.mxu0 0.0
      %2752 = vmatprep.subr.mxu0 0.0
      %2753 = vmatpush1.msra.mxu0 0.0
      %2754 = vmatprep.subr.mxu0 0.0
      %2755 = vmatpush1.msra.mxu0 0.0
      %2756 = vmatprep.subr.mxu0 0.0
      %2757 = vmatpush1.msra.mxu0 0.0
      %2758 = vmatprep.subr.mxu0 0.0
      %2759 = vmatpush1.msra.mxu0 0.0
      %2760 = vmatprep.subr.mxu0 0.0
      %2761 = vmatpush1.msra.mxu0 0.0
      %2762 = vmatprep.subr.mxu0 0.0
      %2763 = vmatpush1.msra.mxu0 0.0
      %2764 = vmatprep.mubr.f32.mxu0 0.0
      %2765 = vmatmul.mubr.f32.gmra.mrb[0].mxu0 %v2698
      %v2766 = vpop.f32.mrb[0].mxu0
      %v2767 = vadd.f32 %v2137, %v2766
      %v2768 = vpop.f32.mrb[0].mxu0
      %2769 = vdwg.mxu0
      %v2771 = vsel %vm2428, %v2767, 0
      %2773 = vmatprep.subr.mxu0 0.0
      %2774 = vmatpush1.msra.mxu0 %v2434
      %2775 = vmatprep.subr.mxu0 0.0
      %2776 = vmatpush1.msra.mxu0 0.0
      %2777 = vmatprep.subr.mxu0 0.0
      %2778 = vmatpush1.msra.mxu0 0.0
      %2779 = vmatprep.subr.mxu0 0.0
      %2780 = vmatpush1.msra.mxu0 0.0
      %2781 = vmatprep.subr.mxu0 0.0
      %2782 = vmatpush1.msra.mxu0 0.0
      %2783 = vmatprep.subr.mxu0 0.0
      %2784 = vmatpush1.msra.mxu0 0.0
      %2785 = vmatprep.subr.mxu0 0.0
      %2786 = vmatpush1.msra.mxu0 0.0
      %2787 = vmatprep.subr.mxu0 0.0
      %2788 = vmatpush1.msra.mxu0 0.0
      %2789 = vmatprep.subr.mxu0 0.0
      %2790 = vmatpush1.msra.mxu0 0.0
      %2791 = vmatprep.subr.mxu0 0.0
      %2792 = vmatpush1.msra.mxu0 0.0
      %2793 = vmatprep.subr.mxu0 0.0
      %2794 = vmatpush1.msra.mxu0 0.0
      %2795 = vmatprep.subr.mxu0 0.0
      %2796 = vmatpush1.msra.mxu0 0.0
      %2797 = vmatprep.subr.mxu0 0.0
      %2798 = vmatpush1.msra.mxu0 0.0
      %2799 = vmatprep.subr.mxu0 0.0
      %2800 = vmatpush1.msra.mxu0 0.0
      %2801 = vmatprep.subr.mxu0 0.0
      %2802 = vmatpush1.msra.mxu0 0.0
      %2803 = vmatprep.subr.mxu0 0.0
      %2804 = vmatpush1.msra.mxu0 0.0
      %2805 = vmatprep.subr.mxu0 0.0
      %2806 = vmatpush1.msra.mxu0 0.0
      %2807 = vmatprep.subr.mxu0 0.0
      %2808 = vmatpush1.msra.mxu0 0.0
      %2809 = vmatprep.subr.mxu0 0.0
      %2810 = vmatpush1.msra.mxu0 0.0
      %2811 = vmatprep.subr.mxu0 0.0
      %2812 = vmatpush1.msra.mxu0 0.0
      %2813 = vmatprep.subr.mxu0 0.0
      %2814 = vmatpush1.msra.mxu0 0.0
      %2815 = vmatprep.subr.mxu0 0.0
      %2816 = vmatpush1.msra.mxu0 0.0
      %2817 = vmatprep.subr.mxu0 0.0
      %2818 = vmatpush1.msra.mxu0 0.0
      %2819 = vmatprep.subr.mxu0 0.0
      %2820 = vmatpush1.msra.mxu0 0.0
      %2821 = vmatprep.subr.mxu0 0.0
      %2822 = vmatpush1.msra.mxu0 0.0
      %2823 = vmatprep.subr.mxu0 0.0
      %2824 = vmatpush1.msra.mxu0 0.0
      %2825 = vmatprep.subr.mxu0 0.0
      %2826 = vmatpush1.msra.mxu0 0.0
      %2827 = vmatprep.subr.mxu0 0.0
      %2828 = vmatpush1.msra.mxu0 0.0
      %2829 = vmatprep.subr.mxu0 0.0
      %2830 = vmatpush1.msra.mxu0 0.0
      %2831 = vmatprep.subr.mxu0 0.0
      %2832 = vmatpush1.msra.mxu0 0.0
      %2833 = vmatprep.subr.mxu0 0.0
      %2834 = vmatpush1.msra.mxu0 0.0
      %2835 = vmatprep.subr.mxu0 0.0
      %2836 = vmatpush1.msra.mxu0 0.0
      %2837 = vmatprep.mubr.f32.mxu0 0.0
      %2838 = vmatmul.mubr.f32.gmra.mrb[0].mxu0 %v2771
      %v2839 = vpop.f32.mrb[0].mxu0
      %v2840 = vadd.f32 %v2426, %v2839
      %v2841 = vpop.f32.mrb[0].mxu0
      %2842 = vdwg.mxu0
      %v2843 = vadd.f32 %v2506, %v2840
      %v2844 = vxor.u32 %v2843, 2147483648
      %v2845 = vmul.f32 %v2844, 1.442695
      %v2846 = vpow.pop %v2845
      %v2847 = vadd.f32 %v2846, 1.0
      %v2848 = vrcp.pop %v2847
      %v2849 = vmul.f32 1.0, %v2848
      %vm2850 = vcmask 519168
      %2851 = vst.msk [vmem:[#allocation7] sm:$0xf] %vm2850, %v2849
    $region33: #{tpu_custom_call.1} parent=1 // pred_fallthru
      _
    // Predicated region
    $region34: #{tpu_custom_call.1} parent=1 // pred_check
      _
    $region35: #{tpu_custom_call.1} parent=1 // pred_check_branch
      %2853 = sbr.rel (0) target = $region37
    $region36: #{tpu_custom_call.1} parent=1 // pred_region
      %s2855 = ssub.s32 64, 64
      %2856 = vsyncadd [#allocation6], %s2855
      %s2858 = sshll.u32 [#allocation7], 4
      %s2859 = int_to_ptr.vmem [resolvable:$true] %s2858
      %2861 = dma.vmem_to_hbm [thread:$0]  %s2859, 64, %s5, [#allocation6]
    $region37: #{tpu_custom_call.1} parent=1 // pred_fallthru
      _
    // Predicated region
    $region38: #{tpu_custom_call.1} parent=1 // pred_check
      _
    $region39: #{tpu_custom_call.1} parent=1 // pred_check_branch
      %2863 = sbr.rel (0) target = $region41
    $region40: #{tpu_custom_call.1} parent=1 // pred_region
      %2864 = dma.done [#allocation6], 64
    $region41: #{tpu_custom_call.1} parent=1 // pred_fallthru
      _
    %2865 = vsyncpa [#allocation5], 1
    %2866 = vsyncpa [#allocation6], 1

</llo_original>
